<compile_context>
chip_gen: v7x
topology: tpu7x:2x2x1
jax: 0.10.0
libtpu: 0.0.40
codegen_flags: <defaults>
</compile_context>

<pallas_src>
import functools
import math

import jax
import jax.numpy as jnp
from jax import lax
from jax.experimental import pallas as pl
from jax.experimental.pallas import tpu as pltpu


# MeanAct: clamp(exp(y), 1e-5, 1e6) == exp(clip(y, log 1e-5, log 1e6))
# (clipping exp's *input* avoids transient inf; exp is monotonic so identical).
_LOG_MEAN_MIN = math.log(1e-5)
_LOG_MEAN_MAX = math.log(1e6)


# ---------------------------------------------------------------------------
# In-kernel helpers
# ---------------------------------------------------------------------------
def _student_t(z, centers_t, csq):
    """Row-normalized Student-t q.

    centers_t is (zdims, K) (feature-major); csq = sum(centers^2) (1, K),
    computed once by the caller and shared across Q / QL / QG.
    """
    zsq = jnp.sum(z * z, axis=1, keepdims=True)                    # (n, 1) lane reduce
    d2 = zsq + csq - 2.0 * jnp.dot(z, centers_t,
                                   preferred_element_type=jnp.float32)
    d2 = jnp.maximum(d2, 0.0)            # ||z - c||^2 >= 0 (guard cancellation)
    q = pl.reciprocal(1.0 + d2, approx=True)                       # EUP vrcp
    return q * pl.reciprocal(jnp.sum(q, axis=1, keepdims=True), approx=True)


# ---------------------------------------------------------------------------
# Fully fused DCRN forward kernel (single invocation, no grid: every
# intermediate lives in VMEM/vregs; all shapes here are a few KiB).
# ---------------------------------------------------------------------------
def _dcrn_kernel(
    # inputs
    x_ref, g_ref, am_ref,
    wcat1_ref, sc1_ref, sh1_ref,
    wcat2_ref, sc2_ref, sh2_ref,
    wcat3_ref, sc3_ref, sh3_ref,
    a_ref, b_ref, alpha_ref,
    wd_ref, bd_ref, wh_ref, bh_ref,
    ct_ref,
    # outputs
    z_ref, q_ref, ql_ref, qg_ref, apred_ref, pi_ref, disp_ref, mean_ref,
    *, sigma):
    x = x_ref[...]
    g = g_ref[...]            # loaded once, reused by all three encoder layers

    def enc_layer(h, wcat_ref, sc_ref, sh_ref, relu_graph):
        # One lane-wide matmul for both branches: h @ [W_local | W_graph],
        # then split the result lanes (static slices; dout << 128 so both
        # halves share the MXU result pass).
        dout = wcat_ref.shape[1] // 2
        hw = jnp.dot(h, wcat_ref[...], preferred_element_type=jnp.float32)
        hw_l = hw[:, :dout]
        hw_g = hw[:, dout:]
        h_l = jnp.maximum(hw_l * sc_ref[...] + sh_ref[...], 0.0)   # relu(BN(Linear))
        h_g = jnp.dot(g, hw_g, preferred_element_type=jnp.float32)  # G @ (h @ Wg)
        if relu_graph:
            h_g = jnp.maximum(h_g, 0.0)
        return h_l, h_g

    # encoder layers 1 & 2 with sigma-mix of the two branches
    h1_l, h1_g = enc_layer(x, wcat1_ref, sc1_ref, sh1_ref, relu_graph=True)
    h1 = (1.0 - sigma) * h1_g + sigma * h1_l
    h2_l, h2_g = enc_layer(h1, wcat2_ref, sc2_ref, sh2_ref, relu_graph=True)
    h2 = (1.0 - sigma) * h2_g + sigma * h2_l
    # layer 3: last IGAE (graph) layer is linear; local branch keeps relu(BN)
    z_L, z_G = enc_layer(h2, wcat3_ref, sc3_ref, sh3_ref, relu_graph=False)

    # inner-product graph decoder: sigmoid(z_G @ z_G^T)  (contract feature axes,
    # no transpose materialized)
    apred_ref[...] = jax.nn.sigmoid(
        lax.dot_general(z_G, z_G, (((1,), (1,)), ((), ())),
                        preferred_element_type=jnp.float32))

    # Student-t distributions for the two encoder branches
    ct = ct_ref[...]                                        # (zdims, K)
    csq = jnp.sum(ct * ct, axis=0, keepdims=True)           # (1, K), shared
    ql_ref[...] = _student_t(z_L, ct, csq)
    qg_ref[...] = _student_t(z_G, ct, csq)

    # cross-modality fusion + graph smoothing + self-attention readout
    z_i = a_ref[...] * z_L + b_ref[...] * z_G
    # TODO(synk): torch does torch.spmm(Am, z_i.double()) (sparse, float64);
    # implemented as a dense float32 matmul (no f64 MXU / sparse path on TPU).
    z_sp = jnp.dot(am_ref[...], z_i, preferred_element_type=jnp.float32)
    s = lax.dot_general(z_sp, z_sp, (((1,), (1,)), ((), ())),
                        preferred_element_type=jnp.float32)
    s = s - jnp.max(s, axis=1, keepdims=True)
    p = jnp.exp(s)
    p = p * pl.reciprocal(jnp.sum(p, axis=1, keepdims=True), approx=True)
    z_att = jnp.dot(p, z_sp, preferred_element_type=jnp.float32)
    alpha = alpha_ref[0]                                     # SMEM scalar
    z = alpha * z_att + z_sp
    z_ref[...] = z
    q_ref[...] = _student_t(z, ct, csq)

    # ZINB decoder: hidden layer + 3 heads as one lane-concatenated matmul,
    # then per-slice activations and three separate (lane-dense-as-possible)
    # output stores.
    n1 = pi_ref.shape[1]
    h = jnp.maximum(
        jnp.dot(z, wd_ref[...], preferred_element_type=jnp.float32)
        + bd_ref[...], 0.0)
    y = jnp.dot(h, wh_ref[...], preferred_element_type=jnp.float32) + bh_ref[...]
    pi_ref[...] = jax.nn.sigmoid(y[:, :n1])
    disp_ref[...] = jnp.clip(jax.nn.softplus(y[:, n1:2 * n1]), 1e-4, 1e4)
    mean_ref[...] = jnp.exp(jnp.clip(y[:, 2 * n1:], _LOG_MEAN_MIN, _LOG_MEAN_MAX))


# ---------------------------------------------------------------------------
# Parameter setup (deterministic, synthetic) and forward pass.
# ---------------------------------------------------------------------------
def init_params(key, n_node, n1, n2, n3, n4, hidden, n_clusters):
    ks = jax.random.split(key, 24)

    def w(k, shape, scale=0.1):
        return scale * jax.random.normal(k, shape, jnp.float32)

    p = {}
    # Lencoder (MLP) with folded BatchNorm (eval mode) + Gencoder GCN weights.
    # The local and graph weights of each layer are lane-concatenated so the
    # kernel runs one (din, 2*dout) matmul per layer.
    dims = [(n1, n2), (n2, n3), (n3, n4)]
    gkeys = [ks[12], ks[13], ks[14]]
    for li, (din, dout) in enumerate(dims, start=1):
        W = w(ks[li * 4 - 4], (din, dout))
        b = w(ks[li * 4 - 3], (dout,))
        gamma = 1.0 + 0.1 * jax.random.normal(ks[li * 4 - 2], (dout,), jnp.float32)
        beta = 0.1 * jax.random.normal(ks[li * 4 - 1], (dout,), jnp.float32)
        rmean = jnp.zeros((dout,), jnp.float32)
        rvar = jnp.ones((dout,), jnp.float32)
        scale = gamma / jnp.sqrt(rvar + 1e-5)
        Wg = w(gkeys[li - 1], (din, dout))
        p[f"Wcat{li}"] = jnp.concatenate([W, Wg], axis=1)          # [local | graph]
        p[f"bn_scale{li}"] = scale.reshape(1, dout)
        p[f"bn_shift{li}"] = ((b - rmean) * scale + beta).reshape(1, dout)
    # decoder_ZINB: the three heads (pi | disp | mean) lane-concatenated.
    p["Wd"] = w(ks[15], (n4, hidden))
    p["bd"] = w(ks[16], (hidden,)).reshape(1, hidden)
    p["Wheads"] = jnp.concatenate(
        [w(ks[17], (hidden, n1)), w(ks[19], (hidden, n1)), w(ks[21], (hidden, n1))],
        axis=1)
    p["bheads"] = jnp.concatenate(
        [w(ks[18], (n1,)), w(ks[20], (n1,)), w(ks[22], (n1,))], axis=0).reshape(1, 3 * n1)
    # DCRN parameters (matching the torch __init__ constants). a/b are learned
    # full (n_node, zdims) matrices in the torch module; they are DMA'd once
    # since the whole forward is a single pallas_call.
    p["a"] = jnp.full((n_node, n4), 0.5, jnp.float32)
    p["b_par"] = jnp.full((n_node, n4), 0.5, jnp.float32)
    p["alpha"] = jnp.zeros((1,), jnp.float32)                      # SMEM scalar
    p["cluster_centers"] = jax.random.normal(ks[23], (n_clusters, n4), jnp.float32)
    return p


def dcrn_forward(p, X, Am, G, sigma):
    n, n1 = X.shape
    d4 = p["bn_scale3"].shape[1]
    K = p["cluster_centers"].shape[0]
    centers_t = p["cluster_centers"].T           # (zdims, K), tiny constant glue

    vmem = pl.BlockSpec(memory_space=pltpu.MemorySpace.VMEM)
    smem = pl.BlockSpec(memory_space=pltpu.MemorySpace.SMEM)
    in_specs = [vmem] * 20
    in_specs[14] = smem                          # alpha: (1,) scalar in SMEM

    out_shape = (
        jax.ShapeDtypeStruct((n, d4), jnp.float32),   # z
        jax.ShapeDtypeStruct((n, K), jnp.float32),    # Q
        jax.ShapeDtypeStruct((n, K), jnp.float32),    # QL
        jax.ShapeDtypeStruct((n, K), jnp.float32),    # QG
        jax.ShapeDtypeStruct((n, n), jnp.float32),    # A_pred
        jax.ShapeDtypeStruct((n, n1), jnp.float32),   # pi
        jax.ShapeDtypeStruct((n, n1), jnp.float32),   # disp
        jax.ShapeDtypeStruct((n, n1), jnp.float32),   # mean
    )

    return pl.pallas_call(
        functools.partial(_dcrn_kernel, sigma=float(sigma)),
        out_shape=out_shape,
        in_specs=in_specs,
    )(X, G, Am,
      p["Wcat1"], p["bn_scale1"], p["bn_shift1"],
      p["Wcat2"], p["bn_scale2"], p["bn_shift2"],
      p["Wcat3"], p["bn_scale3"], p["bn_shift3"],
      p["a"], p["b_par"], p["alpha"],
      p["Wd"], p["bd"], p["Wheads"], p["bheads"],
      centers_t)


if __name__ == "__main__":
    N, n1, n2, n3, n4 = 64, 32, 32, 32, 16   # n_node, feature dims; zdims == n4
    hidden, n_clusters, sigma = 32, 4, 0.5

    key = jax.random.PRNGKey(0)
    kp, kx, ka = jax.random.split(key, 3)
    params = init_params(kp, N, n1, n2, n3, n4, hidden, n_clusters)

    X = jax.random.normal(kx, (N, n1), jnp.float32)
    raw = (jax.random.uniform(ka, (N, N)) < 0.1).astype(jnp.float32)
    adj = jnp.clip(jnp.maximum(raw, raw.T) + jnp.eye(N, dtype=jnp.float32), 0.0, 1.0)
    dinv = 1.0 / jnp.sqrt(jnp.sum(adj, axis=1))
    A = adj * dinv[:, None] * dinv[None, :]   # normalized adjacency (used as G and Am)

    fwd = jax.jit(lambda p, x, a: dcrn_forward(p, x, a, a, sigma))
    outs = fwd(params, X, A)
    jax.block_until_ready(outs)

    z, Q, QL, QG, A_pred, pi, disp, mean = outs
    assert z.shape == (N, n4) and Q.shape == (N, n_clusters)
    assert QL.shape == (N, n_clusters) and QG.shape == (N, n_clusters)
    assert A_pred.shape == (N, N)
    assert pi.shape == (N, n1) and disp.shape == (N, n1) and mean.shape == (N, n1)
    assert all(bool(jnp.all(jnp.isfinite(o))) for o in outs)
    print("KERNEL_OK")
</pallas_src>

<mosaic_0001>
module attributes {stable_mosaic.version = 11 : i64} {
  func.func @_dcrn_kernel(%arg0: memref<64x32xf32, #tpu.memory_space<vmem>>, %arg1: memref<64x64xf32, #tpu.memory_space<vmem>>, %arg2: memref<64x64xf32, #tpu.memory_space<vmem>>, %arg3: memref<32x64xf32, #tpu.memory_space<vmem>>, %arg4: memref<1x32xf32, #tpu.memory_space<vmem>>, %arg5: memref<1x32xf32, #tpu.memory_space<vmem>>, %arg6: memref<32x64xf32, #tpu.memory_space<vmem>>, %arg7: memref<1x32xf32, #tpu.memory_space<vmem>>, %arg8: memref<1x32xf32, #tpu.memory_space<vmem>>, %arg9: memref<32x32xf32, #tpu.memory_space<vmem>>, %arg10: memref<1x16xf32, #tpu.memory_space<vmem>>, %arg11: memref<1x16xf32, #tpu.memory_space<vmem>>, %arg12: memref<64x16xf32, #tpu.memory_space<vmem>>, %arg13: memref<64x16xf32, #tpu.memory_space<vmem>>, %arg14: memref<1xf32, #tpu.memory_space<smem>>, %arg15: memref<16x32xf32, #tpu.memory_space<vmem>>, %arg16: memref<1x32xf32, #tpu.memory_space<vmem>>, %arg17: memref<32x96xf32, #tpu.memory_space<vmem>>, %arg18: memref<1x96xf32, #tpu.memory_space<vmem>>, %arg19: memref<16x4xf32, #tpu.memory_space<vmem>>, %arg20: memref<64x16xf32, #tpu.memory_space<vmem>>, %arg21: memref<64x4xf32, #tpu.memory_space<vmem>>, %arg22: memref<64x4xf32, #tpu.memory_space<vmem>>, %arg23: memref<64x4xf32, #tpu.memory_space<vmem>>, %arg24: memref<64x64xf32, #tpu.memory_space<vmem>>, %arg25: memref<64x32xf32, #tpu.memory_space<vmem>>, %arg26: memref<64x32xf32, #tpu.memory_space<vmem>>, %arg27: memref<64x32xf32, #tpu.memory_space<vmem>>) attributes {dimension_semantics = [], scalar_prefetch = 0 : i64, scratch_operands = 0 : i64, tpu.core_type = #tpu.core_type<tc>} {
    %c0 = arith.constant 0 : index
    %c0_0 = arith.constant 0 : index
    %0 = vector.load %arg0[%c0, %c0_0] : memref<64x32xf32, #tpu.memory_space<vmem>>, vector<64x32xf32>
    %c0_1 = arith.constant 0 : index
    %c0_2 = arith.constant 0 : index
    %1 = vector.load %arg1[%c0_1, %c0_2] : memref<64x64xf32, #tpu.memory_space<vmem>>, vector<64x64xf32>
    %c0_3 = arith.constant 0 : index
    %c0_4 = arith.constant 0 : index
    %2 = vector.load %arg3[%c0_3, %c0_4] : memref<32x64xf32, #tpu.memory_space<vmem>>, vector<32x64xf32>
    %cst = arith.constant dense<0.000000e+00> : vector<64x64xf32>
    %3 = tpu.matmul %0, %2, %cst {dimension_numbers = #tpu.dot_dimension_numbers<[1], [0], [0], [1], [0, 0, 1, 1], [], []>} : vector<64x32xf32>, vector<32x64xf32>, vector<64x64xf32> -> vector<64x64xf32>
    %4 = vector.extract_strided_slice %3 {offsets = [0, 0], sizes = [64, 32], strides = [1, 1]} : vector<64x64xf32> to vector<64x32xf32>
    %5 = vector.extract_strided_slice %3 {offsets = [0, 32], sizes = [64, 32], strides = [1, 1]} : vector<64x64xf32> to vector<64x32xf32>
    %c0_5 = arith.constant 0 : index
    %c0_6 = arith.constant 0 : index
    %6 = vector.load %arg4[%c0_5, %c0_6] : memref<1x32xf32, #tpu.memory_space<vmem>>, vector<1x32xf32>
    %7 = vector.broadcast %6 : vector<1x32xf32> to vector<64x32xf32>
    %8 = arith.mulf %4, %7 : vector<64x32xf32>
    %c0_7 = arith.constant 0 : index
    %c0_8 = arith.constant 0 : index
    %9 = vector.load %arg5[%c0_7, %c0_8] : memref<1x32xf32, #tpu.memory_space<vmem>>, vector<1x32xf32>
    %10 = vector.broadcast %9 : vector<1x32xf32> to vector<64x32xf32>
    %11 = arith.addf %8, %10 : vector<64x32xf32>
    %cst_9 = arith.constant 0.000000e+00 : f32
    %12 = vector.broadcast %cst_9 : f32 to vector<64x32xf32>
    %13 = arith.maximumf %11, %12 : vector<64x32xf32>
    %cst_10 = arith.constant dense<0.000000e+00> : vector<64x32xf32>
    %14 = tpu.matmul %1, %5, %cst_10 {dimension_numbers = #tpu.dot_dimension_numbers<[1], [0], [0], [1], [0, 0, 1, 1], [], []>} : vector<64x64xf32>, vector<64x32xf32>, vector<64x32xf32> -> vector<64x32xf32>
    %cst_11 = arith.constant 0.000000e+00 : f32
    %15 = vector.broadcast %cst_11 : f32 to vector<64x32xf32>
    %16 = arith.maximumf %14, %15 : vector<64x32xf32>
    %cst_12 = arith.constant 5.000000e-01 : f32
    %17 = vector.broadcast %cst_12 : f32 to vector<64x32xf32>
    %18 = arith.mulf %17, %16 : vector<64x32xf32>
    %cst_13 = arith.constant 5.000000e-01 : f32
    %19 = vector.broadcast %cst_13 : f32 to vector<64x32xf32>
    %20 = arith.mulf %19, %13 : vector<64x32xf32>
    %21 = arith.addf %18, %20 : vector<64x32xf32>
    %c0_14 = arith.constant 0 : index
    %c0_15 = arith.constant 0 : index
    %22 = vector.load %arg6[%c0_14, %c0_15] : memref<32x64xf32, #tpu.memory_space<vmem>>, vector<32x64xf32>
    %cst_16 = arith.constant dense<0.000000e+00> : vector<64x64xf32>
    %23 = tpu.matmul %21, %22, %cst_16 {dimension_numbers = #tpu.dot_dimension_numbers<[1], [0], [0], [1], [0, 0, 1, 1], [], []>} : vector<64x32xf32>, vector<32x64xf32>, vector<64x64xf32> -> vector<64x64xf32>
    %24 = vector.extract_strided_slice %23 {offsets = [0, 0], sizes = [64, 32], strides = [1, 1]} : vector<64x64xf32> to vector<64x32xf32>
    %25 = vector.extract_strided_slice %23 {offsets = [0, 32], sizes = [64, 32], strides = [1, 1]} : vector<64x64xf32> to vector<64x32xf32>
    %c0_17 = arith.constant 0 : index
    %c0_18 = arith.constant 0 : index
    %26 = vector.load %arg7[%c0_17, %c0_18] : memref<1x32xf32, #tpu.memory_space<vmem>>, vector<1x32xf32>
    %27 = vector.broadcast %26 : vector<1x32xf32> to vector<64x32xf32>
    %28 = arith.mulf %24, %27 : vector<64x32xf32>
    %c0_19 = arith.constant 0 : index
    %c0_20 = arith.constant 0 : index
    %29 = vector.load %arg8[%c0_19, %c0_20] : memref<1x32xf32, #tpu.memory_space<vmem>>, vector<1x32xf32>
    %30 = vector.broadcast %29 : vector<1x32xf32> to vector<64x32xf32>
    %31 = arith.addf %28, %30 : vector<64x32xf32>
    %cst_21 = arith.constant 0.000000e+00 : f32
    %32 = vector.broadcast %cst_21 : f32 to vector<64x32xf32>
    %33 = arith.maximumf %31, %32 : vector<64x32xf32>
    %cst_22 = arith.constant dense<0.000000e+00> : vector<64x32xf32>
    %34 = tpu.matmul %1, %25, %cst_22 {dimension_numbers = #tpu.dot_dimension_numbers<[1], [0], [0], [1], [0, 0, 1, 1], [], []>} : vector<64x64xf32>, vector<64x32xf32>, vector<64x32xf32> -> vector<64x32xf32>
    %cst_23 = arith.constant 0.000000e+00 : f32
    %35 = vector.broadcast %cst_23 : f32 to vector<64x32xf32>
    %36 = arith.maximumf %34, %35 : vector<64x32xf32>
    %cst_24 = arith.constant 5.000000e-01 : f32
    %37 = vector.broadcast %cst_24 : f32 to vector<64x32xf32>
    %38 = arith.mulf %37, %36 : vector<64x32xf32>
    %cst_25 = arith.constant 5.000000e-01 : f32
    %39 = vector.broadcast %cst_25 : f32 to vector<64x32xf32>
    %40 = arith.mulf %39, %33 : vector<64x32xf32>
    %41 = arith.addf %38, %40 : vector<64x32xf32>
    %c0_26 = arith.constant 0 : index
    %c0_27 = arith.constant 0 : index
    %42 = vector.load %arg9[%c0_26, %c0_27] : memref<32x32xf32, #tpu.memory_space<vmem>>, vector<32x32xf32>
    %cst_28 = arith.constant dense<0.000000e+00> : vector<64x32xf32>
    %43 = tpu.matmul %41, %42, %cst_28 {dimension_numbers = #tpu.dot_dimension_numbers<[1], [0], [0], [1], [0, 0, 1, 1], [], []>} : vector<64x32xf32>, vector<32x32xf32>, vector<64x32xf32> -> vector<64x32xf32>
    %44 = vector.extract_strided_slice %43 {offsets = [0, 0], sizes = [64, 16], strides = [1, 1]} : vector<64x32xf32> to vector<64x16xf32>
    %45 = vector.extract_strided_slice %43 {offsets = [0, 16], sizes = [64, 16], strides = [1, 1]} : vector<64x32xf32> to vector<64x16xf32>
    %c0_29 = arith.constant 0 : index
    %c0_30 = arith.constant 0 : index
    %46 = vector.load %arg10[%c0_29, %c0_30] : memref<1x16xf32, #tpu.memory_space<vmem>>, vector<1x16xf32>
    %47 = vector.broadcast %46 : vector<1x16xf32> to vector<64x16xf32>
    %48 = arith.mulf %44, %47 : vector<64x16xf32>
    %c0_31 = arith.constant 0 : index
    %c0_32 = arith.constant 0 : index
    %49 = vector.load %arg11[%c0_31, %c0_32] : memref<1x16xf32, #tpu.memory_space<vmem>>, vector<1x16xf32>
    %50 = vector.broadcast %49 : vector<1x16xf32> to vector<64x16xf32>
    %51 = arith.addf %48, %50 : vector<64x16xf32>
    %cst_33 = arith.constant 0.000000e+00 : f32
    %52 = vector.broadcast %cst_33 : f32 to vector<64x16xf32>
    %53 = arith.maximumf %51, %52 : vector<64x16xf32>
    %cst_34 = arith.constant dense<0.000000e+00> : vector<64x16xf32>
    %54 = tpu.matmul %1, %45, %cst_34 {dimension_numbers = #tpu.dot_dimension_numbers<[1], [0], [0], [1], [0, 0, 1, 1], [], []>} : vector<64x64xf32>, vector<64x16xf32>, vector<64x16xf32> -> vector<64x16xf32>
    %cst_35 = arith.constant dense<0.000000e+00> : vector<64x64xf32>
    %55 = tpu.matmul %54, %54, %cst_35 {dimension_numbers = #tpu.dot_dimension_numbers<[1], [1], [0], [0], [0, 0, 1, 0], [], []>} : vector<64x16xf32>, vector<64x16xf32>, vector<64x64xf32> -> vector<64x64xf32>
    %56 = arith.negf %55 : vector<64x64xf32>
    %57 = math.exp %56 : vector<64x64xf32>
    %cst_36 = arith.constant 1.000000e+00 : f32
    %58 = vector.broadcast %cst_36 : f32 to vector<64x64xf32>
    %59 = arith.addf %58, %57 : vector<64x64xf32>
    %60 = arith.divf %58, %59 : vector<64x64xf32>
    %c0_37 = arith.constant 0 : index
    %c0_38 = arith.constant 0 : index
    %61 = vector.load %arg24[%c0_37, %c0_38] : memref<64x64xf32, #tpu.memory_space<vmem>>, vector<64x64xf32>
    tpu.vector_store %arg24[%c0_37, %c0_38], %60 {strides = array<i32>} : memref<64x64xf32, #tpu.memory_space<vmem>>, vector<64x64xf32>,
    %c0_39 = arith.constant 0 : index
    %c0_40 = arith.constant 0 : index
    %62 = vector.load %arg19[%c0_39, %c0_40] : memref<16x4xf32, #tpu.memory_space<vmem>>, vector<16x4xf32>
    %63 = arith.mulf %62, %62 : vector<16x4xf32>
    %cst_41 = arith.constant dense<0.000000e+00> : vector<4xf32>
    %64 = vector.multi_reduction <add>, %63, %cst_41 [0] : vector<16x4xf32> to vector<4xf32>
    %65 = vector.shape_cast %64 : vector<4xf32> to vector<1x4xf32>
    %66 = arith.mulf %53, %53 : vector<64x16xf32>
    %cst_42 = arith.constant dense<0.000000e+00> : vector<64xf32>
    %67 = vector.multi_reduction <add>, %66, %cst_42 [1] : vector<64x16xf32> to vector<64xf32>
    %68 = vector.shape_cast %67 : vector<64xf32> to vector<64x1xf32>
    %69 = vector.broadcast %68 : vector<64x1xf32> to vector<64x4xf32>
    %70 = vector.broadcast %65 : vector<1x4xf32> to vector<64x4xf32>
    %71 = arith.addf %69, %70 : vector<64x4xf32>
    %cst_43 = arith.constant dense<0.000000e+00> : vector<64x4xf32>
    %72 = tpu.matmul %53, %62, %cst_43 {dimension_numbers = #tpu.dot_dimension_numbers<[1], [0], [0], [1], [0, 0, 1, 1], [], []>} : vector<64x16xf32>, vector<16x4xf32>, vector<64x4xf32> -> vector<64x4xf32>
    %cst_44 = arith.constant 2.000000e+00 : f32
    %73 = vector.broadcast %cst_44 : f32 to vector<64x4xf32>
    %74 = arith.mulf %73, %72 : vector<64x4xf32>
    %75 = arith.subf %71, %74 : vector<64x4xf32>
    %cst_45 = arith.constant 0.000000e+00 : f32
    %76 = vector.broadcast %cst_45 : f32 to vector<64x4xf32>
    %77 = arith.maximumf %75, %76 : vector<64x4xf32>
    %cst_46 = arith.constant 1.000000e+00 : f32
    %78 = vector.broadcast %cst_46 : f32 to vector<64x4xf32>
    %79 = arith.addf %78, %77 : vector<64x4xf32>
    %80 = tpu.reciprocal %79 {approx = true} : vector<64x4xf32> -> vector<64x4xf32>
    %cst_47 = arith.constant dense<0.000000e+00> : vector<64xf32>
    %81 = vector.multi_reduction <add>, %80, %cst_47 [1] : vector<64x4xf32> to vector<64xf32>
    %82 = vector.shape_cast %81 : vector<64xf32> to vector<64x1xf32>
    %83 = tpu.reciprocal %82 {approx = true} : vector<64x1xf32> -> vector<64x1xf32>
    %84 = vector.broadcast %83 : vector<64x1xf32> to vector<64x4xf32>
    %85 = arith.mulf %80, %84 : vector<64x4xf32>
    %c0_48 = arith.constant 0 : index
    %c0_49 = arith.constant 0 : index
    %86 = vector.load %arg22[%c0_48, %c0_49] : memref<64x4xf32, #tpu.memory_space<vmem>>, vector<64x4xf32>
    tpu.vector_store %arg22[%c0_48, %c0_49], %85 {strides = array<i32>} : memref<64x4xf32, #tpu.memory_space<vmem>>, vector<64x4xf32>,
    %87 = arith.mulf %54, %54 : vector<64x16xf32>
    %cst_50 = arith.constant dense<0.000000e+00> : vector<64xf32>
    %88 = vector.multi_reduction <add>, %87, %cst_50 [1] : vector<64x16xf32> to vector<64xf32>
    %89 = vector.shape_cast %88 : vector<64xf32> to vector<64x1xf32>
    %90 = vector.broadcast %89 : vector<64x1xf32> to vector<64x4xf32>
    %91 = vector.broadcast %65 : vector<1x4xf32> to vector<64x4xf32>
    %92 = arith.addf %90, %91 : vector<64x4xf32>
    %cst_51 = arith.constant dense<0.000000e+00> : vector<64x4xf32>
    %93 = tpu.matmul %54, %62, %cst_51 {dimension_numbers = #tpu.dot_dimension_numbers<[1], [0], [0], [1], [0, 0, 1, 1], [], []>} : vector<64x16xf32>, vector<16x4xf32>, vector<64x4xf32> -> vector<64x4xf32>
    %cst_52 = arith.constant 2.000000e+00 : f32
    %94 = vector.broadcast %cst_52 : f32 to vector<64x4xf32>
    %95 = arith.mulf %94, %93 : vector<64x4xf32>
    %96 = arith.subf %92, %95 : vector<64x4xf32>
    %cst_53 = arith.constant 0.000000e+00 : f32
    %97 = vector.broadcast %cst_53 : f32 to vector<64x4xf32>
    %98 = arith.maximumf %96, %97 : vector<64x4xf32>
    %cst_54 = arith.constant 1.000000e+00 : f32
    %99 = vector.broadcast %cst_54 : f32 to vector<64x4xf32>
    %100 = arith.addf %99, %98 : vector<64x4xf32>
    %101 = tpu.reciprocal %100 {approx = true} : vector<64x4xf32> -> vector<64x4xf32>
    %cst_55 = arith.constant dense<0.000000e+00> : vector<64xf32>
    %102 = vector.multi_reduction <add>, %101, %cst_55 [1] : vector<64x4xf32> to vector<64xf32>
    %103 = vector.shape_cast %102 : vector<64xf32> to vector<64x1xf32>
    %104 = tpu.reciprocal %103 {approx = true} : vector<64x1xf32> -> vector<64x1xf32>
    %105 = vector.broadcast %104 : vector<64x1xf32> to vector<64x4xf32>
    %106 = arith.mulf %101, %105 : vector<64x4xf32>
    %c0_56 = arith.constant 0 : index
    %c0_57 = arith.constant 0 : index
    %107 = vector.load %arg23[%c0_56, %c0_57] : memref<64x4xf32, #tpu.memory_space<vmem>>, vector<64x4xf32>
    tpu.vector_store %arg23[%c0_56, %c0_57], %106 {strides = array<i32>} : memref<64x4xf32, #tpu.memory_space<vmem>>, vector<64x4xf32>,
    %c0_58 = arith.constant 0 : index
    %c0_59 = arith.constant 0 : index
    %108 = vector.load %arg12[%c0_58, %c0_59] : memref<64x16xf32, #tpu.memory_space<vmem>>, vector<64x16xf32>
    %109 = arith.mulf %108, %53 : vector<64x16xf32>
    %c0_60 = arith.constant 0 : index
    %c0_61 = arith.constant 0 : index
    %110 = vector.load %arg13[%c0_60, %c0_61] : memref<64x16xf32, #tpu.memory_space<vmem>>, vector<64x16xf32>
    %111 = arith.mulf %110, %54 : vector<64x16xf32>
    %112 = arith.addf %109, %111 : vector<64x16xf32>
    %c0_62 = arith.constant 0 : index
    %c0_63 = arith.constant 0 : index
    %113 = vector.load %arg2[%c0_62, %c0_63] : memref<64x64xf32, #tpu.memory_space<vmem>>, vector<64x64xf32>
    %cst_64 = arith.constant dense<0.000000e+00> : vector<64x16xf32>
    %114 = tpu.matmul %113, %112, %cst_64 {dimension_numbers = #tpu.dot_dimension_numbers<[1], [0], [0], [1], [0, 0, 1, 1], [], []>} : vector<64x64xf32>, vector<64x16xf32>, vector<64x16xf32> -> vector<64x16xf32>
    %cst_65 = arith.constant dense<0.000000e+00> : vector<64x64xf32>
    %115 = tpu.matmul %114, %114, %cst_65 {dimension_numbers = #tpu.dot_dimension_numbers<[1], [1], [0], [0], [0, 0, 1, 0], [], []>} : vector<64x16xf32>, vector<64x16xf32>, vector<64x64xf32> -> vector<64x64xf32>
    %cst_66 = arith.constant dense<0xFF800000> : vector<64xf32>
    %116 = vector.multi_reduction <maximumf>, %115, %cst_66 [1] : vector<64x64xf32> to vector<64xf32>
    %117 = vector.shape_cast %116 : vector<64xf32> to vector<64x1xf32>
    %118 = vector.broadcast %117 : vector<64x1xf32> to vector<64x64xf32>
    %119 = arith.subf %115, %118 : vector<64x64xf32>
    %120 = math.exp %119 : vector<64x64xf32>
    %cst_67 = arith.constant dense<0.000000e+00> : vector<64xf32>
    %121 = vector.multi_reduction <add>, %120, %cst_67 [1] : vector<64x64xf32> to vector<64xf32>
    %122 = vector.shape_cast %121 : vector<64xf32> to vector<64x1xf32>
    %123 = tpu.reciprocal %122 {approx = true} : vector<64x1xf32> -> vector<64x1xf32>
    %124 = vector.broadcast %123 : vector<64x1xf32> to vector<64x64xf32>
    %125 = arith.mulf %120, %124 : vector<64x64xf32>
    %cst_68 = arith.constant dense<0.000000e+00> : vector<64x16xf32>
    %126 = tpu.matmul %125, %114, %cst_68 {dimension_numbers = #tpu.dot_dimension_numbers<[1], [0], [0], [1], [0, 0, 1, 1], [], []>} : vector<64x64xf32>, vector<64x16xf32>, vector<64x16xf32> -> vector<64x16xf32>
    %c0_69 = arith.constant 0 : index
    %127 = memref.load %arg14[%c0_69] : memref<1xf32, #tpu.memory_space<smem>>
    %128 = vector.broadcast %127 : f32 to vector<64x16xf32>
    %129 = arith.mulf %128, %126 : vector<64x16xf32>
    %130 = arith.addf %129, %114 : vector<64x16xf32>
    %c0_70 = arith.constant 0 : index
    %c0_71 = arith.constant 0 : index
    %131 = vector.load %arg20[%c0_70, %c0_71] : memref<64x16xf32, #tpu.memory_space<vmem>>, vector<64x16xf32>
    tpu.vector_store %arg20[%c0_70, %c0_71], %130 {strides = array<i32>} : memref<64x16xf32, #tpu.memory_space<vmem>>, vector<64x16xf32>,
    %132 = arith.mulf %130, %130 : vector<64x16xf32>
    %cst_72 = arith.constant dense<0.000000e+00> : vector<64xf32>
    %133 = vector.multi_reduction <add>, %132, %cst_72 [1] : vector<64x16xf32> to vector<64xf32>
    %134 = vector.shape_cast %133 : vector<64xf32> to vector<64x1xf32>
    %135 = vector.broadcast %134 : vector<64x1xf32> to vector<64x4xf32>
    %136 = vector.broadcast %65 : vector<1x4xf32> to vector<64x4xf32>
    %137 = arith.addf %135, %136 : vector<64x4xf32>
    %cst_73 = arith.constant dense<0.000000e+00> : vector<64x4xf32>
    %138 = tpu.matmul %130, %62, %cst_73 {dimension_numbers = #tpu.dot_dimension_numbers<[1], [0], [0], [1], [0, 0, 1, 1], [], []>} : vector<64x16xf32>, vector<16x4xf32>, vector<64x4xf32> -> vector<64x4xf32>
    %cst_74 = arith.constant 2.000000e+00 : f32
    %139 = vector.broadcast %cst_74 : f32 to vector<64x4xf32>
    %140 = arith.mulf %139, %138 : vector<64x4xf32>
    %141 = arith.subf %137, %140 : vector<64x4xf32>
    %cst_75 = arith.constant 0.000000e+00 : f32
    %142 = vector.broadcast %cst_75 : f32 to vector<64x4xf32>
    %143 = arith.maximumf %141, %142 : vector<64x4xf32>
    %cst_76 = arith.constant 1.000000e+00 : f32
    %144 = vector.broadcast %cst_76 : f32 to vector<64x4xf32>
    %145 = arith.addf %144, %143 : vector<64x4xf32>
    %146 = tpu.reciprocal %145 {approx = true} : vector<64x4xf32> -> vector<64x4xf32>
    %cst_77 = arith.constant dense<0.000000e+00> : vector<64xf32>
    %147 = vector.multi_reduction <add>, %146, %cst_77 [1] : vector<64x4xf32> to vector<64xf32>
    %148 = vector.shape_cast %147 : vector<64xf32> to vector<64x1xf32>
    %149 = tpu.reciprocal %148 {approx = true} : vector<64x1xf32> -> vector<64x1xf32>
    %150 = vector.broadcast %149 : vector<64x1xf32> to vector<64x4xf32>
    %151 = arith.mulf %146, %150 : vector<64x4xf32>
    %c0_78 = arith.constant 0 : index
    %c0_79 = arith.constant 0 : index
    %152 = vector.load %arg21[%c0_78, %c0_79] : memref<64x4xf32, #tpu.memory_space<vmem>>, vector<64x4xf32>
    tpu.vector_store %arg21[%c0_78, %c0_79], %151 {strides = array<i32>} : memref<64x4xf32, #tpu.memory_space<vmem>>, vector<64x4xf32>,
    %c0_80 = arith.constant 0 : index
    %c0_81 = arith.constant 0 : index
    %153 = vector.load %arg15[%c0_80, %c0_81] : memref<16x32xf32, #tpu.memory_space<vmem>>, vector<16x32xf32>
    %cst_82 = arith.constant dense<0.000000e+00> : vector<64x32xf32>
    %154 = tpu.matmul %130, %153, %cst_82 {dimension_numbers = #tpu.dot_dimension_numbers<[1], [0], [0], [1], [0, 0, 1, 1], [], []>} : vector<64x16xf32>, vector<16x32xf32>, vector<64x32xf32> -> vector<64x32xf32>
    %c0_83 = arith.constant 0 : index
    %c0_84 = arith.constant 0 : index
    %155 = vector.load %arg16[%c0_83, %c0_84] : memref<1x32xf32, #tpu.memory_space<vmem>>, vector<1x32xf32>
    %156 = vector.broadcast %155 : vector<1x32xf32> to vector<64x32xf32>
    %157 = arith.addf %154, %156 : vector<64x32xf32>
    %cst_85 = arith.constant 0.000000e+00 : f32
    %158 = vector.broadcast %cst_85 : f32 to vector<64x32xf32>
    %159 = arith.maximumf %157, %158 : vector<64x32xf32>
    %c0_86 = arith.constant 0 : index
    %c0_87 = arith.constant 0 : index
    %160 = vector.load %arg17[%c0_86, %c0_87] : memref<32x96xf32, #tpu.memory_space<vmem>>, vector<32x96xf32>
    %cst_88 = arith.constant dense<0.000000e+00> : vector<64x96xf32>
    %161 = tpu.matmul %159, %160, %cst_88 {dimension_numbers = #tpu.dot_dimension_numbers<[1], [0], [0], [1], [0, 0, 1, 1], [], []>} : vector<64x32xf32>, vector<32x96xf32>, vector<64x96xf32> -> vector<64x96xf32>
    %c0_89 = arith.constant 0 : index
    %c0_90 = arith.constant 0 : index
    %162 = vector.load %arg18[%c0_89, %c0_90] : memref<1x96xf32, #tpu.memory_space<vmem>>, vector<1x96xf32>
    %163 = vector.broadcast %162 : vector<1x96xf32> to vector<64x96xf32>
    %164 = arith.addf %161, %163 : vector<64x96xf32>
    %165 = vector.extract_strided_slice %164 {offsets = [0, 0], sizes = [64, 32], strides = [1, 1]} : vector<64x96xf32> to vector<64x32xf32>
    %166 = arith.negf %165 : vector<64x32xf32>
    %167 = math.exp %166 : vector<64x32xf32>
    %cst_91 = arith.constant 1.000000e+00 : f32
    %168 = vector.broadcast %cst_91 : f32 to vector<64x32xf32>
    %169 = arith.addf %168, %167 : vector<64x32xf32>
    %170 = arith.divf %168, %169 : vector<64x32xf32>
    %c0_92 = arith.constant 0 : index
    %c0_93 = arith.constant 0 : index
    %171 = vector.load %arg25[%c0_92, %c0_93] : memref<64x32xf32, #tpu.memory_space<vmem>>, vector<64x32xf32>
    tpu.vector_store %arg25[%c0_92, %c0_93], %170 {strides = array<i32>} : memref<64x32xf32, #tpu.memory_space<vmem>>, vector<64x32xf32>,
    %172 = vector.extract_strided_slice %164 {offsets = [0, 32], sizes = [64, 32], strides = [1, 1]} : vector<64x96xf32> to vector<64x32xf32>
    %cst_94 = arith.constant 0.000000e+00 : f32
    %173 = vector.broadcast %cst_94 : f32 to vector<64x32xf32>
    %174 = arith.maximumf %172, %173 : vector<64x32xf32>
    %175 = vector.broadcast %cst_94 : f32 to vector<64x32xf32>
    %176 = arith.subf %172, %175 : vector<64x32xf32>
    %177 = arith.cmpf one, %176, %176 : vector<64x32xf32>
    %178 = vector.broadcast %cst_94 : f32 to vector<64x32xf32>
    %179 = arith.addf %172, %178 : vector<64x32xf32>
    %180 = math.absf %176 : vector<64x32xf32>
    %cst_95 = arith.constant 0.000000e+00 : f32
    %181 = vector.broadcast %cst_95 : f32 to vector<64x32xf32>
    %182 = arith.subf %181, %180 : vector<64x32xf32>
    %183 = math.exp %182 : vector<64x32xf32>
    %184 = math.log1p %183 : vector<64x32xf32>
    %185 = arith.addf %174, %184 : vector<64x32xf32>
    %186 = arith.select %177, %179, %185 : vector<64x32xi1>, vector<64x32xf32>
    %cst_96 = arith.constant 9.99999974E-5 : f32
    %cst_97 = arith.constant 1.000000e+04 : f32
    %187 = vector.broadcast %cst_96 : f32 to vector<64x32xf32>
    %188 = arith.maximumf %187, %186 : vector<64x32xf32>
    %189 = vector.broadcast %cst_97 : f32 to vector<64x32xf32>
    %190 = arith.minimumf %189, %188 : vector<64x32xf32>
    %c0_98 = arith.constant 0 : index
    %c0_99 = arith.constant 0 : index
    %191 = vector.load %arg26[%c0_98, %c0_99] : memref<64x32xf32, #tpu.memory_space<vmem>>, vector<64x32xf32>
    tpu.vector_store %arg26[%c0_98, %c0_99], %190 {strides = array<i32>} : memref<64x32xf32, #tpu.memory_space<vmem>>, vector<64x32xf32>,
    %192 = vector.extract_strided_slice %164 {offsets = [0, 64], sizes = [64, 32], strides = [1, 1]} : vector<64x96xf32> to vector<64x32xf32>
    %cst_100 = arith.constant -11.5129251 : f32
    %cst_101 = arith.constant 13.8155107 : f32
    %193 = vector.broadcast %cst_100 : f32 to vector<64x32xf32>
    %194 = arith.maximumf %193, %192 : vector<64x32xf32>
    %195 = vector.broadcast %cst_101 : f32 to vector<64x32xf32>
    %196 = arith.minimumf %195, %194 : vector<64x32xf32>
    %197 = math.exp %196 : vector<64x32xf32>
    %c0_102 = arith.constant 0 : index
    %c0_103 = arith.constant 0 : index
    %198 = vector.load %arg27[%c0_102, %c0_103] : memref<64x32xf32, #tpu.memory_space<vmem>>, vector<64x32xf32>
    tpu.vector_store %arg27[%c0_102, %c0_103], %197 {strides = array<i32>} : memref<64x32xf32, #tpu.memory_space<vmem>>, vector<64x32xf32>,
    return
  }
}

</mosaic_0001>

<llo_original>
// kernel: _lambda_.1
$region0: #{_lambda_.1}
  #allocation0 [shape = 'u32[]', space=smem, size = 0x4, offset = 0x4, fixed_abs, tag = 'smem constant byte address 0x4 - core index']
  #allocation1 [shape = 'u32[144,128]{1,0:T(1,128)}', space=vmem, size = 0x12000, scoped, tag = 'internal scratch']
  #allocation2 [shape = 'f32[1]{0:T(128)S(6)}', space=smem, size = 0x200, scoped, tag = 'scoped memory for _lambda_.1']
  %s0 = inlined_call_operand.vmem [shape: f32[64,32], index: 0, kind: input, shape index: {}]
  %s1 = inlined_call_operand.vmem [shape: f32[64,64], index: 1, kind: input, shape index: {}, may-alias: {1,2}]
  %s2 = inlined_call_operand.vmem [shape: f32[64,64], index: 2, kind: input, shape index: {}, may-alias: {1,2}]
  %s3 = inlined_call_operand.vmem [shape: f32[32,64], index: 3, kind: input, shape index: {}]
  %s4 = inlined_call_operand.vmem [shape: f32[1,32], index: 4, kind: input, shape index: {}]
  %s5 = inlined_call_operand.vmem [shape: f32[1,32], index: 5, kind: input, shape index: {}]
  %s6 = inlined_call_operand.vmem [shape: f32[32,64], index: 6, kind: input, shape index: {}]
  %s7 = inlined_call_operand.vmem [shape: f32[1,32], index: 7, kind: input, shape index: {}]
  %s8 = inlined_call_operand.vmem [shape: f32[1,32], index: 8, kind: input, shape index: {}]
  %s9 = inlined_call_operand.vmem [shape: f32[32,32], index: 9, kind: input, shape index: {}]
  %s10 = inlined_call_operand.vmem [shape: f32[1,16], index: 10, kind: input, shape index: {}]
  %s11 = inlined_call_operand.vmem [shape: f32[1,16], index: 11, kind: input, shape index: {}]
  %s12 = inlined_call_operand.vmem [shape: f32[64,16], index: 12, kind: input, shape index: {}]
  %s13 = inlined_call_operand.vmem [shape: f32[64,16], index: 13, kind: input, shape index: {}]
  %s14 = inlined_call_operand.<no memory space> [shape: f32[1], index: 14, kind: input, shape index: {}]
  %s15 = inlined_call_operand.vmem [shape: f32[16,32], index: 15, kind: input, shape index: {}]
  %s16 = inlined_call_operand.vmem [shape: f32[1,32], index: 16, kind: input, shape index: {}]
  %s17 = inlined_call_operand.vmem [shape: f32[32,96], index: 17, kind: input, shape index: {}]
  %s18 = inlined_call_operand.vmem [shape: f32[1,96], index: 18, kind: input, shape index: {}]
  %s19 = inlined_call_operand.vmem [shape: f32[16,4], index: 19, kind: input, shape index: {}]
  %s20 = inlined_call_operand.vmem [shape: f32[64,16], index: 20, kind: output, shape index: {0}]
  %s21 = inlined_call_operand.vmem [shape: f32[64,4], index: 21, kind: output, shape index: {1}]
  %s22 = inlined_call_operand.vmem [shape: f32[64,4], index: 22, kind: output, shape index: {2}]
  %s23 = inlined_call_operand.vmem [shape: f32[64,4], index: 23, kind: output, shape index: {3}]
  %s24 = inlined_call_operand.hbm [shape: f32[64,64], index: 24, kind: output, shape index: {4}]
  %s25 = inlined_call_operand.vmem [shape: f32[64,32], index: 25, kind: output, shape index: {5}]
  %s26 = inlined_call_operand.vmem [shape: f32[64,32], index: 26, kind: output, shape index: {6}]
  %s27 = inlined_call_operand.vmem [shape: f32[64,32], index: 27, kind: output, shape index: {7}]
  %28 = xla_tuple %s20, %s21, %s22, %s23, %s24, %s25, %s26, %s27
  %s29 = sld [smem:[#allocation0]]
  $region146: #{_lambda_.1} parent=0
    _
  %s31 = ssub.s32 1, %s29
  %s32 = scalar_select 0, %s31, %s29
  %33 = sst [smem:[#allocation2]] %s14
  $region1: #{_lambda_.1} parent=0
    #allocation3 [shape = 'u8[32768]{0}', space=vmem, size = 0x8000, scoped, tag = 'output window, operand 4, single buffered']
    #allocation4 [shape = 's32[1]{0}', space=sflag, size = 0x4, scoped, tag = 'scoped memory for _lambda_.1']
    %34 = vsyncpa [#allocation4], 0
    // Predicated region
    $region2: #{_lambda_.1} parent=1 // pred_check
      _
    $region3: #{_lambda_.1} parent=1 // pred_check_branch
      %36 = sbr.rel (0) target = $region5
    $region4: #{_lambda_.1} parent=1 // pred_region
      _
    $region5: #{_lambda_.1} parent=1 // pred_fallthru
      _
    // Predicated region
    $region6: #{_lambda_.1} parent=1 // pred_check
      _
    $region7: #{_lambda_.1} parent=1 // pred_check_branch
      %38 = sbr.rel (0) target = $region9
    $region8: #{_lambda_.1} parent=1 // pred_region
      _
    $region9: #{_lambda_.1} parent=1 // pred_fallthru
      _
    // Predicated region
    $region10: #{_lambda_.1} parent=1 // pred_check
      _
    $region11: #{_lambda_.1} parent=1 // pred_check_branch
      %40 = sbr.rel (0) target = $region13
    $region12: #{_lambda_.1} parent=1 // pred_region
      _
    $region13: #{_lambda_.1} parent=1 // pred_fallthru
      _
    // Predicated region
    $region14: #{_lambda_.1} parent=1 // pred_check
      _
    $region15: #{_lambda_.1} parent=1 // pred_check_branch
      %42 = sbr.rel (0) target = $region17
    $region16: #{_lambda_.1} parent=1 // pred_region
      _
    $region17: #{_lambda_.1} parent=1 // pred_fallthru
      _
    // Predicated region
    $region18: #{_lambda_.1} parent=1 // pred_check
      _
    $region19: #{_lambda_.1} parent=1 // pred_check_branch
      %44 = sbr.rel (0) target = $region21
    $region20: #{_lambda_.1} parent=1 // pred_region
      _
    $region21: #{_lambda_.1} parent=1 // pred_fallthru
      _
    // Predicated region
    $region22: #{_lambda_.1} parent=1 // pred_check
      _
    $region23: #{_lambda_.1} parent=1 // pred_check_branch
      %46 = sbr.rel (0) target = $region25
    $region24: #{_lambda_.1} parent=1 // pred_region
      _
    $region25: #{_lambda_.1} parent=1 // pred_fallthru
      _
    // Predicated region
    $region26: #{_lambda_.1} parent=1 // pred_check
      _
    $region27: #{_lambda_.1} parent=1 // pred_check_branch
      %48 = sbr.rel (0) target = $region29
    $region28: #{_lambda_.1} parent=1 // pred_region
      _
    $region29: #{_lambda_.1} parent=1 // pred_fallthru
      _
    // Predicated region
    $region30: #{_lambda_.1} parent=1 // pred_check
      _
    $region31: #{_lambda_.1} parent=1 // pred_check_branch
      %50 = sbr.rel (0) target = $region33
    $region32: #{_lambda_.1} parent=1 // pred_region
      _
    $region33: #{_lambda_.1} parent=1 // pred_fallthru
      _
    // Predicated region
    $region34: #{_lambda_.1} parent=1 // pred_check
      _
    $region35: #{_lambda_.1} parent=1 // pred_check_branch
      %52 = sbr.rel (0) target = $region37
    $region36: #{_lambda_.1} parent=1 // pred_region
      _
    $region37: #{_lambda_.1} parent=1 // pred_fallthru
      _
    // Predicated region
    $region38: #{_lambda_.1} parent=1 // pred_check
      _
    $region39: #{_lambda_.1} parent=1 // pred_check_branch
      %54 = sbr.rel (0) target = $region41
    $region40: #{_lambda_.1} parent=1 // pred_region
      _
    $region41: #{_lambda_.1} parent=1 // pred_fallthru
      _
    // Predicated region
    $region42: #{_lambda_.1} parent=1 // pred_check
      _
    $region43: #{_lambda_.1} parent=1 // pred_check_branch
      %56 = sbr.rel (0) target = $region45
    $region44: #{_lambda_.1} parent=1 // pred_region
      _
    $region45: #{_lambda_.1} parent=1 // pred_fallthru
      _
    // Predicated region
    $region46: #{_lambda_.1} parent=1 // pred_check
      _
    $region47: #{_lambda_.1} parent=1 // pred_check_branch
      %58 = sbr.rel (0) target = $region49
    $region48: #{_lambda_.1} parent=1 // pred_region
      _
    $region49: #{_lambda_.1} parent=1 // pred_fallthru
      _
    // Predicated region
    $region50: #{_lambda_.1} parent=1 // pred_check
      _
    $region51: #{_lambda_.1} parent=1 // pred_check_branch
      %60 = sbr.rel (0) target = $region53
    $region52: #{_lambda_.1} parent=1 // pred_region
      _
    $region53: #{_lambda_.1} parent=1 // pred_fallthru
      _
    // Predicated region
    $region54: #{_lambda_.1} parent=1 // pred_check
      _
    $region55: #{_lambda_.1} parent=1 // pred_check_branch
      %62 = sbr.rel (0) target = $region57
    $region56: #{_lambda_.1} parent=1 // pred_region
      _
    $region57: #{_lambda_.1} parent=1 // pred_fallthru
      _
    // Predicated region
    $region58: #{_lambda_.1} parent=1 // pred_check
      _
    $region59: #{_lambda_.1} parent=1 // pred_check_branch
      %64 = sbr.rel (0) target = $region61
    $region60: #{_lambda_.1} parent=1 // pred_region
      _
    $region61: #{_lambda_.1} parent=1 // pred_fallthru
      _
    // Predicated region
    $region62: #{_lambda_.1} parent=1 // pred_check
      _
    $region63: #{_lambda_.1} parent=1 // pred_check_branch
      %66 = sbr.rel (0) target = $region65
    $region64: #{_lambda_.1} parent=1 // pred_region
      _
    $region65: #{_lambda_.1} parent=1 // pred_fallthru
      _
    // Predicated region
    $region66: #{_lambda_.1} parent=1 // pred_check
      _
    $region67: #{_lambda_.1} parent=1 // pred_check_branch
      %68 = sbr.rel (0) target = $region69
    $region68: #{_lambda_.1} parent=1 // pred_region
      _
    $region69: #{_lambda_.1} parent=1 // pred_fallthru
      _
    // Predicated region
    $region70: #{_lambda_.1} parent=1 // pred_check
      _
    $region71: #{_lambda_.1} parent=1 // pred_check_branch
      %70 = sbr.rel (0) target = $region73
    $region72: #{_lambda_.1} parent=1 // pred_region
      _
    $region73: #{_lambda_.1} parent=1 // pred_fallthru
      _
    // Predicated region
    $region74: #{_lambda_.1} parent=1 // pred_check
      _
    $region75: #{_lambda_.1} parent=1 // pred_check_branch
      %72 = sbr.rel (0) target = $region77
    $region76: #{_lambda_.1} parent=1 // pred_region
      _
    $region77: #{_lambda_.1} parent=1 // pred_fallthru
      _
    // Predicated region
    $region78: #{_lambda_.1} parent=1 // pred_check
      _
    $region79: #{_lambda_.1} parent=1 // pred_check_branch
      %74 = sbr.rel (0) target = $region81
    $region80: #{_lambda_.1} parent=1 // pred_region
      _
    $region81: #{_lambda_.1} parent=1 // pred_fallthru
      _
    %v75 = vld [vmem:[%s0] sm:$0xff]
    %v76 = vld [vmem:[%s0 + $0x8] sm:$0xff]
    %v77 = vld [vmem:[%s0 + $0x10] sm:$0xff]
    %v78 = vld [vmem:[%s0 + $0x18] sm:$0xff]
    %v79 = vld [vmem:[%s0 + $0x20] sm:$0xff]
    %v80 = vld [vmem:[%s0 + $0x28] sm:$0xff]
    %v81 = vld [vmem:[%s0 + $0x30] sm:$0xff]
    %v82 = vld [vmem:[%s0 + $0x38] sm:$0xff]
    %v83 = vld [vmem:[%s1] sm:$0xff]
    %v84 = vld [vmem:[%s1 + $0x8] sm:$0xff]
    %v85 = vld [vmem:[%s1 + $0x10] sm:$0xff]
    %v86 = vld [vmem:[%s1 + $0x18] sm:$0xff]
    %v87 = vld [vmem:[%s1 + $0x20] sm:$0xff]
    %v88 = vld [vmem:[%s1 + $0x28] sm:$0xff]
    %v89 = vld [vmem:[%s1 + $0x30] sm:$0xff]
    %v90 = vld [vmem:[%s1 + $0x38] sm:$0xff]
    %v91 = vld [vmem:[%s3] sm:$0xff]
    %v92 = vld [vmem:[%s3 + $0x8] sm:$0xff]
    %v93 = vld [vmem:[%s3 + $0x10] sm:$0xff]
    %v94 = vld [vmem:[%s3 + $0x18] sm:$0xff]
    %vm95 = vcmask 261120
    %v97 = vsel %vm95, %v75, 0
    %v100 = vsel %vm95, %v76, 0
    %v103 = vsel %vm95, %v77, 0
    %v106 = vsel %vm95, %v78, 0
    %v109 = vsel %vm95, %v79, 0
    %v112 = vsel %vm95, %v80, 0
    %v115 = vsel %vm95, %v81, 0
    %v118 = vsel %vm95, %v82, 0
    %120 = vmatprep.subr.mxu0 0.0
    %121 = vmatpush1.msra.mxu0 %v91
    %122 = vmatprep.subr.mxu0 0.0
    %123 = vmatpush1.msra.mxu0 %v92
    %124 = vmatprep.subr.mxu0 0.0
    %125 = vmatpush1.msra.mxu0 %v93
    %126 = vmatprep.subr.mxu0 0.0
    %127 = vmatpush1.msra.mxu0 %v94
    %128 = vmatprep.subr.mxu0 0.0
    %129 = vmatpush1.msra.mxu0 0.0
    %130 = vmatprep.subr.mxu0 0.0
    %131 = vmatpush1.msra.mxu0 0.0
    %132 = vmatprep.subr.mxu0 0.0
    %133 = vmatpush1.msra.mxu0 0.0
    %134 = vmatprep.subr.mxu0 0.0
    %135 = vmatpush1.msra.mxu0 0.0
    %136 = vmatprep.subr.mxu0 0.0
    %137 = vmatpush1.msra.mxu0 0.0
    %138 = vmatprep.subr.mxu0 0.0
    %139 = vmatpush1.msra.mxu0 0.0
    %140 = vmatprep.subr.mxu0 0.0
    %141 = vmatpush1.msra.mxu0 0.0
    %142 = vmatprep.subr.mxu0 0.0
    %143 = vmatpush1.msra.mxu0 0.0
    %144 = vmatprep.subr.mxu0 0.0
    %145 = vmatpush1.msra.mxu0 0.0
    %146 = vmatprep.subr.mxu0 0.0
    %147 = vmatpush1.msra.mxu0 0.0
    %148 = vmatprep.subr.mxu0 0.0
    %149 = vmatpush1.msra.mxu0 0.0
    %150 = vmatprep.subr.mxu0 0.0
    %151 = vmatpush1.msra.mxu0 0.0
    %152 = vmatprep.subr.mxu0 0.0
    %153 = vmatpush1.msra.mxu0 0.0
    %154 = vmatprep.subr.mxu0 0.0
    %155 = vmatpush1.msra.mxu0 0.0
    %156 = vmatprep.subr.mxu0 0.0
    %157 = vmatpush1.msra.mxu0 0.0
    %158 = vmatprep.subr.mxu0 0.0
    %159 = vmatpush1.msra.mxu0 0.0
    %160 = vmatprep.subr.mxu0 0.0
    %161 = vmatpush1.msra.mxu0 0.0
    %162 = vmatprep.subr.mxu0 0.0
    %163 = vmatpush1.msra.mxu0 0.0
    %164 = vmatprep.subr.mxu0 0.0
    %165 = vmatpush1.msra.mxu0 0.0
    %166 = vmatprep.subr.mxu0 0.0
    %167 = vmatpush1.msra.mxu0 0.0
    %168 = vmatprep.subr.mxu0 0.0
    %169 = vmatpush1.msra.mxu0 0.0
    %170 = vmatprep.subr.mxu0 0.0
    %171 = vmatpush1.msra.mxu0 0.0
    %172 = vmatprep.subr.mxu0 0.0
    %173 = vmatpush1.msra.mxu0 0.0
    %174 = vmatprep.subr.mxu0 0.0
    %175 = vmatpush1.msra.mxu0 0.0
    %176 = vmatprep.subr.mxu0 0.0
    %177 = vmatpush1.msra.mxu0 0.0
    %178 = vmatprep.subr.mxu0 0.0
    %179 = vmatpush1.msra.mxu0 0.0
    %180 = vmatprep.subr.mxu0 0.0
    %181 = vmatpush1.msra.mxu0 0.0
    %182 = vmatprep.subr.mxu0 0.0
    %183 = vmatpush1.msra.mxu0 0.0
    %184 = vmatprep.mubr.f32.mxu0 0.0
    %185 = vmatmul.mubr.f32.gmra.mrb[0].mxu0 %v97
    %v186 = vpop.f32.mrb[0].mxu0
    %v187 = vadd.f32 0.0, %v186
    %v188 = vpop.f32.mrb[0].mxu0
    %189 = vmatprep.mubr.f32.mxu0 0.0
    %190 = vmatmul.mubr.f32.gmra.mrb[0].mxu0 %v100
    %v191 = vpop.f32.mrb[0].mxu0
    %v192 = vadd.f32 0.0, %v191
    %v193 = vpop.f32.mrb[0].mxu0
    %194 = vmatprep.mubr.f32.mxu0 0.0
    %195 = vmatmul.mubr.f32.gmra.mrb[0].mxu0 %v103
    %v196 = vpop.f32.mrb[0].mxu0
    %v197 = vadd.f32 0.0, %v196
    %v198 = vpop.f32.mrb[0].mxu0
    %199 = vmatprep.mubr.f32.mxu0 0.0
    %200 = vmatmul.mubr.f32.gmra.mrb[0].mxu0 %v106
    %v201 = vpop.f32.mrb[0].mxu0
    %v202 = vadd.f32 0.0, %v201
    %v203 = vpop.f32.mrb[0].mxu0
    %204 = vmatprep.mubr.f32.mxu0 0.0
    %205 = vmatmul.mubr.f32.gmra.mrb[0].mxu0 %v109
    %v206 = vpop.f32.mrb[0].mxu0
    %v207 = vadd.f32 0.0, %v206
    %v208 = vpop.f32.mrb[0].mxu0
    %209 = vmatprep.mubr.f32.mxu0 0.0
    %210 = vmatmul.mubr.f32.gmra.mrb[0].mxu0 %v112
    %v211 = vpop.f32.mrb[0].mxu0
    %v212 = vadd.f32 0.0, %v211
    %v213 = vpop.f32.mrb[0].mxu0
    %214 = vmatprep.mubr.f32.mxu0 0.0
    %215 = vmatmul.mubr.f32.gmra.mrb[0].mxu0 %v115
    %v216 = vpop.f32.mrb[0].mxu0
    %v217 = vadd.f32 0.0, %v216
    %v218 = vpop.f32.mrb[0].mxu0
    %219 = vmatprep.mubr.f32.mxu0 0.0
    %220 = vmatmul.mubr.f32.gmra.mrb[0].mxu0 %v118
    %v221 = vpop.f32.mrb[0].mxu0
    %v222 = vadd.f32 0.0, %v221
    %v223 = vpop.f32.mrb[0].mxu0
    %224 = vdwg.mxu0
    %v225 = vld [vmem:[%s4] sm:$0x1]
    %v227 = vlaneseq
    %v228 = vshrl.u32 %v227, 7
    %v229 = vsub.s32 0, %v228
    %v230 = vrot.slane %v225, %v229
    %v232 = vmul.f32 %v187, %v230
    %v233 = vmul.f32 %v192, %v230
    %v234 = vmul.f32 %v197, %v230
    %v235 = vmul.f32 %v202, %v230
    %v236 = vmul.f32 %v207, %v230
    %v237 = vmul.f32 %v212, %v230
    %v238 = vmul.f32 %v217, %v230
    %v239 = vmul.f32 %v222, %v230
    %v240 = vld [vmem:[%s5] sm:$0x1]
    %v242 = vlaneseq
    %v243 = vshrl.u32 %v242, 7
    %v244 = vsub.s32 0, %v243
    %v245 = vrot.slane %v240, %v244
    %v247 = vadd.f32 %v232, %v245
    %v248 = vadd.f32 %v233, %v245
    %v249 = vadd.f32 %v234, %v245
    %v250 = vadd.f32 %v235, %v245
    %v251 = vadd.f32 %v236, %v245
    %v252 = vadd.f32 %v237, %v245
    %v253 = vadd.f32 %v238, %v245
    %v254 = vadd.f32 %v239, %v245
    %v255 = vmax.f32 %v247, 0.0
    %v256 = vmax.f32 %v248, 0.0
    %v257 = vmax.f32 %v249, 0.0
    %v258 = vmax.f32 %v250, 0.0
    %v259 = vmax.f32 %v251, 0.0
    %v260 = vmax.f32 %v252, 0.0
    %v261 = vmax.f32 %v253, 0.0
    %v262 = vmax.f32 %v254, 0.0
    %271 = vrot.lane.b32.xlu0 %v187, 96
    %v272 = vpop.permute.xlu0 %271
    %273 = vrot.lane.b32.xlu0 %v192, 96
    %v274 = vpop.permute.xlu0 %273
    %275 = vrot.lane.b32.xlu0 %v197, 96
    %v276 = vpop.permute.xlu0 %275
    %277 = vrot.lane.b32.xlu0 %v202, 96
    %v278 = vpop.permute.xlu0 %277
    %279 = vrot.lane.b32.xlu0 %v207, 96
    %v280 = vpop.permute.xlu0 %279
    %281 = vrot.lane.b32.xlu0 %v212, 96
    %v282 = vpop.permute.xlu0 %281
    %283 = vrot.lane.b32.xlu0 %v217, 96
    %v284 = vpop.permute.xlu0 %283
    %285 = vrot.lane.b32.xlu0 %v222, 96
    %v286 = vpop.permute.xlu0 %285
    %vm295 = vcmask 523264
    %v297 = vsel %vm295, %v83, 0
    %v300 = vsel %vm295, %v84, 0
    %v303 = vsel %vm295, %v85, 0
    %v306 = vsel %vm295, %v86, 0
    %v309 = vsel %vm295, %v87, 0
    %v312 = vsel %vm295, %v88, 0
    %v315 = vsel %vm295, %v89, 0
    %v318 = vsel %vm295, %v90, 0
    %320 = vmatprep.subr.mxu0 0.0
    %321 = vmatpush1.msra.mxu0 %v272
    %322 = vmatprep.subr.mxu0 0.0
    %323 = vmatpush1.msra.mxu0 %v274
    %324 = vmatprep.subr.mxu0 0.0
    %325 = vmatpush1.msra.mxu0 %v276
    %326 = vmatprep.subr.mxu0 0.0
    %327 = vmatpush1.msra.mxu0 %v278
    %328 = vmatprep.subr.mxu0 0.0
    %329 = vmatpush1.msra.mxu0 %v280
    %330 = vmatprep.subr.mxu0 0.0
    %331 = vmatpush1.msra.mxu0 %v282
    %332 = vmatprep.subr.mxu0 0.0
    %333 = vmatpush1.msra.mxu0 %v284
    %334 = vmatprep.subr.mxu0 0.0
    %335 = vmatpush1.msra.mxu0 %v286
    %336 = vmatprep.subr.mxu0 0.0
    %337 = vmatpush1.msra.mxu0 0.0
    %338 = vmatprep.subr.mxu0 0.0
    %339 = vmatpush1.msra.mxu0 0.0
    %340 = vmatprep.subr.mxu0 0.0
    %341 = vmatpush1.msra.mxu0 0.0
    %342 = vmatprep.subr.mxu0 0.0
    %343 = vmatpush1.msra.mxu0 0.0
    %344 = vmatprep.subr.mxu0 0.0
    %345 = vmatpush1.msra.mxu0 0.0
    %346 = vmatprep.subr.mxu0 0.0
    %347 = vmatpush1.msra.mxu0 0.0
    %348 = vmatprep.subr.mxu0 0.0
    %349 = vmatpush1.msra.mxu0 0.0
    %350 = vmatprep.subr.mxu0 0.0
    %351 = vmatpush1.msra.mxu0 0.0
    %352 = vmatprep.subr.mxu0 0.0
    %353 = vmatpush1.msra.mxu0 0.0
    %354 = vmatprep.subr.mxu0 0.0
    %355 = vmatpush1.msra.mxu0 0.0
    %356 = vmatprep.subr.mxu0 0.0
    %357 = vmatpush1.msra.mxu0 0.0
    %358 = vmatprep.subr.mxu0 0.0
    %359 = vmatpush1.msra.mxu0 0.0
    %360 = vmatprep.subr.mxu0 0.0
    %361 = vmatpush1.msra.mxu0 0.0
    %362 = vmatprep.subr.mxu0 0.0
    %363 = vmatpush1.msra.mxu0 0.0
    %364 = vmatprep.subr.mxu0 0.0
    %365 = vmatpush1.msra.mxu0 0.0
    %366 = vmatprep.subr.mxu0 0.0
    %367 = vmatpush1.msra.mxu0 0.0
    %368 = vmatprep.subr.mxu0 0.0
    %369 = vmatpush1.msra.mxu0 0.0
    %370 = vmatprep.subr.mxu0 0.0
    %371 = vmatpush1.msra.mxu0 0.0
    %372 = vmatprep.subr.mxu0 0.0
    %373 = vmatpush1.msra.mxu0 0.0
    %374 = vmatprep.subr.mxu0 0.0
    %375 = vmatpush1.msra.mxu0 0.0
    %376 = vmatprep.subr.mxu0 0.0
    %377 = vmatpush1.msra.mxu0 0.0
    %378 = vmatprep.subr.mxu0 0.0
    %379 = vmatpush1.msra.mxu0 0.0
    %380 = vmatprep.subr.mxu0 0.0
    %381 = vmatpush1.msra.mxu0 0.0
    %382 = vmatprep.subr.mxu0 0.0
    %383 = vmatpush1.msra.mxu0 0.0
    %384 = vmatprep.mubr.f32.mxu0 0.0
    %385 = vmatmul.mubr.f32.gmra.mrb[0].mxu0 %v297
    %v386 = vpop.f32.mrb[0].mxu0
    %v387 = vadd.f32 0.0, %v386
    %v388 = vpop.f32.mrb[0].mxu0
    %389 = vmatprep.mubr.f32.mxu0 0.0
    %390 = vmatmul.mubr.f32.gmra.mrb[0].mxu0 %v300
    %v391 = vpop.f32.mrb[0].mxu0
    %v392 = vadd.f32 0.0, %v391
    %v393 = vpop.f32.mrb[0].mxu0
    %394 = vmatprep.mubr.f32.mxu0 0.0
    %395 = vmatmul.mubr.f32.gmra.mrb[0].mxu0 %v303
    %v396 = vpop.f32.mrb[0].mxu0
    %v397 = vadd.f32 0.0, %v396
    %v398 = vpop.f32.mrb[0].mxu0
    %399 = vmatprep.mubr.f32.mxu0 0.0
    %400 = vmatmul.mubr.f32.gmra.mrb[0].mxu0 %v306
    %v401 = vpop.f32.mrb[0].mxu0
    %v402 = vadd.f32 0.0, %v401
    %v403 = vpop.f32.mrb[0].mxu0
    %404 = vmatprep.mubr.f32.mxu0 0.0
    %405 = vmatmul.mubr.f32.gmra.mrb[0].mxu0 %v309
    %v406 = vpop.f32.mrb[0].mxu0
    %v407 = vadd.f32 0.0, %v406
    %v408 = vpop.f32.mrb[0].mxu0
    %409 = vmatprep.mubr.f32.mxu0 0.0
    %410 = vmatmul.mubr.f32.gmra.mrb[0].mxu0 %v312
    %v411 = vpop.f32.mrb[0].mxu0
    %v412 = vadd.f32 0.0, %v411
    %v413 = vpop.f32.mrb[0].mxu0
    %414 = vmatprep.mubr.f32.mxu0 0.0
    %415 = vmatmul.mubr.f32.gmra.mrb[0].mxu0 %v315
    %v416 = vpop.f32.mrb[0].mxu0
    %v417 = vadd.f32 0.0, %v416
    %v418 = vpop.f32.mrb[0].mxu0
    %419 = vmatprep.mubr.f32.mxu0 0.0
    %420 = vmatmul.mubr.f32.gmra.mrb[0].mxu0 %v318
    %v421 = vpop.f32.mrb[0].mxu0
    %v422 = vadd.f32 0.0, %v421
    %v423 = vpop.f32.mrb[0].mxu0
    %424 = vdwg.mxu0
    %v425 = vmax.f32 %v387, 0.0
    %v426 = vmax.f32 %v392, 0.0
    %v427 = vmax.f32 %v397, 0.0
    %v428 = vmax.f32 %v402, 0.0
    %v429 = vmax.f32 %v407, 0.0
    %v430 = vmax.f32 %v412, 0.0
    %v431 = vmax.f32 %v417, 0.0
    %v432 = vmax.f32 %v422, 0.0
    %v433 = vmul.f32 %v425, 0.5
    %v434 = vmul.f32 %v426, 0.5
    %v435 = vmul.f32 %v427, 0.5
    %v436 = vmul.f32 %v428, 0.5
    %v437 = vmul.f32 %v429, 0.5
    %v438 = vmul.f32 %v430, 0.5
    %v439 = vmul.f32 %v431, 0.5
    %v440 = vmul.f32 %v432, 0.5
    %v441 = vmul.f32 %v255, 0.5
    %v442 = vmul.f32 %v256, 0.5
    %v443 = vmul.f32 %v257, 0.5
    %v444 = vmul.f32 %v258, 0.5
    %v445 = vmul.f32 %v259, 0.5
    %v446 = vmul.f32 %v260, 0.5
    %v447 = vmul.f32 %v261, 0.5
    %v448 = vmul.f32 %v262, 0.5
    %v449 = vadd.f32 %v433, %v441
    %v450 = vadd.f32 %v434, %v442
    %v451 = vadd.f32 %v435, %v443
    %v452 = vadd.f32 %v436, %v444
    %v453 = vadd.f32 %v437, %v445
    %v454 = vadd.f32 %v438, %v446
    %v455 = vadd.f32 %v439, %v447
    %v456 = vadd.f32 %v440, %v448
    %v457 = vld [vmem:[%s6] sm:$0xff]
    %v458 = vld [vmem:[%s6 + $0x8] sm:$0xff]
    %v459 = vld [vmem:[%s6 + $0x10] sm:$0xff]
    %v460 = vld [vmem:[%s6 + $0x18] sm:$0xff]
    %v462 = vsel %vm95, %v449, 0
    %v465 = vsel %vm95, %v450, 0
    %v468 = vsel %vm95, %v451, 0
    %v471 = vsel %vm95, %v452, 0
    %v474 = vsel %vm95, %v453, 0
    %v477 = vsel %vm95, %v454, 0
    %v480 = vsel %vm95, %v455, 0
    %v483 = vsel %vm95, %v456, 0
    %485 = vmatprep.subr.mxu0 0.0
    %486 = vmatpush1.msra.mxu0 %v457
    %487 = vmatprep.subr.mxu0 0.0
    %488 = vmatpush1.msra.mxu0 %v458
    %489 = vmatprep.subr.mxu0 0.0
    %490 = vmatpush1.msra.mxu0 %v459
    %491 = vmatprep.subr.mxu0 0.0
    %492 = vmatpush1.msra.mxu0 %v460
    %493 = vmatprep.subr.mxu0 0.0
    %494 = vmatpush1.msra.mxu0 0.0
    %495 = vmatprep.subr.mxu0 0.0
    %496 = vmatpush1.msra.mxu0 0.0
    %497 = vmatprep.subr.mxu0 0.0
    %498 = vmatpush1.msra.mxu0 0.0
    %499 = vmatprep.subr.mxu0 0.0
    %500 = vmatpush1.msra.mxu0 0.0
    %501 = vmatprep.subr.mxu0 0.0
    %502 = vmatpush1.msra.mxu0 0.0
    %503 = vmatprep.subr.mxu0 0.0
    %504 = vmatpush1.msra.mxu0 0.0
    %505 = vmatprep.subr.mxu0 0.0
    %506 = vmatpush1.msra.mxu0 0.0
    %507 = vmatprep.subr.mxu0 0.0
    %508 = vmatpush1.msra.mxu0 0.0
    %509 = vmatprep.subr.mxu0 0.0
    %510 = vmatpush1.msra.mxu0 0.0
    %511 = vmatprep.subr.mxu0 0.0
    %512 = vmatpush1.msra.mxu0 0.0
    %513 = vmatprep.subr.mxu0 0.0
    %514 = vmatpush1.msra.mxu0 0.0
    %515 = vmatprep.subr.mxu0 0.0
    %516 = vmatpush1.msra.mxu0 0.0
    %517 = vmatprep.subr.mxu0 0.0
    %518 = vmatpush1.msra.mxu0 0.0
    %519 = vmatprep.subr.mxu0 0.0
    %520 = vmatpush1.msra.mxu0 0.0
    %521 = vmatprep.subr.mxu0 0.0
    %522 = vmatpush1.msra.mxu0 0.0
    %523 = vmatprep.subr.mxu0 0.0
    %524 = vmatpush1.msra.mxu0 0.0
    %525 = vmatprep.subr.mxu0 0.0
    %526 = vmatpush1.msra.mxu0 0.0
    %527 = vmatprep.subr.mxu0 0.0
    %528 = vmatpush1.msra.mxu0 0.0
    %529 = vmatprep.subr.mxu0 0.0
    %530 = vmatpush1.msra.mxu0 0.0
    %531 = vmatprep.subr.mxu0 0.0
    %532 = vmatpush1.msra.mxu0 0.0
    %533 = vmatprep.subr.mxu0 0.0
    %534 = vmatpush1.msra.mxu0 0.0
    %535 = vmatprep.subr.mxu0 0.0
    %536 = vmatpush1.msra.mxu0 0.0
    %537 = vmatprep.subr.mxu0 0.0
    %538 = vmatpush1.msra.mxu0 0.0
    %539 = vmatprep.subr.mxu0 0.0
    %540 = vmatpush1.msra.mxu0 0.0
    %541 = vmatprep.subr.mxu0 0.0
    %542 = vmatpush1.msra.mxu0 0.0
    %543 = vmatprep.subr.mxu0 0.0
    %544 = vmatpush1.msra.mxu0 0.0
    %545 = vmatprep.subr.mxu0 0.0
    %546 = vmatpush1.msra.mxu0 0.0
    %547 = vmatprep.subr.mxu0 0.0
    %548 = vmatpush1.msra.mxu0 0.0
    %549 = vmatprep.mubr.f32.mxu0 0.0
    %550 = vmatmul.mubr.f32.gmra.mrb[0].mxu0 %v462
    %v551 = vpop.f32.mrb[0].mxu0
    %v552 = vadd.f32 0.0, %v551
    %v553 = vpop.f32.mrb[0].mxu0
    %554 = vmatprep.mubr.f32.mxu0 0.0
    %555 = vmatmul.mubr.f32.gmra.mrb[0].mxu0 %v465
    %v556 = vpop.f32.mrb[0].mxu0
    %v557 = vadd.f32 0.0, %v556
    %v558 = vpop.f32.mrb[0].mxu0
    %559 = vmatprep.mubr.f32.mxu0 0.0
    %560 = vmatmul.mubr.f32.gmra.mrb[0].mxu0 %v468
    %v561 = vpop.f32.mrb[0].mxu0
    %v562 = vadd.f32 0.0, %v561
    %v563 = vpop.f32.mrb[0].mxu0
    %564 = vmatprep.mubr.f32.mxu0 0.0
    %565 = vmatmul.mubr.f32.gmra.mrb[0].mxu0 %v471
    %v566 = vpop.f32.mrb[0].mxu0
    %v567 = vadd.f32 0.0, %v566
    %v568 = vpop.f32.mrb[0].mxu0
    %569 = vmatprep.mubr.f32.mxu0 0.0
    %570 = vmatmul.mubr.f32.gmra.mrb[0].mxu0 %v474
    %v571 = vpop.f32.mrb[0].mxu0
    %v572 = vadd.f32 0.0, %v571
    %v573 = vpop.f32.mrb[0].mxu0
    %574 = vmatprep.mubr.f32.mxu0 0.0
    %575 = vmatmul.mubr.f32.gmra.mrb[0].mxu0 %v477
    %v576 = vpop.f32.mrb[0].mxu0
    %v577 = vadd.f32 0.0, %v576
    %v578 = vpop.f32.mrb[0].mxu0
    %579 = vmatprep.mubr.f32.mxu0 0.0
    %580 = vmatmul.mubr.f32.gmra.mrb[0].mxu0 %v480
    %v581 = vpop.f32.mrb[0].mxu0
    %v582 = vadd.f32 0.0, %v581
    %v583 = vpop.f32.mrb[0].mxu0
    %584 = vmatprep.mubr.f32.mxu0 0.0
    %585 = vmatmul.mubr.f32.gmra.mrb[0].mxu0 %v483
    %v586 = vpop.f32.mrb[0].mxu0
    %v587 = vadd.f32 0.0, %v586
    %v588 = vpop.f32.mrb[0].mxu0
    %589 = vdwg.mxu0
    %v590 = vld [vmem:[%s7] sm:$0x1]
    %v592 = vlaneseq
    %v593 = vshrl.u32 %v592, 7
    %v594 = vsub.s32 0, %v593
    %v595 = vrot.slane %v590, %v594
    %v597 = vmul.f32 %v552, %v595
    %v598 = vmul.f32 %v557, %v595
    %v599 = vmul.f32 %v562, %v595
    %v600 = vmul.f32 %v567, %v595
    %v601 = vmul.f32 %v572, %v595
    %v602 = vmul.f32 %v577, %v595
    %v603 = vmul.f32 %v582, %v595
    %v604 = vmul.f32 %v587, %v595
    %v605 = vld [vmem:[%s8] sm:$0x1]
    %v607 = vlaneseq
    %v608 = vshrl.u32 %v607, 7
    %v609 = vsub.s32 0, %v608
    %v610 = vrot.slane %v605, %v609
    %v612 = vadd.f32 %v597, %v610
    %v613 = vadd.f32 %v598, %v610
    %v614 = vadd.f32 %v599, %v610
    %v615 = vadd.f32 %v600, %v610
    %v616 = vadd.f32 %v601, %v610
    %v617 = vadd.f32 %v602, %v610
    %v618 = vadd.f32 %v603, %v610
    %v619 = vadd.f32 %v604, %v610
    %v620 = vmax.f32 %v612, 0.0
    %v621 = vmax.f32 %v613, 0.0
    %v622 = vmax.f32 %v614, 0.0
    %v623 = vmax.f32 %v615, 0.0
    %v624 = vmax.f32 %v616, 0.0
    %v625 = vmax.f32 %v617, 0.0
    %v626 = vmax.f32 %v618, 0.0
    %v627 = vmax.f32 %v619, 0.0
    %636 = vrot.lane.b32.xlu0 %v552, 96
    %v637 = vpop.permute.xlu0 %636
    %638 = vrot.lane.b32.xlu0 %v557, 96
    %v639 = vpop.permute.xlu0 %638
    %640 = vrot.lane.b32.xlu0 %v562, 96
    %v641 = vpop.permute.xlu0 %640
    %642 = vrot.lane.b32.xlu0 %v567, 96
    %v643 = vpop.permute.xlu0 %642
    %644 = vrot.lane.b32.xlu0 %v572, 96
    %v645 = vpop.permute.xlu0 %644
    %646 = vrot.lane.b32.xlu0 %v577, 96
    %v647 = vpop.permute.xlu0 %646
    %648 = vrot.lane.b32.xlu0 %v582, 96
    %v649 = vpop.permute.xlu0 %648
    %650 = vrot.lane.b32.xlu0 %v587, 96
    %v651 = vpop.permute.xlu0 %650
    %660 = vmatprep.subr.mxu0 0.0
    %661 = vmatpush1.msra.mxu0 %v637
    %662 = vmatprep.subr.mxu0 0.0
    %663 = vmatpush1.msra.mxu0 %v639
    %664 = vmatprep.subr.mxu0 0.0
    %665 = vmatpush1.msra.mxu0 %v641
    %666 = vmatprep.subr.mxu0 0.0
    %667 = vmatpush1.msra.mxu0 %v643
    %668 = vmatprep.subr.mxu0 0.0
    %669 = vmatpush1.msra.mxu0 %v645
    %670 = vmatprep.subr.mxu0 0.0
    %671 = vmatpush1.msra.mxu0 %v647
    %672 = vmatprep.subr.mxu0 0.0
    %673 = vmatpush1.msra.mxu0 %v649
    %674 = vmatprep.subr.mxu0 0.0
    %675 = vmatpush1.msra.mxu0 %v651
    %676 = vmatprep.subr.mxu0 0.0
    %677 = vmatpush1.msra.mxu0 0.0
    %678 = vmatprep.subr.mxu0 0.0
    %679 = vmatpush1.msra.mxu0 0.0
    %680 = vmatprep.subr.mxu0 0.0
    %681 = vmatpush1.msra.mxu0 0.0
    %682 = vmatprep.subr.mxu0 0.0
    %683 = vmatpush1.msra.mxu0 0.0
    %684 = vmatprep.subr.mxu0 0.0
    %685 = vmatpush1.msra.mxu0 0.0
    %686 = vmatprep.subr.mxu0 0.0
    %687 = vmatpush1.msra.mxu0 0.0
    %688 = vmatprep.subr.mxu0 0.0
    %689 = vmatpush1.msra.mxu0 0.0
    %690 = vmatprep.subr.mxu0 0.0
    %691 = vmatpush1.msra.mxu0 0.0
    %692 = vmatprep.subr.mxu0 0.0
    %693 = vmatpush1.msra.mxu0 0.0
    %694 = vmatprep.subr.mxu0 0.0
    %695 = vmatpush1.msra.mxu0 0.0
    %696 = vmatprep.subr.mxu0 0.0
    %697 = vmatpush1.msra.mxu0 0.0
    %698 = vmatprep.subr.mxu0 0.0
    %699 = vmatpush1.msra.mxu0 0.0
    %700 = vmatprep.subr.mxu0 0.0
    %701 = vmatpush1.msra.mxu0 0.0
    %702 = vmatprep.subr.mxu0 0.0
    %703 = vmatpush1.msra.mxu0 0.0
    %704 = vmatprep.subr.mxu0 0.0
    %705 = vmatpush1.msra.mxu0 0.0
    %706 = vmatprep.subr.mxu0 0.0
    %707 = vmatpush1.msra.mxu0 0.0
    %708 = vmatprep.subr.mxu0 0.0
    %709 = vmatpush1.msra.mxu0 0.0
    %710 = vmatprep.subr.mxu0 0.0
    %711 = vmatpush1.msra.mxu0 0.0
    %712 = vmatprep.subr.mxu0 0.0
    %713 = vmatpush1.msra.mxu0 0.0
    %714 = vmatprep.subr.mxu0 0.0
    %715 = vmatpush1.msra.mxu0 0.0
    %716 = vmatprep.subr.mxu0 0.0
    %717 = vmatpush1.msra.mxu0 0.0
    %718 = vmatprep.subr.mxu0 0.0
    %719 = vmatpush1.msra.mxu0 0.0
    %720 = vmatprep.subr.mxu0 0.0
    %721 = vmatpush1.msra.mxu0 0.0
    %722 = vmatprep.subr.mxu0 0.0
    %723 = vmatpush1.msra.mxu0 0.0
    %724 = vmatprep.mubr.f32.mxu0 0.0
    %725 = vmatmul.mubr.f32.gmra.mrb[0].mxu0 %v297
    %v726 = vpop.f32.mrb[0].mxu0
    %v727 = vadd.f32 0.0, %v726
    %v728 = vpop.f32.mrb[0].mxu0
    %729 = vmatprep.mubr.f32.mxu0 0.0
    %730 = vmatmul.mubr.f32.gmra.mrb[0].mxu0 %v300
    %v731 = vpop.f32.mrb[0].mxu0
    %v732 = vadd.f32 0.0, %v731
    %v733 = vpop.f32.mrb[0].mxu0
    %734 = vmatprep.mubr.f32.mxu0 0.0
    %735 = vmatmul.mubr.f32.gmra.mrb[0].mxu0 %v303
    %v736 = vpop.f32.mrb[0].mxu0
    %v737 = vadd.f32 0.0, %v736
    %v738 = vpop.f32.mrb[0].mxu0
    %739 = vmatprep.mubr.f32.mxu0 0.0
    %740 = vmatmul.mubr.f32.gmra.mrb[0].mxu0 %v306
    %v741 = vpop.f32.mrb[0].mxu0
    %v742 = vadd.f32 0.0, %v741
    %v743 = vpop.f32.mrb[0].mxu0
    %744 = vmatprep.mubr.f32.mxu0 0.0
    %745 = vmatmul.mubr.f32.gmra.mrb[0].mxu0 %v309
    %v746 = vpop.f32.mrb[0].mxu0
    %v747 = vadd.f32 0.0, %v746
    %v748 = vpop.f32.mrb[0].mxu0
    %749 = vmatprep.mubr.f32.mxu0 0.0
    %750 = vmatmul.mubr.f32.gmra.mrb[0].mxu0 %v312
    %v751 = vpop.f32.mrb[0].mxu0
    %v752 = vadd.f32 0.0, %v751
    %v753 = vpop.f32.mrb[0].mxu0
    %754 = vmatprep.mubr.f32.mxu0 0.0
    %755 = vmatmul.mubr.f32.gmra.mrb[0].mxu0 %v315
    %v756 = vpop.f32.mrb[0].mxu0
    %v757 = vadd.f32 0.0, %v756
    %v758 = vpop.f32.mrb[0].mxu0
    %759 = vmatprep.mubr.f32.mxu0 0.0
    %760 = vmatmul.mubr.f32.gmra.mrb[0].mxu0 %v318
    %v761 = vpop.f32.mrb[0].mxu0
    %v762 = vadd.f32 0.0, %v761
    %v763 = vpop.f32.mrb[0].mxu0
    %764 = vdwg.mxu0
    %v765 = vmax.f32 %v727, 0.0
    %v766 = vmax.f32 %v732, 0.0
    %v767 = vmax.f32 %v737, 0.0
    %v768 = vmax.f32 %v742, 0.0
    %v769 = vmax.f32 %v747, 0.0
    %v770 = vmax.f32 %v752, 0.0
    %v771 = vmax.f32 %v757, 0.0
    %v772 = vmax.f32 %v762, 0.0
    %v773 = vmul.f32 %v765, 0.5
    %v774 = vmul.f32 %v766, 0.5
    %v775 = vmul.f32 %v767, 0.5
    %v776 = vmul.f32 %v768, 0.5
    %v777 = vmul.f32 %v769, 0.5
    %v778 = vmul.f32 %v770, 0.5
    %v779 = vmul.f32 %v771, 0.5
    %v780 = vmul.f32 %v772, 0.5
    %v781 = vmul.f32 %v620, 0.5
    %v782 = vmul.f32 %v621, 0.5
    %v783 = vmul.f32 %v622, 0.5
    %v784 = vmul.f32 %v623, 0.5
    %v785 = vmul.f32 %v624, 0.5
    %v786 = vmul.f32 %v625, 0.5
    %v787 = vmul.f32 %v626, 0.5
    %v788 = vmul.f32 %v627, 0.5
    %v789 = vadd.f32 %v773, %v781
    %v790 = vadd.f32 %v774, %v782
    %v791 = vadd.f32 %v775, %v783
    %v792 = vadd.f32 %v776, %v784
    %v793 = vadd.f32 %v777, %v785
    %v794 = vadd.f32 %v778, %v786
    %v795 = vadd.f32 %v779, %v787
    %v796 = vadd.f32 %v780, %v788
    %v797 = vld [vmem:[%s9] sm:$0xff]
    %v798 = vld [vmem:[%s9 + $0x8] sm:$0xff]
    %v799 = vld [vmem:[%s9 + $0x10] sm:$0xff]
    %v800 = vld [vmem:[%s9 + $0x18] sm:$0xff]
    %v802 = vsel %vm95, %v789, 0
    %v805 = vsel %vm95, %v790, 0
    %v808 = vsel %vm95, %v791, 0
    %v811 = vsel %vm95, %v792, 0
    %v814 = vsel %vm95, %v793, 0
    %v817 = vsel %vm95, %v794, 0
    %v820 = vsel %vm95, %v795, 0
    %v823 = vsel %vm95, %v796, 0
    %825 = vmatprep.subr.mxu0 0.0
    %826 = vmatpush1.msra.mxu0 %v797
    %827 = vmatprep.subr.mxu0 0.0
    %828 = vmatpush1.msra.mxu0 %v798
    %829 = vmatprep.subr.mxu0 0.0
    %830 = vmatpush1.msra.mxu0 %v799
    %831 = vmatprep.subr.mxu0 0.0
    %832 = vmatpush1.msra.mxu0 %v800
    %833 = vmatprep.subr.mxu0 0.0
    %834 = vmatpush1.msra.mxu0 0.0
    %835 = vmatprep.subr.mxu0 0.0
    %836 = vmatpush1.msra.mxu0 0.0
    %837 = vmatprep.subr.mxu0 0.0
    %838 = vmatpush1.msra.mxu0 0.0
    %839 = vmatprep.subr.mxu0 0.0
    %840 = vmatpush1.msra.mxu0 0.0
    %841 = vmatprep.subr.mxu0 0.0
    %842 = vmatpush1.msra.mxu0 0.0
    %843 = vmatprep.subr.mxu0 0.0
    %844 = vmatpush1.msra.mxu0 0.0
    %845 = vmatprep.subr.mxu0 0.0
    %846 = vmatpush1.msra.mxu0 0.0
    %847 = vmatprep.subr.mxu0 0.0
    %848 = vmatpush1.msra.mxu0 0.0
    %849 = vmatprep.subr.mxu0 0.0
    %850 = vmatpush1.msra.mxu0 0.0
    %851 = vmatprep.subr.mxu0 0.0
    %852 = vmatpush1.msra.mxu0 0.0
    %853 = vmatprep.subr.mxu0 0.0
    %854 = vmatpush1.msra.mxu0 0.0
    %855 = vmatprep.subr.mxu0 0.0
    %856 = vmatpush1.msra.mxu0 0.0
    %857 = vmatprep.subr.mxu0 0.0
    %858 = vmatpush1.msra.mxu0 0.0
    %859 = vmatprep.subr.mxu0 0.0
    %860 = vmatpush1.msra.mxu0 0.0
    %861 = vmatprep.subr.mxu0 0.0
    %862 = vmatpush1.msra.mxu0 0.0
    %863 = vmatprep.subr.mxu0 0.0
    %864 = vmatpush1.msra.mxu0 0.0
    %865 = vmatprep.subr.mxu0 0.0
    %866 = vmatpush1.msra.mxu0 0.0
    %867 = vmatprep.subr.mxu0 0.0
    %868 = vmatpush1.msra.mxu0 0.0
    %869 = vmatprep.subr.mxu0 0.0
    %870 = vmatpush1.msra.mxu0 0.0
    %871 = vmatprep.subr.mxu0 0.0
    %872 = vmatpush1.msra.mxu0 0.0
    %873 = vmatprep.subr.mxu0 0.0
    %874 = vmatpush1.msra.mxu0 0.0
    %875 = vmatprep.subr.mxu0 0.0
    %876 = vmatpush1.msra.mxu0 0.0
    %877 = vmatprep.subr.mxu0 0.0
    %878 = vmatpush1.msra.mxu0 0.0
    %879 = vmatprep.subr.mxu0 0.0
    %880 = vmatpush1.msra.mxu0 0.0
    %881 = vmatprep.subr.mxu0 0.0
    %882 = vmatpush1.msra.mxu0 0.0
    %883 = vmatprep.subr.mxu0 0.0
    %884 = vmatpush1.msra.mxu0 0.0
    %885 = vmatprep.subr.mxu0 0.0
    %886 = vmatpush1.msra.mxu0 0.0
    %887 = vmatprep.subr.mxu0 0.0
    %888 = vmatpush1.msra.mxu0 0.0
    %889 = vmatprep.mubr.f32.mxu0 0.0
    %890 = vmatmul.mubr.f32.gmra.mrb[0].mxu0 %v802
    %v891 = vpop.f32.mrb[0].mxu0
    %v892 = vadd.f32 0.0, %v891
    %v893 = vpop.f32.mrb[0].mxu0
    %894 = vmatprep.mubr.f32.mxu0 0.0
    %895 = vmatmul.mubr.f32.gmra.mrb[0].mxu0 %v805
    %v896 = vpop.f32.mrb[0].mxu0
    %v897 = vadd.f32 0.0, %v896
    %v898 = vpop.f32.mrb[0].mxu0
    %899 = vmatprep.mubr.f32.mxu0 0.0
    %900 = vmatmul.mubr.f32.gmra.mrb[0].mxu0 %v808
    %v901 = vpop.f32.mrb[0].mxu0
    %v902 = vadd.f32 0.0, %v901
    %v903 = vpop.f32.mrb[0].mxu0
    %904 = vmatprep.mubr.f32.mxu0 0.0
    %905 = vmatmul.mubr.f32.gmra.mrb[0].mxu0 %v811
    %v906 = vpop.f32.mrb[0].mxu0
    %v907 = vadd.f32 0.0, %v906
    %v908 = vpop.f32.mrb[0].mxu0
    %909 = vmatprep.mubr.f32.mxu0 0.0
    %910 = vmatmul.mubr.f32.gmra.mrb[0].mxu0 %v814
    %v911 = vpop.f32.mrb[0].mxu0
    %v912 = vadd.f32 0.0, %v911
    %v913 = vpop.f32.mrb[0].mxu0
    %914 = vmatprep.mubr.f32.mxu0 0.0
    %915 = vmatmul.mubr.f32.gmra.mrb[0].mxu0 %v817
    %v916 = vpop.f32.mrb[0].mxu0
    %v917 = vadd.f32 0.0, %v916
    %v918 = vpop.f32.mrb[0].mxu0
    %919 = vmatprep.mubr.f32.mxu0 0.0
    %920 = vmatmul.mubr.f32.gmra.mrb[0].mxu0 %v820
    %v921 = vpop.f32.mrb[0].mxu0
    %v922 = vadd.f32 0.0, %v921
    %v923 = vpop.f32.mrb[0].mxu0
    %924 = vmatprep.mubr.f32.mxu0 0.0
    %925 = vmatmul.mubr.f32.gmra.mrb[0].mxu0 %v823
    %v926 = vpop.f32.mrb[0].mxu0
    %v927 = vadd.f32 0.0, %v926
    %v928 = vpop.f32.mrb[0].mxu0
    %929 = vdwg.mxu0
    %v930 = vld [vmem:[%s10] sm:$0x1]
    %v932 = vlaneseq
    %v933 = vshrl.u32 %v932, 7
    %v934 = vsub.s32 0, %v933
    %v935 = vrot.slane %v930, %v934
    %v937 = vmul.f32 %v892, %v935
    %v938 = vmul.f32 %v897, %v935
    %v939 = vmul.f32 %v902, %v935
    %v940 = vmul.f32 %v907, %v935
    %v941 = vmul.f32 %v912, %v935
    %v942 = vmul.f32 %v917, %v935
    %v943 = vmul.f32 %v922, %v935
    %v944 = vmul.f32 %v927, %v935
    %v945 = vld [vmem:[%s11] sm:$0x1]
    %v947 = vlaneseq
    %v948 = vshrl.u32 %v947, 7
    %v949 = vsub.s32 0, %v948
    %v950 = vrot.slane %v945, %v949
    %v952 = vadd.f32 %v937, %v950
    %v953 = vadd.f32 %v938, %v950
    %v954 = vadd.f32 %v939, %v950
    %v955 = vadd.f32 %v940, %v950
    %v956 = vadd.f32 %v941, %v950
    %v957 = vadd.f32 %v942, %v950
    %v958 = vadd.f32 %v943, %v950
    %v959 = vadd.f32 %v944, %v950
    %v960 = vmax.f32 %v952, 0.0
    %v961 = vmax.f32 %v953, 0.0
    %v962 = vmax.f32 %v954, 0.0
    %v963 = vmax.f32 %v955, 0.0
    %v964 = vmax.f32 %v956, 0.0
    %v965 = vmax.f32 %v957, 0.0
    %v966 = vmax.f32 %v958, 0.0
    %v967 = vmax.f32 %v959, 0.0
    %976 = vrot.lane.b32.xlu0 %v892, 112
    %v977 = vpop.permute.xlu0 %976
    %978 = vrot.lane.b32.xlu0 %v897, 112
    %v979 = vpop.permute.xlu0 %978
    %980 = vrot.lane.b32.xlu0 %v902, 112
    %v981 = vpop.permute.xlu0 %980
    %982 = vrot.lane.b32.xlu0 %v907, 112
    %v983 = vpop.permute.xlu0 %982
    %984 = vrot.lane.b32.xlu0 %v912, 112
    %v985 = vpop.permute.xlu0 %984
    %986 = vrot.lane.b32.xlu0 %v917, 112
    %v987 = vpop.permute.xlu0 %986
    %988 = vrot.lane.b32.xlu0 %v922, 112
    %v989 = vpop.permute.xlu0 %988
    %990 = vrot.lane.b32.xlu0 %v927, 112
    %v991 = vpop.permute.xlu0 %990
    %1000 = vmatprep.subr.mxu0 0.0
    %1001 = vmatpush1.msra.mxu0 %v977
    %1002 = vmatprep.subr.mxu0 0.0
    %1003 = vmatpush1.msra.mxu0 %v979
    %1004 = vmatprep.subr.mxu0 0.0
    %1005 = vmatpush1.msra.mxu0 %v981
    %1006 = vmatprep.subr.mxu0 0.0
    %1007 = vmatpush1.msra.mxu0 %v983
    %1008 = vmatprep.subr.mxu0 0.0
    %1009 = vmatpush1.msra.mxu0 %v985
    %1010 = vmatprep.subr.mxu0 0.0
    %1011 = vmatpush1.msra.mxu0 %v987
    %1012 = vmatprep.subr.mxu0 0.0
    %1013 = vmatpush1.msra.mxu0 %v989
    %1014 = vmatprep.subr.mxu0 0.0
    %1015 = vmatpush1.msra.mxu0 %v991
    %1016 = vmatprep.subr.mxu0 0.0
    %1017 = vmatpush1.msra.mxu0 0.0
    %1018 = vmatprep.subr.mxu0 0.0
    %1019 = vmatpush1.msra.mxu0 0.0
    %1020 = vmatprep.subr.mxu0 0.0
    %1021 = vmatpush1.msra.mxu0 0.0
    %1022 = vmatprep.subr.mxu0 0.0
    %1023 = vmatpush1.msra.mxu0 0.0
    %1024 = vmatprep.subr.mxu0 0.0
    %1025 = vmatpush1.msra.mxu0 0.0
    %1026 = vmatprep.subr.mxu0 0.0
    %1027 = vmatpush1.msra.mxu0 0.0
    %1028 = vmatprep.subr.mxu0 0.0
    %1029 = vmatpush1.msra.mxu0 0.0
    %1030 = vmatprep.subr.mxu0 0.0
    %1031 = vmatpush1.msra.mxu0 0.0
    %1032 = vmatprep.subr.mxu0 0.0
    %1033 = vmatpush1.msra.mxu0 0.0
    %1034 = vmatprep.subr.mxu0 0.0
    %1035 = vmatpush1.msra.mxu0 0.0
    %1036 = vmatprep.subr.mxu0 0.0
    %1037 = vmatpush1.msra.mxu0 0.0
    %1038 = vmatprep.subr.mxu0 0.0
    %1039 = vmatpush1.msra.mxu0 0.0
    %1040 = vmatprep.subr.mxu0 0.0
    %1041 = vmatpush1.msra.mxu0 0.0
    %1042 = vmatprep.subr.mxu0 0.0
    %1043 = vmatpush1.msra.mxu0 0.0
    %1044 = vmatprep.subr.mxu0 0.0
    %1045 = vmatpush1.msra.mxu0 0.0
    %1046 = vmatprep.subr.mxu0 0.0
    %1047 = vmatpush1.msra.mxu0 0.0
    %1048 = vmatprep.subr.mxu0 0.0
    %1049 = vmatpush1.msra.mxu0 0.0
    %1050 = vmatprep.subr.mxu0 0.0
    %1051 = vmatpush1.msra.mxu0 0.0
    %1052 = vmatprep.subr.mxu0 0.0
    %1053 = vmatpush1.msra.mxu0 0.0
    %1054 = vmatprep.subr.mxu0 0.0
    %1055 = vmatpush1.msra.mxu0 0.0
    %1056 = vmatprep.subr.mxu0 0.0
    %1057 = vmatpush1.msra.mxu0 0.0
    %1058 = vmatprep.subr.mxu0 0.0
    %1059 = vmatpush1.msra.mxu0 0.0
    %1060 = vmatprep.subr.mxu0 0.0
    %1061 = vmatpush1.msra.mxu0 0.0
    %1062 = vmatprep.subr.mxu0 0.0
    %1063 = vmatpush1.msra.mxu0 0.0
    %1064 = vmatprep.mubr.f32.mxu0 0.0
    %1065 = vmatmul.mubr.f32.gmra.mrb[0].mxu0 %v297
    %v1066 = vpop.f32.mrb[0].mxu0
    %v1067 = vadd.f32 0.0, %v1066
    %v1068 = vpop.f32.mrb[0].mxu0
    %1069 = vmatprep.mubr.f32.mxu0 0.0
    %1070 = vmatmul.mubr.f32.gmra.mrb[0].mxu0 %v300
    %v1071 = vpop.f32.mrb[0].mxu0
    %v1072 = vadd.f32 0.0, %v1071
    %v1073 = vpop.f32.mrb[0].mxu0
    %1074 = vmatprep.mubr.f32.mxu0 0.0
    %1075 = vmatmul.mubr.f32.gmra.mrb[0].mxu0 %v303
    %v1076 = vpop.f32.mrb[0].mxu0
    %v1077 = vadd.f32 0.0, %v1076
    %v1078 = vpop.f32.mrb[0].mxu0
    %1079 = vmatprep.mubr.f32.mxu0 0.0
    %1080 = vmatmul.mubr.f32.gmra.mrb[0].mxu0 %v306
    %v1081 = vpop.f32.mrb[0].mxu0
    %v1082 = vadd.f32 0.0, %v1081
    %v1083 = vpop.f32.mrb[0].mxu0
    %1084 = vmatprep.mubr.f32.mxu0 0.0
    %1085 = vmatmul.mubr.f32.gmra.mrb[0].mxu0 %v309
    %v1086 = vpop.f32.mrb[0].mxu0
    %v1087 = vadd.f32 0.0, %v1086
    %v1088 = vpop.f32.mrb[0].mxu0
    %1089 = vmatprep.mubr.f32.mxu0 0.0
    %1090 = vmatmul.mubr.f32.gmra.mrb[0].mxu0 %v312
    %v1091 = vpop.f32.mrb[0].mxu0
    %v1092 = vadd.f32 0.0, %v1091
    %v1093 = vpop.f32.mrb[0].mxu0
    %1094 = vmatprep.mubr.f32.mxu0 0.0
    %1095 = vmatmul.mubr.f32.gmra.mrb[0].mxu0 %v315
    %v1096 = vpop.f32.mrb[0].mxu0
    %v1097 = vadd.f32 0.0, %v1096
    %v1098 = vpop.f32.mrb[0].mxu0
    %1099 = vmatprep.mubr.f32.mxu0 0.0
    %1100 = vmatmul.mubr.f32.gmra.mrb[0].mxu0 %v318
    %v1101 = vpop.f32.mrb[0].mxu0
    %v1102 = vadd.f32 0.0, %v1101
    %v1103 = vpop.f32.mrb[0].mxu0
    %1104 = vdwg.mxu0
    %vm1105 = vcmask 130048
    %v1107 = vsel %vm1105, %v1067, 0
    %v1110 = vsel %vm1105, %v1072, 0
    %v1113 = vsel %vm1105, %v1077, 0
    %v1116 = vsel %vm1105, %v1082, 0
    %v1119 = vsel %vm1105, %v1087, 0
    %v1122 = vsel %vm1105, %v1092, 0
    %v1125 = vsel %vm1105, %v1097, 0
    %v1128 = vsel %vm1105, %v1102, 0
    %1130 = vmatprep.subr.mxu0 0.0
    %1131 = vmatpush1.xpose.msra.mxu0 %v1107
    %1132 = vmatprep.subr.mxu0 0.0
    %1133 = vmatpush1.xpose.msra.mxu0 %v1110
    %1134 = vmatprep.subr.mxu0 0.0
    %1135 = vmatpush1.xpose.msra.mxu0 %v1113
    %1136 = vmatprep.subr.mxu0 0.0
    %1137 = vmatpush1.xpose.msra.mxu0 %v1116
    %1138 = vmatprep.subr.mxu0 0.0
    %1139 = vmatpush1.xpose.msra.mxu0 %v1119
    %1140 = vmatprep.subr.mxu0 0.0
    %1141 = vmatpush1.xpose.msra.mxu0 %v1122
    %1142 = vmatprep.subr.mxu0 0.0
    %1143 = vmatpush1.xpose.msra.mxu0 %v1125
    %1144 = vmatprep.subr.mxu0 0.0
    %1145 = vmatpush1.xpose.msra.mxu0 %v1128
    %1146 = vmatprep.subr.mxu0 0.0
    %1147 = vmatpush1.xpose.msra.mxu0 0.0
    %1148 = vmatprep.subr.mxu0 0.0
    %1149 = vmatpush1.xpose.msra.mxu0 0.0
    %1150 = vmatprep.subr.mxu0 0.0
    %1151 = vmatpush1.xpose.msra.mxu0 0.0
    %1152 = vmatprep.subr.mxu0 0.0
    %1153 = vmatpush1.xpose.msra.mxu0 0.0
    %1154 = vmatprep.subr.mxu0 0.0
    %1155 = vmatpush1.xpose.msra.mxu0 0.0
    %1156 = vmatprep.subr.mxu0 0.0
    %1157 = vmatpush1.xpose.msra.mxu0 0.0
    %1158 = vmatprep.subr.mxu0 0.0
    %1159 = vmatpush1.xpose.msra.mxu0 0.0
    %1160 = vmatprep.subr.mxu0 0.0
    %1161 = vmatpush1.xpose.msra.mxu0 0.0
    %1162 = vmatprep.subr.mxu0 0.0
    %1163 = vmatpush1.xpose.msra.mxu0 0.0
    %1164 = vmatprep.subr.mxu0 0.0
    %1165 = vmatpush1.xpose.msra.mxu0 0.0
    %1166 = vmatprep.subr.mxu0 0.0
    %1167 = vmatpush1.xpose.msra.mxu0 0.0
    %1168 = vmatprep.subr.mxu0 0.0
    %1169 = vmatpush1.xpose.msra.mxu0 0.0
    %1170 = vmatprep.subr.mxu0 0.0
    %1171 = vmatpush1.xpose.msra.mxu0 0.0
    %1172 = vmatprep.subr.mxu0 0.0
    %1173 = vmatpush1.xpose.msra.mxu0 0.0
    %1174 = vmatprep.subr.mxu0 0.0
    %1175 = vmatpush1.xpose.msra.mxu0 0.0
    %1176 = vmatprep.subr.mxu0 0.0
    %1177 = vmatpush1.xpose.msra.mxu0 0.0
    %1178 = vmatprep.subr.mxu0 0.0
    %1179 = vmatpush1.xpose.msra.mxu0 0.0
    %1180 = vmatprep.subr.mxu0 0.0
    %1181 = vmatpush1.xpose.msra.mxu0 0.0
    %1182 = vmatprep.subr.mxu0 0.0
    %1183 = vmatpush1.xpose.msra.mxu0 0.0
    %1184 = vmatprep.subr.mxu0 0.0
    %1185 = vmatpush1.xpose.msra.mxu0 0.0
    %1186 = vmatprep.subr.mxu0 0.0
    %1187 = vmatpush1.xpose.msra.mxu0 0.0
    %1188 = vmatprep.subr.mxu0 0.0
    %1189 = vmatpush1.xpose.msra.mxu0 0.0
    %1190 = vmatprep.subr.mxu0 0.0
    %1191 = vmatpush1.xpose.msra.mxu0 0.0
    %1192 = vmatprep.subr.mxu0 0.0
    %1193 = vmatpush1.xpose.msra.mxu0 0.0
    %1194 = vmatprep.mubr.f32.mxu0 0.0
    %1195 = vmatmul.mubr.f32.gmra.mrb[0].mxu0 %v1107
    %v1196 = vpop.f32.mrb[0].mxu0
    %v1197 = vadd.f32 0.0, %v1196
    %v1198 = vpop.f32.mrb[0].mxu0
    %1199 = vmatprep.mubr.f32.mxu0 0.0
    %1200 = vmatmul.mubr.f32.gmra.mrb[0].mxu0 %v1110
    %v1201 = vpop.f32.mrb[0].mxu0
    %v1202 = vadd.f32 0.0, %v1201
    %v1203 = vpop.f32.mrb[0].mxu0
    %1204 = vmatprep.mubr.f32.mxu0 0.0
    %1205 = vmatmul.mubr.f32.gmra.mrb[0].mxu0 %v1113
    %v1206 = vpop.f32.mrb[0].mxu0
    %v1207 = vadd.f32 0.0, %v1206
    %v1208 = vpop.f32.mrb[0].mxu0
    %1209 = vmatprep.mubr.f32.mxu0 0.0
    %1210 = vmatmul.mubr.f32.gmra.mrb[0].mxu0 %v1116
    %v1211 = vpop.f32.mrb[0].mxu0
    %v1212 = vadd.f32 0.0, %v1211
    %v1213 = vpop.f32.mrb[0].mxu0
    %1214 = vmatprep.mubr.f32.mxu0 0.0
    %1215 = vmatmul.mubr.f32.gmra.mrb[0].mxu0 %v1119
    %v1216 = vpop.f32.mrb[0].mxu0
    %v1217 = vadd.f32 0.0, %v1216
    %v1218 = vpop.f32.mrb[0].mxu0
    %1219 = vmatprep.mubr.f32.mxu0 0.0
    %1220 = vmatmul.mubr.f32.gmra.mrb[0].mxu0 %v1122
    %v1221 = vpop.f32.mrb[0].mxu0
    %v1222 = vadd.f32 0.0, %v1221
    %v1223 = vpop.f32.mrb[0].mxu0
    %1224 = vmatprep.mubr.f32.mxu0 0.0
    %1225 = vmatmul.mubr.f32.gmra.mrb[0].mxu0 %v1125
    %v1226 = vpop.f32.mrb[0].mxu0
    %v1227 = vadd.f32 0.0, %v1226
    %v1228 = vpop.f32.mrb[0].mxu0
    %1229 = vmatprep.mubr.f32.mxu0 0.0
    %1230 = vmatmul.mubr.f32.gmra.mrb[0].mxu0 %v1128
    %v1231 = vpop.f32.mrb[0].mxu0
    %v1232 = vadd.f32 0.0, %v1231
    %v1233 = vpop.f32.mrb[0].mxu0
    %1234 = vdwg.mxu0
    %v1235 = vxor.u32 %v1197, 2147483648
    %v1236 = vxor.u32 %v1202, 2147483648
    %v1237 = vxor.u32 %v1207, 2147483648
    %v1238 = vxor.u32 %v1212, 2147483648
    %v1239 = vxor.u32 %v1217, 2147483648
    %v1240 = vxor.u32 %v1222, 2147483648
    %v1241 = vxor.u32 %v1227, 2147483648
    %v1242 = vxor.u32 %v1232, 2147483648
    %v1243 = vmul.f32 %v1235, 1.442695
    %v1244 = vpow.pop %v1243
    %v1245 = vmul.f32 %v1236, 1.442695
    %v1246 = vpow.pop %v1245
    %v1247 = vmul.f32 %v1237, 1.442695
    %v1248 = vpow.pop %v1247
    %v1249 = vmul.f32 %v1238, 1.442695
    %v1250 = vpow.pop %v1249
    %v1251 = vmul.f32 %v1239, 1.442695
    %v1252 = vpow.pop %v1251
    %v1253 = vmul.f32 %v1240, 1.442695
    %v1254 = vpow.pop %v1253
    %v1255 = vmul.f32 %v1241, 1.442695
    %v1256 = vpow.pop %v1255
    %v1257 = vmul.f32 %v1242, 1.442695
    %v1258 = vpow.pop %v1257
    %v1259 = vadd.f32 %v1244, 1.0
    %v1260 = vadd.f32 %v1246, 1.0
    %v1261 = vadd.f32 %v1248, 1.0
    %v1262 = vadd.f32 %v1250, 1.0
    %v1263 = vadd.f32 %v1252, 1.0
    %v1264 = vadd.f32 %v1254, 1.0
    %v1265 = vadd.f32 %v1256, 1.0
    %v1266 = vadd.f32 %v1258, 1.0
    %v1267 = vrcp.pop %v1259
    %v1268 = vmul.f32 1.0, %v1267
    %v1269 = vrcp.pop %v1260
    %v1270 = vmul.f32 1.0, %v1269
    %v1271 = vrcp.pop %v1261
    %v1272 = vmul.f32 1.0, %v1271
    %v1273 = vrcp.pop %v1262
    %v1274 = vmul.f32 1.0, %v1273
    %v1275 = vrcp.pop %v1263
    %v1276 = vmul.f32 1.0, %v1275
    %v1277 = vrcp.pop %v1264
    %v1278 = vmul.f32 1.0, %v1277
    %v1279 = vrcp.pop %v1265
    %v1280 = vmul.f32 1.0, %v1279
    %v1281 = vrcp.pop %v1266
    %v1282 = vmul.f32 1.0, %v1281
    %1283 = vst.msk [vmem:[#allocation3] sm:$0xff] %vm295, %v1268
    %1284 = vst.msk [vmem:[#allocation3 + $0x8] sm:$0xff] %vm295, %v1270
    %1285 = vst.msk [vmem:[#allocation3 + $0x10] sm:$0xff] %vm295, %v1272
    %1286 = vst.msk [vmem:[#allocation3 + $0x18] sm:$0xff] %vm295, %v1274
    %1287 = vst.msk [vmem:[#allocation3 + $0x20] sm:$0xff] %vm295, %v1276
    %1288 = vst.msk [vmem:[#allocation3 + $0x28] sm:$0xff] %vm295, %v1278
    %1289 = vst.msk [vmem:[#allocation3 + $0x30] sm:$0xff] %vm295, %v1280
    %1290 = vst.msk [vmem:[#allocation3 + $0x38] sm:$0xff] %vm295, %v1282
    %v1291 = vld [vmem:[%s19] sm:$0xff]
    %v1292 = vld [vmem:[%s19 + $0x8] sm:$0xff]
    %v1293 = vmul.f32 %v1291, %v1291
    %v1294 = vmul.f32 %v1292, %v1292
    %vm1295 = vcmask 31744
    %v1296 = vsel %vm1295, %v1293, 0.0
    %v1297 = vsel %vm1295, %v1294, 0.0
    %v1298 = vadd.f32 %v1296, %v1297
    %v1299 = vrot.slane %v1298, 4
    %v1300 = vadd.f32 %v1298, %v1299
    %v1301 = vrot.slane %v1300, 2
    %v1302 = vadd.f32 %v1300, %v1301
    %v1303 = vrot.slane %v1302, 1
    %v1304 = vadd.f32 %v1302, %v1303
    %v1305 = vmul.f32 %v960, %v960
    %v1306 = vmul.f32 %v961, %v961
    %v1307 = vmul.f32 %v962, %v962
    %v1308 = vmul.f32 %v963, %v963
    %v1309 = vmul.f32 %v964, %v964
    %v1310 = vmul.f32 %v965, %v965
    %v1311 = vmul.f32 %v966, %v966
    %v1312 = vmul.f32 %v967, %v967
    %v1313 = vsel %vm1105, %v1305, 0.0
    %1314 = vadd.xlane.f32.xlu0 %v1313
    %v1315 = vpop.xlane.xlu0 %1314
    %v1316 = vsel %vm1105, %v1306, 0.0
    %1317 = vadd.xlane.f32.xlu0 %v1316
    %v1318 = vpop.xlane.xlu0 %1317
    %v1319 = vsel %vm1105, %v1307, 0.0
    %1320 = vadd.xlane.f32.xlu0 %v1319
    %v1321 = vpop.xlane.xlu0 %1320
    %v1322 = vsel %vm1105, %v1308, 0.0
    %1323 = vadd.xlane.f32.xlu0 %v1322
    %v1324 = vpop.xlane.xlu0 %1323
    %v1325 = vsel %vm1105, %v1309, 0.0
    %1326 = vadd.xlane.f32.xlu0 %v1325
    %v1327 = vpop.xlane.xlu0 %1326
    %v1328 = vsel %vm1105, %v1310, 0.0
    %1329 = vadd.xlane.f32.xlu0 %v1328
    %v1330 = vpop.xlane.xlu0 %1329
    %v1331 = vsel %vm1105, %v1311, 0.0
    %1332 = vadd.xlane.f32.xlu0 %v1331
    %v1333 = vpop.xlane.xlu0 %1332
    %v1334 = vsel %vm1105, %v1312, 0.0
    %1335 = vadd.xlane.f32.xlu0 %v1334
    %v1336 = vpop.xlane.xlu0 %1335
    %v1337 = vadd.f32 %v1315, %v1304
    %v1338 = vadd.f32 %v1318, %v1304
    %v1339 = vadd.f32 %v1321, %v1304
    %v1340 = vadd.f32 %v1324, %v1304
    %v1341 = vadd.f32 %v1327, %v1304
    %v1342 = vadd.f32 %v1330, %v1304
    %v1343 = vadd.f32 %v1333, %v1304
    %v1344 = vadd.f32 %v1336, %v1304
    %v1346 = vsel %vm1105, %v960, 0
    %v1349 = vsel %vm1105, %v961, 0
    %v1352 = vsel %vm1105, %v962, 0
    %v1355 = vsel %vm1105, %v963, 0
    %v1358 = vsel %vm1105, %v964, 0
    %v1361 = vsel %vm1105, %v965, 0
    %v1364 = vsel %vm1105, %v966, 0
    %v1367 = vsel %vm1105, %v967, 0
    %1369 = vmatprep.subr.mxu0 0.0
    %1370 = vmatpush1.msra.mxu0 %v1291
    %1371 = vmatprep.subr.mxu0 0.0
    %1372 = vmatpush1.msra.mxu0 %v1292
    %1373 = vmatprep.subr.mxu0 0.0
    %1374 = vmatpush1.msra.mxu0 0.0
    %1375 = vmatprep.subr.mxu0 0.0
    %1376 = vmatpush1.msra.mxu0 0.0
    %1377 = vmatprep.subr.mxu0 0.0
    %1378 = vmatpush1.msra.mxu0 0.0
    %1379 = vmatprep.subr.mxu0 0.0
    %1380 = vmatpush1.msra.mxu0 0.0
    %1381 = vmatprep.subr.mxu0 0.0
    %1382 = vmatpush1.msra.mxu0 0.0
    %1383 = vmatprep.subr.mxu0 0.0
    %1384 = vmatpush1.msra.mxu0 0.0
    %1385 = vmatprep.subr.mxu0 0.0
    %1386 = vmatpush1.msra.mxu0 0.0
    %1387 = vmatprep.subr.mxu0 0.0
    %1388 = vmatpush1.msra.mxu0 0.0
    %1389 = vmatprep.subr.mxu0 0.0
    %1390 = vmatpush1.msra.mxu0 0.0
    %1391 = vmatprep.subr.mxu0 0.0
    %1392 = vmatpush1.msra.mxu0 0.0
    %1393 = vmatprep.subr.mxu0 0.0
    %1394 = vmatpush1.msra.mxu0 0.0
    %1395 = vmatprep.subr.mxu0 0.0
    %1396 = vmatpush1.msra.mxu0 0.0
    %1397 = vmatprep.subr.mxu0 0.0
    %1398 = vmatpush1.msra.mxu0 0.0
    %1399 = vmatprep.subr.mxu0 0.0
    %1400 = vmatpush1.msra.mxu0 0.0
    %1401 = vmatprep.subr.mxu0 0.0
    %1402 = vmatpush1.msra.mxu0 0.0
    %1403 = vmatprep.subr.mxu0 0.0
    %1404 = vmatpush1.msra.mxu0 0.0
    %1405 = vmatprep.subr.mxu0 0.0
    %1406 = vmatpush1.msra.mxu0 0.0
    %1407 = vmatprep.subr.mxu0 0.0
    %1408 = vmatpush1.msra.mxu0 0.0
    %1409 = vmatprep.subr.mxu0 0.0
    %1410 = vmatpush1.msra.mxu0 0.0
    %1411 = vmatprep.subr.mxu0 0.0
    %1412 = vmatpush1.msra.mxu0 0.0
    %1413 = vmatprep.subr.mxu0 0.0
    %1414 = vmatpush1.msra.mxu0 0.0
    %1415 = vmatprep.subr.mxu0 0.0
    %1416 = vmatpush1.msra.mxu0 0.0
    %1417 = vmatprep.subr.mxu0 0.0
    %1418 = vmatpush1.msra.mxu0 0.0
    %1419 = vmatprep.subr.mxu0 0.0
    %1420 = vmatpush1.msra.mxu0 0.0
    %1421 = vmatprep.subr.mxu0 0.0
    %1422 = vmatpush1.msra.mxu0 0.0
    %1423 = vmatprep.subr.mxu0 0.0
    %1424 = vmatpush1.msra.mxu0 0.0
    %1425 = vmatprep.subr.mxu0 0.0
    %1426 = vmatpush1.msra.mxu0 0.0
    %1427 = vmatprep.subr.mxu0 0.0
    %1428 = vmatpush1.msra.mxu0 0.0
    %1429 = vmatprep.subr.mxu0 0.0
    %1430 = vmatpush1.msra.mxu0 0.0
    %1431 = vmatprep.subr.mxu0 0.0
    %1432 = vmatpush1.msra.mxu0 0.0
    %1433 = vmatprep.mubr.f32.mxu0 0.0
    %1434 = vmatmul.mubr.f32.gmra.mrb[0].mxu0 %v1346
    %v1435 = vpop.f32.mrb[0].mxu0
    %v1436 = vadd.f32 0.0, %v1435
    %v1437 = vpop.f32.mrb[0].mxu0
    %1438 = vmatprep.mubr.f32.mxu0 0.0
    %1439 = vmatmul.mubr.f32.gmra.mrb[0].mxu0 %v1349
    %v1440 = vpop.f32.mrb[0].mxu0
    %v1441 = vadd.f32 0.0, %v1440
    %v1442 = vpop.f32.mrb[0].mxu0
    %1443 = vmatprep.mubr.f32.mxu0 0.0
    %1444 = vmatmul.mubr.f32.gmra.mrb[0].mxu0 %v1352
    %v1445 = vpop.f32.mrb[0].mxu0
    %v1446 = vadd.f32 0.0, %v1445
    %v1447 = vpop.f32.mrb[0].mxu0
    %1448 = vmatprep.mubr.f32.mxu0 0.0
    %1449 = vmatmul.mubr.f32.gmra.mrb[0].mxu0 %v1355
    %v1450 = vpop.f32.mrb[0].mxu0
    %v1451 = vadd.f32 0.0, %v1450
    %v1452 = vpop.f32.mrb[0].mxu0
    %1453 = vmatprep.mubr.f32.mxu0 0.0
    %1454 = vmatmul.mubr.f32.gmra.mrb[0].mxu0 %v1358
    %v1455 = vpop.f32.mrb[0].mxu0
    %v1456 = vadd.f32 0.0, %v1455
    %v1457 = vpop.f32.mrb[0].mxu0
    %1458 = vmatprep.mubr.f32.mxu0 0.0
    %1459 = vmatmul.mubr.f32.gmra.mrb[0].mxu0 %v1361
    %v1460 = vpop.f32.mrb[0].mxu0
    %v1461 = vadd.f32 0.0, %v1460
    %v1462 = vpop.f32.mrb[0].mxu0
    %1463 = vmatprep.mubr.f32.mxu0 0.0
    %1464 = vmatmul.mubr.f32.gmra.mrb[0].mxu0 %v1364
    %v1465 = vpop.f32.mrb[0].mxu0
    %v1466 = vadd.f32 0.0, %v1465
    %v1467 = vpop.f32.mrb[0].mxu0
    %1468 = vmatprep.mubr.f32.mxu0 0.0
    %1469 = vmatmul.mubr.f32.gmra.mrb[0].mxu0 %v1367
    %v1470 = vpop.f32.mrb[0].mxu0
    %v1471 = vadd.f32 0.0, %v1470
    %v1472 = vpop.f32.mrb[0].mxu0
    %1473 = vdwg.mxu0
    %v1474 = vmul.f32 %v1436, 2.0
    %v1475 = vmul.f32 %v1441, 2.0
    %v1476 = vmul.f32 %v1446, 2.0
    %v1477 = vmul.f32 %v1451, 2.0
    %v1478 = vmul.f32 %v1456, 2.0
    %v1479 = vmul.f32 %v1461, 2.0
    %v1480 = vmul.f32 %v1466, 2.0
    %v1481 = vmul.f32 %v1471, 2.0
    %v1482 = vsub.f32 %v1337, %v1474
    %v1483 = vsub.f32 %v1338, %v1475
    %v1484 = vsub.f32 %v1339, %v1476
    %v1485 = vsub.f32 %v1340, %v1477
    %v1486 = vsub.f32 %v1341, %v1478
    %v1487 = vsub.f32 %v1342, %v1479
    %v1488 = vsub.f32 %v1343, %v1480
    %v1489 = vsub.f32 %v1344, %v1481
    %v1490 = vmax.f32 %v1482, 0.0
    %v1491 = vmax.f32 %v1483, 0.0
    %v1492 = vmax.f32 %v1484, 0.0
    %v1493 = vmax.f32 %v1485, 0.0
    %v1494 = vmax.f32 %v1486, 0.0
    %v1495 = vmax.f32 %v1487, 0.0
    %v1496 = vmax.f32 %v1488, 0.0
    %v1497 = vmax.f32 %v1489, 0.0
    %v1498 = vadd.f32 %v1490, 1.0
    %v1499 = vadd.f32 %v1491, 1.0
    %v1500 = vadd.f32 %v1492, 1.0
    %v1501 = vadd.f32 %v1493, 1.0
    %v1502 = vadd.f32 %v1494, 1.0
    %v1503 = vadd.f32 %v1495, 1.0
    %v1504 = vadd.f32 %v1496, 1.0
    %v1505 = vadd.f32 %v1497, 1.0
    %v1506 = vrcp.pop %v1498
    %v1507 = vrcp.pop %v1499
    %v1508 = vrcp.pop %v1500
    %v1509 = vrcp.pop %v1501
    %v1510 = vrcp.pop %v1502
    %v1511 = vrcp.pop %v1503
    %v1512 = vrcp.pop %v1504
    %v1513 = vrcp.pop %v1505
    %v1514 = vsel %vm1295, %v1506, 0.0
    %1515 = vadd.xlane.f32.xlu0 %v1514
    %v1516 = vpop.xlane.xlu0 %1515
    %v1517 = vsel %vm1295, %v1507, 0.0
    %1518 = vadd.xlane.f32.xlu0 %v1517
    %v1519 = vpop.xlane.xlu0 %1518
    %v1520 = vsel %vm1295, %v1508, 0.0
    %1521 = vadd.xlane.f32.xlu0 %v1520
    %v1522 = vpop.xlane.xlu0 %1521
    %v1523 = vsel %vm1295, %v1509, 0.0
    %1524 = vadd.xlane.f32.xlu0 %v1523
    %v1525 = vpop.xlane.xlu0 %1524
    %v1526 = vsel %vm1295, %v1510, 0.0
    %1527 = vadd.xlane.f32.xlu0 %v1526
    %v1528 = vpop.xlane.xlu0 %1527
    %v1529 = vsel %vm1295, %v1511, 0.0
    %1530 = vadd.xlane.f32.xlu0 %v1529
    %v1531 = vpop.xlane.xlu0 %1530
    %v1532 = vsel %vm1295, %v1512, 0.0
    %1533 = vadd.xlane.f32.xlu0 %v1532
    %v1534 = vpop.xlane.xlu0 %1533
    %v1535 = vsel %vm1295, %v1513, 0.0
    %1536 = vadd.xlane.f32.xlu0 %v1535
    %v1537 = vpop.xlane.xlu0 %1536
    %v1538 = vrcp.pop %v1516
    %v1539 = vrcp.pop %v1519
    %v1540 = vrcp.pop %v1522
    %v1541 = vrcp.pop %v1525
    %v1542 = vrcp.pop %v1528
    %v1543 = vrcp.pop %v1531
    %v1544 = vrcp.pop %v1534
    %v1545 = vrcp.pop %v1537
    %v1546 = vmul.f32 %v1506, %v1538
    %v1547 = vmul.f32 %v1507, %v1539
    %v1548 = vmul.f32 %v1508, %v1540
    %v1549 = vmul.f32 %v1509, %v1541
    %v1550 = vmul.f32 %v1510, %v1542
    %v1551 = vmul.f32 %v1511, %v1543
    %v1552 = vmul.f32 %v1512, %v1544
    %v1553 = vmul.f32 %v1513, %v1545
    %1554 = vst.msk [vmem:[%s22] sm:$0xff] %vm1295, %v1546
    %1555 = vst.msk [vmem:[%s22 + $0x8] sm:$0xff] %vm1295, %v1547
    %1556 = vst.msk [vmem:[%s22 + $0x10] sm:$0xff] %vm1295, %v1548
    %1557 = vst.msk [vmem:[%s22 + $0x18] sm:$0xff] %vm1295, %v1549
    %1558 = vst.msk [vmem:[%s22 + $0x20] sm:$0xff] %vm1295, %v1550
    %1559 = vst.msk [vmem:[%s22 + $0x28] sm:$0xff] %vm1295, %v1551
    %1560 = vst.msk [vmem:[%s22 + $0x30] sm:$0xff] %vm1295, %v1552
    %1561 = vst.msk [vmem:[%s22 + $0x38] sm:$0xff] %vm1295, %v1553
    %v1562 = vmul.f32 %v1067, %v1067
    %v1563 = vmul.f32 %v1072, %v1072
    %v1564 = vmul.f32 %v1077, %v1077
    %v1565 = vmul.f32 %v1082, %v1082
    %v1566 = vmul.f32 %v1087, %v1087
    %v1567 = vmul.f32 %v1092, %v1092
    %v1568 = vmul.f32 %v1097, %v1097
    %v1569 = vmul.f32 %v1102, %v1102
    %v1570 = vsel %vm1105, %v1562, 0.0
    %1571 = vadd.xlane.f32.xlu0 %v1570
    %v1572 = vpop.xlane.xlu0 %1571
    %v1573 = vsel %vm1105, %v1563, 0.0
    %1574 = vadd.xlane.f32.xlu0 %v1573
    %v1575 = vpop.xlane.xlu0 %1574
    %v1576 = vsel %vm1105, %v1564, 0.0
    %1577 = vadd.xlane.f32.xlu0 %v1576
    %v1578 = vpop.xlane.xlu0 %1577
    %v1579 = vsel %vm1105, %v1565, 0.0
    %1580 = vadd.xlane.f32.xlu0 %v1579
    %v1581 = vpop.xlane.xlu0 %1580
    %v1582 = vsel %vm1105, %v1566, 0.0
    %1583 = vadd.xlane.f32.xlu0 %v1582
    %v1584 = vpop.xlane.xlu0 %1583
    %v1585 = vsel %vm1105, %v1567, 0.0
    %1586 = vadd.xlane.f32.xlu0 %v1585
    %v1587 = vpop.xlane.xlu0 %1586
    %v1588 = vsel %vm1105, %v1568, 0.0
    %1589 = vadd.xlane.f32.xlu0 %v1588
    %v1590 = vpop.xlane.xlu0 %1589
    %v1591 = vsel %vm1105, %v1569, 0.0
    %1592 = vadd.xlane.f32.xlu0 %v1591
    %v1593 = vpop.xlane.xlu0 %1592
    %v1594 = vadd.f32 %v1572, %v1304
    %v1595 = vadd.f32 %v1575, %v1304
    %v1596 = vadd.f32 %v1578, %v1304
    %v1597 = vadd.f32 %v1581, %v1304
    %v1598 = vadd.f32 %v1584, %v1304
    %v1599 = vadd.f32 %v1587, %v1304
    %v1600 = vadd.f32 %v1590, %v1304
    %v1601 = vadd.f32 %v1593, %v1304
    %1602 = vmatprep.subr.mxu0 0.0
    %1603 = vmatpush1.msra.mxu0 %v1291
    %1604 = vmatprep.subr.mxu0 0.0
    %1605 = vmatpush1.msra.mxu0 %v1292
    %1606 = vmatprep.subr.mxu0 0.0
    %1607 = vmatpush1.msra.mxu0 0.0
    %1608 = vmatprep.subr.mxu0 0.0
    %1609 = vmatpush1.msra.mxu0 0.0
    %1610 = vmatprep.subr.mxu0 0.0
    %1611 = vmatpush1.msra.mxu0 0.0
    %1612 = vmatprep.subr.mxu0 0.0
    %1613 = vmatpush1.msra.mxu0 0.0
    %1614 = vmatprep.subr.mxu0 0.0
    %1615 = vmatpush1.msra.mxu0 0.0
    %1616 = vmatprep.subr.mxu0 0.0
    %1617 = vmatpush1.msra.mxu0 0.0
    %1618 = vmatprep.subr.mxu0 0.0
    %1619 = vmatpush1.msra.mxu0 0.0
    %1620 = vmatprep.subr.mxu0 0.0
    %1621 = vmatpush1.msra.mxu0 0.0
    %1622 = vmatprep.subr.mxu0 0.0
    %1623 = vmatpush1.msra.mxu0 0.0
    %1624 = vmatprep.subr.mxu0 0.0
    %1625 = vmatpush1.msra.mxu0 0.0
    %1626 = vmatprep.subr.mxu0 0.0
    %1627 = vmatpush1.msra.mxu0 0.0
    %1628 = vmatprep.subr.mxu0 0.0
    %1629 = vmatpush1.msra.mxu0 0.0
    %1630 = vmatprep.subr.mxu0 0.0
    %1631 = vmatpush1.msra.mxu0 0.0
    %1632 = vmatprep.subr.mxu0 0.0
    %1633 = vmatpush1.msra.mxu0 0.0
    %1634 = vmatprep.subr.mxu0 0.0
    %1635 = vmatpush1.msra.mxu0 0.0
    %1636 = vmatprep.subr.mxu0 0.0
    %1637 = vmatpush1.msra.mxu0 0.0
    %1638 = vmatprep.subr.mxu0 0.0
    %1639 = vmatpush1.msra.mxu0 0.0
    %1640 = vmatprep.subr.mxu0 0.0
    %1641 = vmatpush1.msra.mxu0 0.0
    %1642 = vmatprep.subr.mxu0 0.0
    %1643 = vmatpush1.msra.mxu0 0.0
    %1644 = vmatprep.subr.mxu0 0.0
    %1645 = vmatpush1.msra.mxu0 0.0
    %1646 = vmatprep.subr.mxu0 0.0
    %1647 = vmatpush1.msra.mxu0 0.0
    %1648 = vmatprep.subr.mxu0 0.0
    %1649 = vmatpush1.msra.mxu0 0.0
    %1650 = vmatprep.subr.mxu0 0.0
    %1651 = vmatpush1.msra.mxu0 0.0
    %1652 = vmatprep.subr.mxu0 0.0
    %1653 = vmatpush1.msra.mxu0 0.0
    %1654 = vmatprep.subr.mxu0 0.0
    %1655 = vmatpush1.msra.mxu0 0.0
    %1656 = vmatprep.subr.mxu0 0.0
    %1657 = vmatpush1.msra.mxu0 0.0
    %1658 = vmatprep.subr.mxu0 0.0
    %1659 = vmatpush1.msra.mxu0 0.0
    %1660 = vmatprep.subr.mxu0 0.0
    %1661 = vmatpush1.msra.mxu0 0.0
    %1662 = vmatprep.subr.mxu0 0.0
    %1663 = vmatpush1.msra.mxu0 0.0
    %1664 = vmatprep.subr.mxu0 0.0
    %1665 = vmatpush1.msra.mxu0 0.0
    %1666 = vmatprep.mubr.f32.mxu0 0.0
    %1667 = vmatmul.mubr.f32.gmra.mrb[0].mxu0 %v1107
    %v1668 = vpop.f32.mrb[0].mxu0
    %v1669 = vadd.f32 0.0, %v1668
    %v1670 = vpop.f32.mrb[0].mxu0
    %1671 = vmatprep.mubr.f32.mxu0 0.0
    %1672 = vmatmul.mubr.f32.gmra.mrb[0].mxu0 %v1110
    %v1673 = vpop.f32.mrb[0].mxu0
    %v1674 = vadd.f32 0.0, %v1673
    %v1675 = vpop.f32.mrb[0].mxu0
    %1676 = vmatprep.mubr.f32.mxu0 0.0
    %1677 = vmatmul.mubr.f32.gmra.mrb[0].mxu0 %v1113
    %v1678 = vpop.f32.mrb[0].mxu0
    %v1679 = vadd.f32 0.0, %v1678
    %v1680 = vpop.f32.mrb[0].mxu0
    %1681 = vmatprep.mubr.f32.mxu0 0.0
    %1682 = vmatmul.mubr.f32.gmra.mrb[0].mxu0 %v1116
    %v1683 = vpop.f32.mrb[0].mxu0
    %v1684 = vadd.f32 0.0, %v1683
    %v1685 = vpop.f32.mrb[0].mxu0
    %1686 = vmatprep.mubr.f32.mxu0 0.0
    %1687 = vmatmul.mubr.f32.gmra.mrb[0].mxu0 %v1119
    %v1688 = vpop.f32.mrb[0].mxu0
    %v1689 = vadd.f32 0.0, %v1688
    %v1690 = vpop.f32.mrb[0].mxu0
    %1691 = vmatprep.mubr.f32.mxu0 0.0
    %1692 = vmatmul.mubr.f32.gmra.mrb[0].mxu0 %v1122
    %v1693 = vpop.f32.mrb[0].mxu0
    %v1694 = vadd.f32 0.0, %v1693
    %v1695 = vpop.f32.mrb[0].mxu0
    %1696 = vmatprep.mubr.f32.mxu0 0.0
    %1697 = vmatmul.mubr.f32.gmra.mrb[0].mxu0 %v1125
    %v1698 = vpop.f32.mrb[0].mxu0
    %v1699 = vadd.f32 0.0, %v1698
    %v1700 = vpop.f32.mrb[0].mxu0
    %1701 = vmatprep.mubr.f32.mxu0 0.0
    %1702 = vmatmul.mubr.f32.gmra.mrb[0].mxu0 %v1128
    %v1703 = vpop.f32.mrb[0].mxu0
    %v1704 = vadd.f32 0.0, %v1703
    %v1705 = vpop.f32.mrb[0].mxu0
    %1706 = vdwg.mxu0
    %v1707 = vmul.f32 %v1669, 2.0
    %v1708 = vmul.f32 %v1674, 2.0
    %v1709 = vmul.f32 %v1679, 2.0
    %v1710 = vmul.f32 %v1684, 2.0
    %v1711 = vmul.f32 %v1689, 2.0
    %v1712 = vmul.f32 %v1694, 2.0
    %v1713 = vmul.f32 %v1699, 2.0
    %v1714 = vmul.f32 %v1704, 2.0
    %v1715 = vsub.f32 %v1594, %v1707
    %v1716 = vsub.f32 %v1595, %v1708
    %v1717 = vsub.f32 %v1596, %v1709
    %v1718 = vsub.f32 %v1597, %v1710
    %v1719 = vsub.f32 %v1598, %v1711
    %v1720 = vsub.f32 %v1599, %v1712
    %v1721 = vsub.f32 %v1600, %v1713
    %v1722 = vsub.f32 %v1601, %v1714
    %v1723 = vmax.f32 %v1715, 0.0
    %v1724 = vmax.f32 %v1716, 0.0
    %v1725 = vmax.f32 %v1717, 0.0
    %v1726 = vmax.f32 %v1718, 0.0
    %v1727 = vmax.f32 %v1719, 0.0
    %v1728 = vmax.f32 %v1720, 0.0
    %v1729 = vmax.f32 %v1721, 0.0
    %v1730 = vmax.f32 %v1722, 0.0
    %v1731 = vadd.f32 %v1723, 1.0
    %v1732 = vadd.f32 %v1724, 1.0
    %v1733 = vadd.f32 %v1725, 1.0
    %v1734 = vadd.f32 %v1726, 1.0
    %v1735 = vadd.f32 %v1727, 1.0
    %v1736 = vadd.f32 %v1728, 1.0
    %v1737 = vadd.f32 %v1729, 1.0
    %v1738 = vadd.f32 %v1730, 1.0
    %v1739 = vrcp.pop %v1731
    %v1740 = vrcp.pop %v1732
    %v1741 = vrcp.pop %v1733
    %v1742 = vrcp.pop %v1734
    %v1743 = vrcp.pop %v1735
    %v1744 = vrcp.pop %v1736
    %v1745 = vrcp.pop %v1737
    %v1746 = vrcp.pop %v1738
    %v1747 = vsel %vm1295, %v1739, 0.0
    %1748 = vadd.xlane.f32.xlu0 %v1747
    %v1749 = vpop.xlane.xlu0 %1748
    %v1750 = vsel %vm1295, %v1740, 0.0
    %1751 = vadd.xlane.f32.xlu0 %v1750
    %v1752 = vpop.xlane.xlu0 %1751
    %v1753 = vsel %vm1295, %v1741, 0.0
    %1754 = vadd.xlane.f32.xlu0 %v1753
    %v1755 = vpop.xlane.xlu0 %1754
    %v1756 = vsel %vm1295, %v1742, 0.0
    %1757 = vadd.xlane.f32.xlu0 %v1756
    %v1758 = vpop.xlane.xlu0 %1757
    %v1759 = vsel %vm1295, %v1743, 0.0
    %1760 = vadd.xlane.f32.xlu0 %v1759
    %v1761 = vpop.xlane.xlu0 %1760
    %v1762 = vsel %vm1295, %v1744, 0.0
    %1763 = vadd.xlane.f32.xlu0 %v1762
    %v1764 = vpop.xlane.xlu0 %1763
    %v1765 = vsel %vm1295, %v1745, 0.0
    %1766 = vadd.xlane.f32.xlu0 %v1765
    %v1767 = vpop.xlane.xlu0 %1766
    %v1768 = vsel %vm1295, %v1746, 0.0
    %1769 = vadd.xlane.f32.xlu0 %v1768
    %v1770 = vpop.xlane.xlu0 %1769
    %v1771 = vrcp.pop %v1749
    %v1772 = vrcp.pop %v1752
    %v1773 = vrcp.pop %v1755
    %v1774 = vrcp.pop %v1758
    %v1775 = vrcp.pop %v1761
    %v1776 = vrcp.pop %v1764
    %v1777 = vrcp.pop %v1767
    %v1778 = vrcp.pop %v1770
    %v1779 = vmul.f32 %v1739, %v1771
    %v1780 = vmul.f32 %v1740, %v1772
    %v1781 = vmul.f32 %v1741, %v1773
    %v1782 = vmul.f32 %v1742, %v1774
    %v1783 = vmul.f32 %v1743, %v1775
    %v1784 = vmul.f32 %v1744, %v1776
    %v1785 = vmul.f32 %v1745, %v1777
    %v1786 = vmul.f32 %v1746, %v1778
    %1787 = vst.msk [vmem:[%s23] sm:$0xff] %vm1295, %v1779
    %1788 = vst.msk [vmem:[%s23 + $0x8] sm:$0xff] %vm1295, %v1780
    %1789 = vst.msk [vmem:[%s23 + $0x10] sm:$0xff] %vm1295, %v1781
    %1790 = vst.msk [vmem:[%s23 + $0x18] sm:$0xff] %vm1295, %v1782
    %1791 = vst.msk [vmem:[%s23 + $0x20] sm:$0xff] %vm1295, %v1783
    %1792 = vst.msk [vmem:[%s23 + $0x28] sm:$0xff] %vm1295, %v1784
    %1793 = vst.msk [vmem:[%s23 + $0x30] sm:$0xff] %vm1295, %v1785
    %1794 = vst.msk [vmem:[%s23 + $0x38] sm:$0xff] %vm1295, %v1786
    %v1795 = vld [vmem:[%s12] sm:$0xff]
    %v1796 = vld [vmem:[%s12 + $0x8] sm:$0xff]
    %v1797 = vld [vmem:[%s12 + $0x10] sm:$0xff]
    %v1798 = vld [vmem:[%s12 + $0x18] sm:$0xff]
    %v1799 = vld [vmem:[%s12 + $0x20] sm:$0xff]
    %v1800 = vld [vmem:[%s12 + $0x28] sm:$0xff]
    %v1801 = vld [vmem:[%s12 + $0x30] sm:$0xff]
    %v1802 = vld [vmem:[%s12 + $0x38] sm:$0xff]
    %v1803 = vmul.f32 %v1795, %v960
    %v1804 = vmul.f32 %v1796, %v961
    %v1805 = vmul.f32 %v1797, %v962
    %v1806 = vmul.f32 %v1798, %v963
    %v1807 = vmul.f32 %v1799, %v964
    %v1808 = vmul.f32 %v1800, %v965
    %v1809 = vmul.f32 %v1801, %v966
    %v1810 = vmul.f32 %v1802, %v967
    %v1811 = vld [vmem:[%s13] sm:$0xff]
    %v1812 = vld [vmem:[%s13 + $0x8] sm:$0xff]
    %v1813 = vld [vmem:[%s13 + $0x10] sm:$0xff]
    %v1814 = vld [vmem:[%s13 + $0x18] sm:$0xff]
    %v1815 = vld [vmem:[%s13 + $0x20] sm:$0xff]
    %v1816 = vld [vmem:[%s13 + $0x28] sm:$0xff]
    %v1817 = vld [vmem:[%s13 + $0x30] sm:$0xff]
    %v1818 = vld [vmem:[%s13 + $0x38] sm:$0xff]
    %v1819 = vmul.f32 %v1811, %v1067
    %v1820 = vmul.f32 %v1812, %v1072
    %v1821 = vmul.f32 %v1813, %v1077
    %v1822 = vmul.f32 %v1814, %v1082
    %v1823 = vmul.f32 %v1815, %v1087
    %v1824 = vmul.f32 %v1816, %v1092
    %v1825 = vmul.f32 %v1817, %v1097
    %v1826 = vmul.f32 %v1818, %v1102
    %v1827 = vadd.f32 %v1803, %v1819
    %v1828 = vadd.f32 %v1804, %v1820
    %v1829 = vadd.f32 %v1805, %v1821
    %v1830 = vadd.f32 %v1806, %v1822
    %v1831 = vadd.f32 %v1807, %v1823
    %v1832 = vadd.f32 %v1808, %v1824
    %v1833 = vadd.f32 %v1809, %v1825
    %v1834 = vadd.f32 %v1810, %v1826
    %v1835 = vld [vmem:[%s2] sm:$0xff]
    %v1836 = vld [vmem:[%s2 + $0x8] sm:$0xff]
    %v1837 = vld [vmem:[%s2 + $0x10] sm:$0xff]
    %v1838 = vld [vmem:[%s2 + $0x18] sm:$0xff]
    %v1839 = vld [vmem:[%s2 + $0x20] sm:$0xff]
    %v1840 = vld [vmem:[%s2 + $0x28] sm:$0xff]
    %v1841 = vld [vmem:[%s2 + $0x30] sm:$0xff]
    %v1842 = vld [vmem:[%s2 + $0x38] sm:$0xff]
    %v1844 = vsel %vm295, %v1835, 0
    %v1847 = vsel %vm295, %v1836, 0
    %v1850 = vsel %vm295, %v1837, 0
    %v1853 = vsel %vm295, %v1838, 0
    %v1856 = vsel %vm295, %v1839, 0
    %v1859 = vsel %vm295, %v1840, 0
    %v1862 = vsel %vm295, %v1841, 0
    %v1865 = vsel %vm295, %v1842, 0
    %1867 = vmatprep.subr.mxu0 0.0
    %1868 = vmatpush1.msra.mxu0 %v1827
    %1869 = vmatprep.subr.mxu0 0.0
    %1870 = vmatpush1.msra.mxu0 %v1828
    %1871 = vmatprep.subr.mxu0 0.0
    %1872 = vmatpush1.msra.mxu0 %v1829
    %1873 = vmatprep.subr.mxu0 0.0
    %1874 = vmatpush1.msra.mxu0 %v1830
    %1875 = vmatprep.subr.mxu0 0.0
    %1876 = vmatpush1.msra.mxu0 %v1831
    %1877 = vmatprep.subr.mxu0 0.0
    %1878 = vmatpush1.msra.mxu0 %v1832
    %1879 = vmatprep.subr.mxu0 0.0
    %1880 = vmatpush1.msra.mxu0 %v1833
    %1881 = vmatprep.subr.mxu0 0.0
    %1882 = vmatpush1.msra.mxu0 %v1834
    %1883 = vmatprep.subr.mxu0 0.0
    %1884 = vmatpush1.msra.mxu0 0.0
    %1885 = vmatprep.subr.mxu0 0.0
    %1886 = vmatpush1.msra.mxu0 0.0
    %1887 = vmatprep.subr.mxu0 0.0
    %1888 = vmatpush1.msra.mxu0 0.0
    %1889 = vmatprep.subr.mxu0 0.0
    %1890 = vmatpush1.msra.mxu0 0.0
    %1891 = vmatprep.subr.mxu0 0.0
    %1892 = vmatpush1.msra.mxu0 0.0
    %1893 = vmatprep.subr.mxu0 0.0
    %1894 = vmatpush1.msra.mxu0 0.0
    %1895 = vmatprep.subr.mxu0 0.0
    %1896 = vmatpush1.msra.mxu0 0.0
    %1897 = vmatprep.subr.mxu0 0.0
    %1898 = vmatpush1.msra.mxu0 0.0
    %1899 = vmatprep.subr.mxu0 0.0
    %1900 = vmatpush1.msra.mxu0 0.0
    %1901 = vmatprep.subr.mxu0 0.0
    %1902 = vmatpush1.msra.mxu0 0.0
    %1903 = vmatprep.subr.mxu0 0.0
    %1904 = vmatpush1.msra.mxu0 0.0
    %1905 = vmatprep.subr.mxu0 0.0
    %1906 = vmatpush1.msra.mxu0 0.0
    %1907 = vmatprep.subr.mxu0 0.0
    %1908 = vmatpush1.msra.mxu0 0.0
    %1909 = vmatprep.subr.mxu0 0.0
    %1910 = vmatpush1.msra.mxu0 0.0
    %1911 = vmatprep.subr.mxu0 0.0
    %1912 = vmatpush1.msra.mxu0 0.0
    %1913 = vmatprep.subr.mxu0 0.0
    %1914 = vmatpush1.msra.mxu0 0.0
    %1915 = vmatprep.subr.mxu0 0.0
    %1916 = vmatpush1.msra.mxu0 0.0
    %1917 = vmatprep.subr.mxu0 0.0
    %1918 = vmatpush1.msra.mxu0 0.0
    %1919 = vmatprep.subr.mxu0 0.0
    %1920 = vmatpush1.msra.mxu0 0.0
    %1921 = vmatprep.subr.mxu0 0.0
    %1922 = vmatpush1.msra.mxu0 0.0
    %1923 = vmatprep.subr.mxu0 0.0
    %1924 = vmatpush1.msra.mxu0 0.0
    %1925 = vmatprep.subr.mxu0 0.0
    %1926 = vmatpush1.msra.mxu0 0.0
    %1927 = vmatprep.subr.mxu0 0.0
    %1928 = vmatpush1.msra.mxu0 0.0
    %1929 = vmatprep.subr.mxu0 0.0
    %1930 = vmatpush1.msra.mxu0 0.0
    %1931 = vmatprep.mubr.f32.mxu0 0.0
    %1932 = vmatmul.mubr.f32.gmra.mrb[0].mxu0 %v1844
    %v1933 = vpop.f32.mrb[0].mxu0
    %v1934 = vadd.f32 0.0, %v1933
    %v1935 = vpop.f32.mrb[0].mxu0
    %1936 = vmatprep.mubr.f32.mxu0 0.0
    %1937 = vmatmul.mubr.f32.gmra.mrb[0].mxu0 %v1847
    %v1938 = vpop.f32.mrb[0].mxu0
    %v1939 = vadd.f32 0.0, %v1938
    %v1940 = vpop.f32.mrb[0].mxu0
    %1941 = vmatprep.mubr.f32.mxu0 0.0
    %1942 = vmatmul.mubr.f32.gmra.mrb[0].mxu0 %v1850
    %v1943 = vpop.f32.mrb[0].mxu0
    %v1944 = vadd.f32 0.0, %v1943
    %v1945 = vpop.f32.mrb[0].mxu0
    %1946 = vmatprep.mubr.f32.mxu0 0.0
    %1947 = vmatmul.mubr.f32.gmra.mrb[0].mxu0 %v1853
    %v1948 = vpop.f32.mrb[0].mxu0
    %v1949 = vadd.f32 0.0, %v1948
    %v1950 = vpop.f32.mrb[0].mxu0
    %1951 = vmatprep.mubr.f32.mxu0 0.0
    %1952 = vmatmul.mubr.f32.gmra.mrb[0].mxu0 %v1856
    %v1953 = vpop.f32.mrb[0].mxu0
    %v1954 = vadd.f32 0.0, %v1953
    %v1955 = vpop.f32.mrb[0].mxu0
    %1956 = vmatprep.mubr.f32.mxu0 0.0
    %1957 = vmatmul.mubr.f32.gmra.mrb[0].mxu0 %v1859
    %v1958 = vpop.f32.mrb[0].mxu0
    %v1959 = vadd.f32 0.0, %v1958
    %v1960 = vpop.f32.mrb[0].mxu0
    %1961 = vmatprep.mubr.f32.mxu0 0.0
    %1962 = vmatmul.mubr.f32.gmra.mrb[0].mxu0 %v1862
    %v1963 = vpop.f32.mrb[0].mxu0
    %v1964 = vadd.f32 0.0, %v1963
    %v1965 = vpop.f32.mrb[0].mxu0
    %1966 = vmatprep.mubr.f32.mxu0 0.0
    %1967 = vmatmul.mubr.f32.gmra.mrb[0].mxu0 %v1865
    %v1968 = vpop.f32.mrb[0].mxu0
    %v1969 = vadd.f32 0.0, %v1968
    %v1970 = vpop.f32.mrb[0].mxu0
    %1971 = vdwg.mxu0
    %v1973 = vsel %vm1105, %v1934, 0
    %v1976 = vsel %vm1105, %v1939, 0
    %v1979 = vsel %vm1105, %v1944, 0
    %v1982 = vsel %vm1105, %v1949, 0
    %v1985 = vsel %vm1105, %v1954, 0
    %v1988 = vsel %vm1105, %v1959, 0
    %v1991 = vsel %vm1105, %v1964, 0
    %v1994 = vsel %vm1105, %v1969, 0
    %1996 = vmatprep.subr.mxu0 0.0
    %1997 = vmatpush1.xpose.msra.mxu0 %v1973
    %1998 = vmatprep.subr.mxu0 0.0
    %1999 = vmatpush1.xpose.msra.mxu0 %v1976
    %2000 = vmatprep.subr.mxu0 0.0
    %2001 = vmatpush1.xpose.msra.mxu0 %v1979
    %2002 = vmatprep.subr.mxu0 0.0
    %2003 = vmatpush1.xpose.msra.mxu0 %v1982
    %2004 = vmatprep.subr.mxu0 0.0
    %2005 = vmatpush1.xpose.msra.mxu0 %v1985
    %2006 = vmatprep.subr.mxu0 0.0
    %2007 = vmatpush1.xpose.msra.mxu0 %v1988
    %2008 = vmatprep.subr.mxu0 0.0
    %2009 = vmatpush1.xpose.msra.mxu0 %v1991
    %2010 = vmatprep.subr.mxu0 0.0
    %2011 = vmatpush1.xpose.msra.mxu0 %v1994
    %2012 = vmatprep.subr.mxu0 0.0
    %2013 = vmatpush1.xpose.msra.mxu0 0.0
    %2014 = vmatprep.subr.mxu0 0.0
    %2015 = vmatpush1.xpose.msra.mxu0 0.0
    %2016 = vmatprep.subr.mxu0 0.0
    %2017 = vmatpush1.xpose.msra.mxu0 0.0
    %2018 = vmatprep.subr.mxu0 0.0
    %2019 = vmatpush1.xpose.msra.mxu0 0.0
    %2020 = vmatprep.subr.mxu0 0.0
    %2021 = vmatpush1.xpose.msra.mxu0 0.0
    %2022 = vmatprep.subr.mxu0 0.0
    %2023 = vmatpush1.xpose.msra.mxu0 0.0
    %2024 = vmatprep.subr.mxu0 0.0
    %2025 = vmatpush1.xpose.msra.mxu0 0.0
    %2026 = vmatprep.subr.mxu0 0.0
    %2027 = vmatpush1.xpose.msra.mxu0 0.0
    %2028 = vmatprep.subr.mxu0 0.0
    %2029 = vmatpush1.xpose.msra.mxu0 0.0
    %2030 = vmatprep.subr.mxu0 0.0
    %2031 = vmatpush1.xpose.msra.mxu0 0.0
    %2032 = vmatprep.subr.mxu0 0.0
    %2033 = vmatpush1.xpose.msra.mxu0 0.0
    %2034 = vmatprep.subr.mxu0 0.0
    %2035 = vmatpush1.xpose.msra.mxu0 0.0
    %2036 = vmatprep.subr.mxu0 0.0
    %2037 = vmatpush1.xpose.msra.mxu0 0.0
    %2038 = vmatprep.subr.mxu0 0.0
    %2039 = vmatpush1.xpose.msra.mxu0 0.0
    %2040 = vmatprep.subr.mxu0 0.0
    %2041 = vmatpush1.xpose.msra.mxu0 0.0
    %2042 = vmatprep.subr.mxu0 0.0
    %2043 = vmatpush1.xpose.msra.mxu0 0.0
    %2044 = vmatprep.subr.mxu0 0.0
    %2045 = vmatpush1.xpose.msra.mxu0 0.0
    %2046 = vmatprep.subr.mxu0 0.0
    %2047 = vmatpush1.xpose.msra.mxu0 0.0
    %2048 = vmatprep.subr.mxu0 0.0
    %2049 = vmatpush1.xpose.msra.mxu0 0.0
    %2050 = vmatprep.subr.mxu0 0.0
    %2051 = vmatpush1.xpose.msra.mxu0 0.0
    %2052 = vmatprep.subr.mxu0 0.0
    %2053 = vmatpush1.xpose.msra.mxu0 0.0
    %2054 = vmatprep.subr.mxu0 0.0
    %2055 = vmatpush1.xpose.msra.mxu0 0.0
    %2056 = vmatprep.subr.mxu0 0.0
    %2057 = vmatpush1.xpose.msra.mxu0 0.0
    %2058 = vmatprep.subr.mxu0 0.0
    %2059 = vmatpush1.xpose.msra.mxu0 0.0
    %2060 = vmatprep.mubr.f32.mxu0 0.0
    %2061 = vmatmul.mubr.f32.gmra.mrb[0].mxu0 %v1973
    %v2062 = vpop.f32.mrb[0].mxu0
    %v2063 = vadd.f32 0.0, %v2062
    %v2064 = vpop.f32.mrb[0].mxu0
    %2065 = vmatprep.mubr.f32.mxu0 0.0
    %2066 = vmatmul.mubr.f32.gmra.mrb[0].mxu0 %v1976
    %v2067 = vpop.f32.mrb[0].mxu0
    %v2068 = vadd.f32 0.0, %v2067
    %v2069 = vpop.f32.mrb[0].mxu0
    %2070 = vmatprep.mubr.f32.mxu0 0.0
    %2071 = vmatmul.mubr.f32.gmra.mrb[0].mxu0 %v1979
    %v2072 = vpop.f32.mrb[0].mxu0
    %v2073 = vadd.f32 0.0, %v2072
    %v2074 = vpop.f32.mrb[0].mxu0
    %2075 = vmatprep.mubr.f32.mxu0 0.0
    %2076 = vmatmul.mubr.f32.gmra.mrb[0].mxu0 %v1982
    %v2077 = vpop.f32.mrb[0].mxu0
    %v2078 = vadd.f32 0.0, %v2077
    %v2079 = vpop.f32.mrb[0].mxu0
    %2080 = vmatprep.mubr.f32.mxu0 0.0
    %2081 = vmatmul.mubr.f32.gmra.mrb[0].mxu0 %v1985
    %v2082 = vpop.f32.mrb[0].mxu0
    %v2083 = vadd.f32 0.0, %v2082
    %v2084 = vpop.f32.mrb[0].mxu0
    %2085 = vmatprep.mubr.f32.mxu0 0.0
    %2086 = vmatmul.mubr.f32.gmra.mrb[0].mxu0 %v1988
    %v2087 = vpop.f32.mrb[0].mxu0
    %v2088 = vadd.f32 0.0, %v2087
    %v2089 = vpop.f32.mrb[0].mxu0
    %2090 = vmatprep.mubr.f32.mxu0 0.0
    %2091 = vmatmul.mubr.f32.gmra.mrb[0].mxu0 %v1991
    %v2092 = vpop.f32.mrb[0].mxu0
    %v2093 = vadd.f32 0.0, %v2092
    %v2094 = vpop.f32.mrb[0].mxu0
    %2095 = vmatprep.mubr.f32.mxu0 0.0
    %2096 = vmatmul.mubr.f32.gmra.mrb[0].mxu0 %v1994
    %v2097 = vpop.f32.mrb[0].mxu0
    %v2098 = vadd.f32 0.0, %v2097
    %v2099 = vpop.f32.mrb[0].mxu0
    %2100 = vdwg.mxu0
    %v2101 = vsel %vm295, %v2063, -inf
    %2102 = vmax.xlane.f32.xlu0 %v2101
    %v2103 = vpop.xlane.xlu0 %2102
    %v2104 = vsel %vm295, %v2068, -inf
    %2105 = vmax.xlane.f32.xlu0 %v2104
    %v2106 = vpop.xlane.xlu0 %2105
    %v2107 = vsel %vm295, %v2073, -inf
    %2108 = vmax.xlane.f32.xlu0 %v2107
    %v2109 = vpop.xlane.xlu0 %2108
    %v2110 = vsel %vm295, %v2078, -inf
    %2111 = vmax.xlane.f32.xlu0 %v2110
    %v2112 = vpop.xlane.xlu0 %2111
    %v2113 = vsel %vm295, %v2083, -inf
    %2114 = vmax.xlane.f32.xlu0 %v2113
    %v2115 = vpop.xlane.xlu0 %2114
    %v2116 = vsel %vm295, %v2088, -inf
    %2117 = vmax.xlane.f32.xlu0 %v2116
    %v2118 = vpop.xlane.xlu0 %2117
    %v2119 = vsel %vm295, %v2093, -inf
    %2120 = vmax.xlane.f32.xlu0 %v2119
    %v2121 = vpop.xlane.xlu0 %2120
    %v2122 = vsel %vm295, %v2098, -inf
    %2123 = vmax.xlane.f32.xlu0 %v2122
    %v2124 = vpop.xlane.xlu0 %2123
    %v2125 = vsub.f32 %v2063, %v2103
    %v2126 = vsub.f32 %v2068, %v2106
    %v2127 = vsub.f32 %v2073, %v2109
    %v2128 = vsub.f32 %v2078, %v2112
    %v2129 = vsub.f32 %v2083, %v2115
    %v2130 = vsub.f32 %v2088, %v2118
    %v2131 = vsub.f32 %v2093, %v2121
    %v2132 = vsub.f32 %v2098, %v2124
    %v2133 = vmul.f32 %v2125, 1.442695
    %v2134 = vpow.pop %v2133
    %v2135 = vmul.f32 %v2126, 1.442695
    %v2136 = vpow.pop %v2135
    %v2137 = vmul.f32 %v2127, 1.442695
    %v2138 = vpow.pop %v2137
    %v2139 = vmul.f32 %v2128, 1.442695
    %v2140 = vpow.pop %v2139
    %v2141 = vmul.f32 %v2129, 1.442695
    %v2142 = vpow.pop %v2141
    %v2143 = vmul.f32 %v2130, 1.442695
    %v2144 = vpow.pop %v2143
    %v2145 = vmul.f32 %v2131, 1.442695
    %v2146 = vpow.pop %v2145
    %v2147 = vmul.f32 %v2132, 1.442695
    %v2148 = vpow.pop %v2147
    %v2149 = vsel %vm295, %v2134, 0.0
    %2150 = vadd.xlane.f32.xlu0 %v2149
    %v2151 = vpop.xlane.xlu0 %2150
    %v2152 = vsel %vm295, %v2136, 0.0
    %2153 = vadd.xlane.f32.xlu0 %v2152
    %v2154 = vpop.xlane.xlu0 %2153
    %v2155 = vsel %vm295, %v2138, 0.0
    %2156 = vadd.xlane.f32.xlu0 %v2155
    %v2157 = vpop.xlane.xlu0 %2156
    %v2158 = vsel %vm295, %v2140, 0.0
    %2159 = vadd.xlane.f32.xlu0 %v2158
    %v2160 = vpop.xlane.xlu0 %2159
    %v2161 = vsel %vm295, %v2142, 0.0
    %2162 = vadd.xlane.f32.xlu0 %v2161
    %v2163 = vpop.xlane.xlu0 %2162
    %v2164 = vsel %vm295, %v2144, 0.0
    %2165 = vadd.xlane.f32.xlu0 %v2164
    %v2166 = vpop.xlane.xlu0 %2165
    %v2167 = vsel %vm295, %v2146, 0.0
    %2168 = vadd.xlane.f32.xlu0 %v2167
    %v2169 = vpop.xlane.xlu0 %2168
    %v2170 = vsel %vm295, %v2148, 0.0
    %2171 = vadd.xlane.f32.xlu0 %v2170
    %v2172 = vpop.xlane.xlu0 %2171
    %v2173 = vrcp.pop %v2151
    %v2174 = vrcp.pop %v2154
    %v2175 = vrcp.pop %v2157
    %v2176 = vrcp.pop %v2160
    %v2177 = vrcp.pop %v2163
    %v2178 = vrcp.pop %v2166
    %v2179 = vrcp.pop %v2169
    %v2180 = vrcp.pop %v2172
    %v2181 = vmul.f32 %v2134, %v2173
    %v2182 = vmul.f32 %v2136, %v2174
    %v2183 = vmul.f32 %v2138, %v2175
    %v2184 = vmul.f32 %v2140, %v2176
    %v2185 = vmul.f32 %v2142, %v2177
    %v2186 = vmul.f32 %v2144, %v2178
    %v2187 = vmul.f32 %v2146, %v2179
    %v2188 = vmul.f32 %v2148, %v2180
    %v2190 = vsel %vm295, %v2181, 0
    %v2193 = vsel %vm295, %v2182, 0
    %v2196 = vsel %vm295, %v2183, 0
    %v2199 = vsel %vm295, %v2184, 0
    %v2202 = vsel %vm295, %v2185, 0
    %v2205 = vsel %vm295, %v2186, 0
    %v2208 = vsel %vm295, %v2187, 0
    %v2211 = vsel %vm295, %v2188, 0
    %2213 = vmatprep.subr.mxu0 0.0
    %2214 = vmatpush1.msra.mxu0 %v1934
    %2215 = vmatprep.subr.mxu0 0.0
    %2216 = vmatpush1.msra.mxu0 %v1939
    %2217 = vmatprep.subr.mxu0 0.0
    %2218 = vmatpush1.msra.mxu0 %v1944
    %2219 = vmatprep.subr.mxu0 0.0
    %2220 = vmatpush1.msra.mxu0 %v1949
    %2221 = vmatprep.subr.mxu0 0.0
    %2222 = vmatpush1.msra.mxu0 %v1954
    %2223 = vmatprep.subr.mxu0 0.0
    %2224 = vmatpush1.msra.mxu0 %v1959
    %2225 = vmatprep.subr.mxu0 0.0
    %2226 = vmatpush1.msra.mxu0 %v1964
    %2227 = vmatprep.subr.mxu0 0.0
    %2228 = vmatpush1.msra.mxu0 %v1969
    %2229 = vmatprep.subr.mxu0 0.0
    %2230 = vmatpush1.msra.mxu0 0.0
    %2231 = vmatprep.subr.mxu0 0.0
    %2232 = vmatpush1.msra.mxu0 0.0
    %2233 = vmatprep.subr.mxu0 0.0
    %2234 = vmatpush1.msra.mxu0 0.0
    %2235 = vmatprep.subr.mxu0 0.0
    %2236 = vmatpush1.msra.mxu0 0.0
    %2237 = vmatprep.subr.mxu0 0.0
    %2238 = vmatpush1.msra.mxu0 0.0
    %2239 = vmatprep.subr.mxu0 0.0
    %2240 = vmatpush1.msra.mxu0 0.0
    %2241 = vmatprep.subr.mxu0 0.0
    %2242 = vmatpush1.msra.mxu0 0.0
    %2243 = vmatprep.subr.mxu0 0.0
    %2244 = vmatpush1.msra.mxu0 0.0
    %2245 = vmatprep.subr.mxu0 0.0
    %2246 = vmatpush1.msra.mxu0 0.0
    %2247 = vmatprep.subr.mxu0 0.0
    %2248 = vmatpush1.msra.mxu0 0.0
    %2249 = vmatprep.subr.mxu0 0.0
    %2250 = vmatpush1.msra.mxu0 0.0
    %2251 = vmatprep.subr.mxu0 0.0
    %2252 = vmatpush1.msra.mxu0 0.0
    %2253 = vmatprep.subr.mxu0 0.0
    %2254 = vmatpush1.msra.mxu0 0.0
    %2255 = vmatprep.subr.mxu0 0.0
    %2256 = vmatpush1.msra.mxu0 0.0
    %2257 = vmatprep.subr.mxu0 0.0
    %2258 = vmatpush1.msra.mxu0 0.0
    %2259 = vmatprep.subr.mxu0 0.0
    %2260 = vmatpush1.msra.mxu0 0.0
    %2261 = vmatprep.subr.mxu0 0.0
    %2262 = vmatpush1.msra.mxu0 0.0
    %2263 = vmatprep.subr.mxu0 0.0
    %2264 = vmatpush1.msra.mxu0 0.0
    %2265 = vmatprep.subr.mxu0 0.0
    %2266 = vmatpush1.msra.mxu0 0.0
    %2267 = vmatprep.subr.mxu0 0.0
    %2268 = vmatpush1.msra.mxu0 0.0
    %2269 = vmatprep.subr.mxu0 0.0
    %2270 = vmatpush1.msra.mxu0 0.0
    %2271 = vmatprep.subr.mxu0 0.0
    %2272 = vmatpush1.msra.mxu0 0.0
    %2273 = vmatprep.subr.mxu0 0.0
    %2274 = vmatpush1.msra.mxu0 0.0
    %2275 = vmatprep.subr.mxu0 0.0
    %2276 = vmatpush1.msra.mxu0 0.0
    %2277 = vmatprep.mubr.f32.mxu0 0.0
    %2278 = vmatmul.mubr.f32.gmra.mrb[0].mxu0 %v2190
    %v2279 = vpop.f32.mrb[0].mxu0
    %v2280 = vadd.f32 0.0, %v2279
    %v2281 = vpop.f32.mrb[0].mxu0
    %2282 = vmatprep.mubr.f32.mxu0 0.0
    %2283 = vmatmul.mubr.f32.gmra.mrb[0].mxu0 %v2193
    %v2284 = vpop.f32.mrb[0].mxu0
    %v2285 = vadd.f32 0.0, %v2284
    %v2286 = vpop.f32.mrb[0].mxu0
    %2287 = vmatprep.mubr.f32.mxu0 0.0
    %2288 = vmatmul.mubr.f32.gmra.mrb[0].mxu0 %v2196
    %v2289 = vpop.f32.mrb[0].mxu0
    %v2290 = vadd.f32 0.0, %v2289
    %v2291 = vpop.f32.mrb[0].mxu0
    %2292 = vmatprep.mubr.f32.mxu0 0.0
    %2293 = vmatmul.mubr.f32.gmra.mrb[0].mxu0 %v2199
    %v2294 = vpop.f32.mrb[0].mxu0
    %v2295 = vadd.f32 0.0, %v2294
    %v2296 = vpop.f32.mrb[0].mxu0
    %2297 = vmatprep.mubr.f32.mxu0 0.0
    %2298 = vmatmul.mubr.f32.gmra.mrb[0].mxu0 %v2202
    %v2299 = vpop.f32.mrb[0].mxu0
    %v2300 = vadd.f32 0.0, %v2299
    %v2301 = vpop.f32.mrb[0].mxu0
    %2302 = vmatprep.mubr.f32.mxu0 0.0
    %2303 = vmatmul.mubr.f32.gmra.mrb[0].mxu0 %v2205
    %v2304 = vpop.f32.mrb[0].mxu0
    %v2305 = vadd.f32 0.0, %v2304
    %v2306 = vpop.f32.mrb[0].mxu0
    %2307 = vmatprep.mubr.f32.mxu0 0.0
    %2308 = vmatmul.mubr.f32.gmra.mrb[0].mxu0 %v2208
    %v2309 = vpop.f32.mrb[0].mxu0
    %v2310 = vadd.f32 0.0, %v2309
    %v2311 = vpop.f32.mrb[0].mxu0
    %2312 = vmatprep.mubr.f32.mxu0 0.0
    %2313 = vmatmul.mubr.f32.gmra.mrb[0].mxu0 %v2211
    %v2314 = vpop.f32.mrb[0].mxu0
    %v2315 = vadd.f32 0.0, %v2314
    %v2316 = vpop.f32.mrb[0].mxu0
    %2317 = vdwg.mxu0
    %s2318 = sld [smem:[#allocation2]]
    %v2319 = vstv %s2318
    %v2320 = vmul.f32 %v2319, %v2280
    %v2321 = vmul.f32 %v2319, %v2285
    %v2322 = vmul.f32 %v2319, %v2290
    %v2323 = vmul.f32 %v2319, %v2295
    %v2324 = vmul.f32 %v2319, %v2300
    %v2325 = vmul.f32 %v2319, %v2305
    %v2326 = vmul.f32 %v2319, %v2310
    %v2327 = vmul.f32 %v2319, %v2315
    %v2328 = vadd.f32 %v2320, %v1934
    %v2329 = vadd.f32 %v2321, %v1939
    %v2330 = vadd.f32 %v2322, %v1944
    %v2331 = vadd.f32 %v2323, %v1949
    %v2332 = vadd.f32 %v2324, %v1954
    %v2333 = vadd.f32 %v2325, %v1959
    %v2334 = vadd.f32 %v2326, %v1964
    %v2335 = vadd.f32 %v2327, %v1969
    %2336 = vst.msk [vmem:[%s20] sm:$0xff] %vm1105, %v2328
    %2337 = vst.msk [vmem:[%s20 + $0x8] sm:$0xff] %vm1105, %v2329
    %2338 = vst.msk [vmem:[%s20 + $0x10] sm:$0xff] %vm1105, %v2330
    %2339 = vst.msk [vmem:[%s20 + $0x18] sm:$0xff] %vm1105, %v2331
    %2340 = vst.msk [vmem:[%s20 + $0x20] sm:$0xff] %vm1105, %v2332
    %2341 = vst.msk [vmem:[%s20 + $0x28] sm:$0xff] %vm1105, %v2333
    %2342 = vst.msk [vmem:[%s20 + $0x30] sm:$0xff] %vm1105, %v2334
    %2343 = vst.msk [vmem:[%s20 + $0x38] sm:$0xff] %vm1105, %v2335
    %v2344 = vmul.f32 %v2328, %v2328
    %v2345 = vmul.f32 %v2329, %v2329
    %v2346 = vmul.f32 %v2330, %v2330
    %v2347 = vmul.f32 %v2331, %v2331
    %v2348 = vmul.f32 %v2332, %v2332
    %v2349 = vmul.f32 %v2333, %v2333
    %v2350 = vmul.f32 %v2334, %v2334
    %v2351 = vmul.f32 %v2335, %v2335
    %v2352 = vsel %vm1105, %v2344, 0.0
    %2353 = vadd.xlane.f32.xlu0 %v2352
    %v2354 = vpop.xlane.xlu0 %2353
    %v2355 = vsel %vm1105, %v2345, 0.0
    %2356 = vadd.xlane.f32.xlu0 %v2355
    %v2357 = vpop.xlane.xlu0 %2356
    %v2358 = vsel %vm1105, %v2346, 0.0
    %2359 = vadd.xlane.f32.xlu0 %v2358
    %v2360 = vpop.xlane.xlu0 %2359
    %v2361 = vsel %vm1105, %v2347, 0.0
    %2362 = vadd.xlane.f32.xlu0 %v2361
    %v2363 = vpop.xlane.xlu0 %2362
    %v2364 = vsel %vm1105, %v2348, 0.0
    %2365 = vadd.xlane.f32.xlu0 %v2364
    %v2366 = vpop.xlane.xlu0 %2365
    %v2367 = vsel %vm1105, %v2349, 0.0
    %2368 = vadd.xlane.f32.xlu0 %v2367
    %v2369 = vpop.xlane.xlu0 %2368
    %v2370 = vsel %vm1105, %v2350, 0.0
    %2371 = vadd.xlane.f32.xlu0 %v2370
    %v2372 = vpop.xlane.xlu0 %2371
    %v2373 = vsel %vm1105, %v2351, 0.0
    %2374 = vadd.xlane.f32.xlu0 %v2373
    %v2375 = vpop.xlane.xlu0 %2374
    %v2376 = vadd.f32 %v2354, %v1304
    %v2377 = vadd.f32 %v2357, %v1304
    %v2378 = vadd.f32 %v2360, %v1304
    %v2379 = vadd.f32 %v2363, %v1304
    %v2380 = vadd.f32 %v2366, %v1304
    %v2381 = vadd.f32 %v2369, %v1304
    %v2382 = vadd.f32 %v2372, %v1304
    %v2383 = vadd.f32 %v2375, %v1304
    %v2385 = vsel %vm1105, %v2328, 0
    %v2388 = vsel %vm1105, %v2329, 0
    %v2391 = vsel %vm1105, %v2330, 0
    %v2394 = vsel %vm1105, %v2331, 0
    %v2397 = vsel %vm1105, %v2332, 0
    %v2400 = vsel %vm1105, %v2333, 0
    %v2403 = vsel %vm1105, %v2334, 0
    %v2406 = vsel %vm1105, %v2335, 0
    %2408 = vmatprep.subr.mxu0 0.0
    %2409 = vmatpush1.msra.mxu0 %v1291
    %2410 = vmatprep.subr.mxu0 0.0
    %2411 = vmatpush1.msra.mxu0 %v1292
    %2412 = vmatprep.subr.mxu0 0.0
    %2413 = vmatpush1.msra.mxu0 0.0
    %2414 = vmatprep.subr.mxu0 0.0
    %2415 = vmatpush1.msra.mxu0 0.0
    %2416 = vmatprep.subr.mxu0 0.0
    %2417 = vmatpush1.msra.mxu0 0.0
    %2418 = vmatprep.subr.mxu0 0.0
    %2419 = vmatpush1.msra.mxu0 0.0
    %2420 = vmatprep.subr.mxu0 0.0
    %2421 = vmatpush1.msra.mxu0 0.0
    %2422 = vmatprep.subr.mxu0 0.0
    %2423 = vmatpush1.msra.mxu0 0.0
    %2424 = vmatprep.subr.mxu0 0.0
    %2425 = vmatpush1.msra.mxu0 0.0
    %2426 = vmatprep.subr.mxu0 0.0
    %2427 = vmatpush1.msra.mxu0 0.0
    %2428 = vmatprep.subr.mxu0 0.0
    %2429 = vmatpush1.msra.mxu0 0.0
    %2430 = vmatprep.subr.mxu0 0.0
    %2431 = vmatpush1.msra.mxu0 0.0
    %2432 = vmatprep.subr.mxu0 0.0
    %2433 = vmatpush1.msra.mxu0 0.0
    %2434 = vmatprep.subr.mxu0 0.0
    %2435 = vmatpush1.msra.mxu0 0.0
    %2436 = vmatprep.subr.mxu0 0.0
    %2437 = vmatpush1.msra.mxu0 0.0
    %2438 = vmatprep.subr.mxu0 0.0
    %2439 = vmatpush1.msra.mxu0 0.0
    %2440 = vmatprep.subr.mxu0 0.0
    %2441 = vmatpush1.msra.mxu0 0.0
    %2442 = vmatprep.subr.mxu0 0.0
    %2443 = vmatpush1.msra.mxu0 0.0
    %2444 = vmatprep.subr.mxu0 0.0
    %2445 = vmatpush1.msra.mxu0 0.0
    %2446 = vmatprep.subr.mxu0 0.0
    %2447 = vmatpush1.msra.mxu0 0.0
    %2448 = vmatprep.subr.mxu0 0.0
    %2449 = vmatpush1.msra.mxu0 0.0
    %2450 = vmatprep.subr.mxu0 0.0
    %2451 = vmatpush1.msra.mxu0 0.0
    %2452 = vmatprep.subr.mxu0 0.0
    %2453 = vmatpush1.msra.mxu0 0.0
    %2454 = vmatprep.subr.mxu0 0.0
    %2455 = vmatpush1.msra.mxu0 0.0
    %2456 = vmatprep.subr.mxu0 0.0
    %2457 = vmatpush1.msra.mxu0 0.0
    %2458 = vmatprep.subr.mxu0 0.0
    %2459 = vmatpush1.msra.mxu0 0.0
    %2460 = vmatprep.subr.mxu0 0.0
    %2461 = vmatpush1.msra.mxu0 0.0
    %2462 = vmatprep.subr.mxu0 0.0
    %2463 = vmatpush1.msra.mxu0 0.0
    %2464 = vmatprep.subr.mxu0 0.0
    %2465 = vmatpush1.msra.mxu0 0.0
    %2466 = vmatprep.subr.mxu0 0.0
    %2467 = vmatpush1.msra.mxu0 0.0
    %2468 = vmatprep.subr.mxu0 0.0
    %2469 = vmatpush1.msra.mxu0 0.0
    %2470 = vmatprep.subr.mxu0 0.0
    %2471 = vmatpush1.msra.mxu0 0.0
    %2472 = vmatprep.mubr.f32.mxu0 0.0
    %2473 = vmatmul.mubr.f32.gmra.mrb[0].mxu0 %v2385
    %v2474 = vpop.f32.mrb[0].mxu0
    %v2475 = vadd.f32 0.0, %v2474
    %v2476 = vpop.f32.mrb[0].mxu0
    %2477 = vmatprep.mubr.f32.mxu0 0.0
    %2478 = vmatmul.mubr.f32.gmra.mrb[0].mxu0 %v2388
    %v2479 = vpop.f32.mrb[0].mxu0
    %v2480 = vadd.f32 0.0, %v2479
    %v2481 = vpop.f32.mrb[0].mxu0
    %2482 = vmatprep.mubr.f32.mxu0 0.0
    %2483 = vmatmul.mubr.f32.gmra.mrb[0].mxu0 %v2391
    %v2484 = vpop.f32.mrb[0].mxu0
    %v2485 = vadd.f32 0.0, %v2484
    %v2486 = vpop.f32.mrb[0].mxu0
    %2487 = vmatprep.mubr.f32.mxu0 0.0
    %2488 = vmatmul.mubr.f32.gmra.mrb[0].mxu0 %v2394
    %v2489 = vpop.f32.mrb[0].mxu0
    %v2490 = vadd.f32 0.0, %v2489
    %v2491 = vpop.f32.mrb[0].mxu0
    %2492 = vmatprep.mubr.f32.mxu0 0.0
    %2493 = vmatmul.mubr.f32.gmra.mrb[0].mxu0 %v2397
    %v2494 = vpop.f32.mrb[0].mxu0
    %v2495 = vadd.f32 0.0, %v2494
    %v2496 = vpop.f32.mrb[0].mxu0
    %2497 = vmatprep.mubr.f32.mxu0 0.0
    %2498 = vmatmul.mubr.f32.gmra.mrb[0].mxu0 %v2400
    %v2499 = vpop.f32.mrb[0].mxu0
    %v2500 = vadd.f32 0.0, %v2499
    %v2501 = vpop.f32.mrb[0].mxu0
    %2502 = vmatprep.mubr.f32.mxu0 0.0
    %2503 = vmatmul.mubr.f32.gmra.mrb[0].mxu0 %v2403
    %v2504 = vpop.f32.mrb[0].mxu0
    %v2505 = vadd.f32 0.0, %v2504
    %v2506 = vpop.f32.mrb[0].mxu0
    %2507 = vmatprep.mubr.f32.mxu0 0.0
    %2508 = vmatmul.mubr.f32.gmra.mrb[0].mxu0 %v2406
    %v2509 = vpop.f32.mrb[0].mxu0
    %v2510 = vadd.f32 0.0, %v2509
    %v2511 = vpop.f32.mrb[0].mxu0
    %2512 = vdwg.mxu0
    %v2513 = vmul.f32 %v2475, 2.0
    %v2514 = vmul.f32 %v2480, 2.0
    %v2515 = vmul.f32 %v2485, 2.0
    %v2516 = vmul.f32 %v2490, 2.0
    %v2517 = vmul.f32 %v2495, 2.0
    %v2518 = vmul.f32 %v2500, 2.0
    %v2519 = vmul.f32 %v2505, 2.0
    %v2520 = vmul.f32 %v2510, 2.0
    %v2521 = vsub.f32 %v2376, %v2513
    %v2522 = vsub.f32 %v2377, %v2514
    %v2523 = vsub.f32 %v2378, %v2515
    %v2524 = vsub.f32 %v2379, %v2516
    %v2525 = vsub.f32 %v2380, %v2517
    %v2526 = vsub.f32 %v2381, %v2518
    %v2527 = vsub.f32 %v2382, %v2519
    %v2528 = vsub.f32 %v2383, %v2520
    %v2529 = vmax.f32 %v2521, 0.0
    %v2530 = vmax.f32 %v2522, 0.0
    %v2531 = vmax.f32 %v2523, 0.0
    %v2532 = vmax.f32 %v2524, 0.0
    %v2533 = vmax.f32 %v2525, 0.0
    %v2534 = vmax.f32 %v2526, 0.0
    %v2535 = vmax.f32 %v2527, 0.0
    %v2536 = vmax.f32 %v2528, 0.0
    %v2537 = vadd.f32 %v2529, 1.0
    %v2538 = vadd.f32 %v2530, 1.0
    %v2539 = vadd.f32 %v2531, 1.0
    %v2540 = vadd.f32 %v2532, 1.0
    %v2541 = vadd.f32 %v2533, 1.0
    %v2542 = vadd.f32 %v2534, 1.0
    %v2543 = vadd.f32 %v2535, 1.0
    %v2544 = vadd.f32 %v2536, 1.0
    %v2545 = vrcp.pop %v2537
    %v2546 = vrcp.pop %v2538
    %v2547 = vrcp.pop %v2539
    %v2548 = vrcp.pop %v2540
    %v2549 = vrcp.pop %v2541
    %v2550 = vrcp.pop %v2542
    %v2551 = vrcp.pop %v2543
    %v2552 = vrcp.pop %v2544
    %v2553 = vsel %vm1295, %v2545, 0.0
    %2554 = vadd.xlane.f32.xlu0 %v2553
    %v2555 = vpop.xlane.xlu0 %2554
    %v2556 = vsel %vm1295, %v2546, 0.0
    %2557 = vadd.xlane.f32.xlu0 %v2556
    %v2558 = vpop.xlane.xlu0 %2557
    %v2559 = vsel %vm1295, %v2547, 0.0
    %2560 = vadd.xlane.f32.xlu0 %v2559
    %v2561 = vpop.xlane.xlu0 %2560
    %v2562 = vsel %vm1295, %v2548, 0.0
    %2563 = vadd.xlane.f32.xlu0 %v2562
    %v2564 = vpop.xlane.xlu0 %2563
    %v2565 = vsel %vm1295, %v2549, 0.0
    %2566 = vadd.xlane.f32.xlu0 %v2565
    %v2567 = vpop.xlane.xlu0 %2566
    %v2568 = vsel %vm1295, %v2550, 0.0
    %2569 = vadd.xlane.f32.xlu0 %v2568
    %v2570 = vpop.xlane.xlu0 %2569
    %v2571 = vsel %vm1295, %v2551, 0.0
    %2572 = vadd.xlane.f32.xlu0 %v2571
    %v2573 = vpop.xlane.xlu0 %2572
    %v2574 = vsel %vm1295, %v2552, 0.0
    %2575 = vadd.xlane.f32.xlu0 %v2574
    %v2576 = vpop.xlane.xlu0 %2575
    %v2577 = vrcp.pop %v2555
    %v2578 = vrcp.pop %v2558
    %v2579 = vrcp.pop %v2561
    %v2580 = vrcp.pop %v2564
    %v2581 = vrcp.pop %v2567
    %v2582 = vrcp.pop %v2570
    %v2583 = vrcp.pop %v2573
    %v2584 = vrcp.pop %v2576
    %v2585 = vmul.f32 %v2545, %v2577
    %v2586 = vmul.f32 %v2546, %v2578
    %v2587 = vmul.f32 %v2547, %v2579
    %v2588 = vmul.f32 %v2548, %v2580
    %v2589 = vmul.f32 %v2549, %v2581
    %v2590 = vmul.f32 %v2550, %v2582
    %v2591 = vmul.f32 %v2551, %v2583
    %v2592 = vmul.f32 %v2552, %v2584
    %2593 = vst.msk [vmem:[%s21] sm:$0xff] %vm1295, %v2585
    %2594 = vst.msk [vmem:[%s21 + $0x8] sm:$0xff] %vm1295, %v2586
    %2595 = vst.msk [vmem:[%s21 + $0x10] sm:$0xff] %vm1295, %v2587
    %2596 = vst.msk [vmem:[%s21 + $0x18] sm:$0xff] %vm1295, %v2588
    %2597 = vst.msk [vmem:[%s21 + $0x20] sm:$0xff] %vm1295, %v2589
    %2598 = vst.msk [vmem:[%s21 + $0x28] sm:$0xff] %vm1295, %v2590
    %2599 = vst.msk [vmem:[%s21 + $0x30] sm:$0xff] %vm1295, %v2591
    %2600 = vst.msk [vmem:[%s21 + $0x38] sm:$0xff] %vm1295, %v2592
    %v2601 = vld [vmem:[%s15] sm:$0xff]
    %v2602 = vld [vmem:[%s15 + $0x8] sm:$0xff]
    %v2603 = vld [vmem:[%s16] sm:$0x1]
    %v2605 = vlaneseq
    %v2606 = vshrl.u32 %v2605, 7
    %v2607 = vsub.s32 0, %v2606
    %v2608 = vrot.slane %v2603, %v2607
    %2610 = vmatprep.subr.mxu0 0.0
    %2611 = vmatpush1.msra.mxu0 %v2601
    %2612 = vmatprep.subr.mxu0 0.0
    %2613 = vmatpush1.msra.mxu0 %v2602
    %2614 = vmatprep.subr.mxu0 0.0
    %2615 = vmatpush1.msra.mxu0 0.0
    %2616 = vmatprep.subr.mxu0 0.0
    %2617 = vmatpush1.msra.mxu0 0.0
    %2618 = vmatprep.subr.mxu0 0.0
    %2619 = vmatpush1.msra.mxu0 0.0
    %2620 = vmatprep.subr.mxu0 0.0
    %2621 = vmatpush1.msra.mxu0 0.0
    %2622 = vmatprep.subr.mxu0 0.0
    %2623 = vmatpush1.msra.mxu0 0.0
    %2624 = vmatprep.subr.mxu0 0.0
    %2625 = vmatpush1.msra.mxu0 0.0
    %2626 = vmatprep.subr.mxu0 0.0
    %2627 = vmatpush1.msra.mxu0 0.0
    %2628 = vmatprep.subr.mxu0 0.0
    %2629 = vmatpush1.msra.mxu0 0.0
    %2630 = vmatprep.subr.mxu0 0.0
    %2631 = vmatpush1.msra.mxu0 0.0
    %2632 = vmatprep.subr.mxu0 0.0
    %2633 = vmatpush1.msra.mxu0 0.0
    %2634 = vmatprep.subr.mxu0 0.0
    %2635 = vmatpush1.msra.mxu0 0.0
    %2636 = vmatprep.subr.mxu0 0.0
    %2637 = vmatpush1.msra.mxu0 0.0
    %2638 = vmatprep.subr.mxu0 0.0
    %2639 = vmatpush1.msra.mxu0 0.0
    %2640 = vmatprep.subr.mxu0 0.0
    %2641 = vmatpush1.msra.mxu0 0.0
    %2642 = vmatprep.subr.mxu0 0.0
    %2643 = vmatpush1.msra.mxu0 0.0
    %2644 = vmatprep.subr.mxu0 0.0
    %2645 = vmatpush1.msra.mxu0 0.0
    %2646 = vmatprep.subr.mxu0 0.0
    %2647 = vmatpush1.msra.mxu0 0.0
    %2648 = vmatprep.subr.mxu0 0.0
    %2649 = vmatpush1.msra.mxu0 0.0
    %2650 = vmatprep.subr.mxu0 0.0
    %2651 = vmatpush1.msra.mxu0 0.0
    %2652 = vmatprep.subr.mxu0 0.0
    %2653 = vmatpush1.msra.mxu0 0.0
    %2654 = vmatprep.subr.mxu0 0.0
    %2655 = vmatpush1.msra.mxu0 0.0
    %2656 = vmatprep.subr.mxu0 0.0
    %2657 = vmatpush1.msra.mxu0 0.0
    %2658 = vmatprep.subr.mxu0 0.0
    %2659 = vmatpush1.msra.mxu0 0.0
    %2660 = vmatprep.subr.mxu0 0.0
    %2661 = vmatpush1.msra.mxu0 0.0
    %2662 = vmatprep.subr.mxu0 0.0
    %2663 = vmatpush1.msra.mxu0 0.0
    %2664 = vmatprep.subr.mxu0 0.0
    %2665 = vmatpush1.msra.mxu0 0.0
    %2666 = vmatprep.subr.mxu0 0.0
    %2667 = vmatpush1.msra.mxu0 0.0
    %2668 = vmatprep.subr.mxu0 0.0
    %2669 = vmatpush1.msra.mxu0 0.0
    %2670 = vmatprep.subr.mxu0 0.0
    %2671 = vmatpush1.msra.mxu0 0.0
    %2672 = vmatprep.subr.mxu0 0.0
    %2673 = vmatpush1.msra.mxu0 0.0
    %2674 = vmatprep.mubr.f32.mxu0 0.0
    %2675 = vmatmul.mubr.f32.gmra.mrb[0].mxu0 %v2385
    %v2676 = vpop.f32.mrb[0].mxu0
    %v2677 = vadd.f32 %v2608, %v2676
    %v2678 = vpop.f32.mrb[0].mxu0
    %2679 = vmatprep.mubr.f32.mxu0 0.0
    %2680 = vmatmul.mubr.f32.gmra.mrb[0].mxu0 %v2388
    %v2681 = vpop.f32.mrb[0].mxu0
    %v2682 = vadd.f32 %v2608, %v2681
    %v2683 = vpop.f32.mrb[0].mxu0
    %2684 = vmatprep.mubr.f32.mxu0 0.0
    %2685 = vmatmul.mubr.f32.gmra.mrb[0].mxu0 %v2391
    %v2686 = vpop.f32.mrb[0].mxu0
    %v2687 = vadd.f32 %v2608, %v2686
    %v2688 = vpop.f32.mrb[0].mxu0
    %2689 = vmatprep.mubr.f32.mxu0 0.0
    %2690 = vmatmul.mubr.f32.gmra.mrb[0].mxu0 %v2394
    %v2691 = vpop.f32.mrb[0].mxu0
    %v2692 = vadd.f32 %v2608, %v2691
    %v2693 = vpop.f32.mrb[0].mxu0
    %2694 = vmatprep.mubr.f32.mxu0 0.0
    %2695 = vmatmul.mubr.f32.gmra.mrb[0].mxu0 %v2397
    %v2696 = vpop.f32.mrb[0].mxu0
    %v2697 = vadd.f32 %v2608, %v2696
    %v2698 = vpop.f32.mrb[0].mxu0
    %2699 = vmatprep.mubr.f32.mxu0 0.0
    %2700 = vmatmul.mubr.f32.gmra.mrb[0].mxu0 %v2400
    %v2701 = vpop.f32.mrb[0].mxu0
    %v2702 = vadd.f32 %v2608, %v2701
    %v2703 = vpop.f32.mrb[0].mxu0
    %2704 = vmatprep.mubr.f32.mxu0 0.0
    %2705 = vmatmul.mubr.f32.gmra.mrb[0].mxu0 %v2403
    %v2706 = vpop.f32.mrb[0].mxu0
    %v2707 = vadd.f32 %v2608, %v2706
    %v2708 = vpop.f32.mrb[0].mxu0
    %2709 = vmatprep.mubr.f32.mxu0 0.0
    %2710 = vmatmul.mubr.f32.gmra.mrb[0].mxu0 %v2406
    %v2711 = vpop.f32.mrb[0].mxu0
    %v2712 = vadd.f32 %v2608, %v2711
    %v2713 = vpop.f32.mrb[0].mxu0
    %2714 = vdwg.mxu0
    %v2715 = vmax.f32 %v2677, 0.0
    %v2716 = vmax.f32 %v2682, 0.0
    %v2717 = vmax.f32 %v2687, 0.0
    %v2718 = vmax.f32 %v2692, 0.0
    %v2719 = vmax.f32 %v2697, 0.0
    %v2720 = vmax.f32 %v2702, 0.0
    %v2721 = vmax.f32 %v2707, 0.0
    %v2722 = vmax.f32 %v2712, 0.0
    %v2723 = vld [vmem:[%s17] sm:$0xff]
    %v2724 = vld [vmem:[%s17 + $0x8] sm:$0xff]
    %v2725 = vld [vmem:[%s17 + $0x10] sm:$0xff]
    %v2726 = vld [vmem:[%s17 + $0x18] sm:$0xff]
    %v2727 = vld [vmem:[%s18] sm:$0x1]
    %v2729 = vlaneseq
    %v2730 = vshrl.u32 %v2729, 7
    %v2731 = vsub.s32 0, %v2730
    %v2732 = vrot.slane %v2727, %v2731
    %v2735 = vsel %vm95, %v2715, 0
    %v2738 = vsel %vm95, %v2716, 0
    %v2741 = vsel %vm95, %v2717, 0
    %v2744 = vsel %vm95, %v2718, 0
    %v2747 = vsel %vm95, %v2719, 0
    %v2750 = vsel %vm95, %v2720, 0
    %v2753 = vsel %vm95, %v2721, 0
    %v2756 = vsel %vm95, %v2722, 0
    %2758 = vmatprep.subr.mxu0 0.0
    %2759 = vmatpush1.msra.mxu0 %v2723
    %2760 = vmatprep.subr.mxu0 0.0
    %2761 = vmatpush1.msra.mxu0 %v2724
    %2762 = vmatprep.subr.mxu0 0.0
    %2763 = vmatpush1.msra.mxu0 %v2725
    %2764 = vmatprep.subr.mxu0 0.0
    %2765 = vmatpush1.msra.mxu0 %v2726
    %2766 = vmatprep.subr.mxu0 0.0
    %2767 = vmatpush1.msra.mxu0 0.0
    %2768 = vmatprep.subr.mxu0 0.0
    %2769 = vmatpush1.msra.mxu0 0.0
    %2770 = vmatprep.subr.mxu0 0.0
    %2771 = vmatpush1.msra.mxu0 0.0
    %2772 = vmatprep.subr.mxu0 0.0
    %2773 = vmatpush1.msra.mxu0 0.0
    %2774 = vmatprep.subr.mxu0 0.0
    %2775 = vmatpush1.msra.mxu0 0.0
    %2776 = vmatprep.subr.mxu0 0.0
    %2777 = vmatpush1.msra.mxu0 0.0
    %2778 = vmatprep.subr.mxu0 0.0
    %2779 = vmatpush1.msra.mxu0 0.0
    %2780 = vmatprep.subr.mxu0 0.0
    %2781 = vmatpush1.msra.mxu0 0.0
    %2782 = vmatprep.subr.mxu0 0.0
    %2783 = vmatpush1.msra.mxu0 0.0
    %2784 = vmatprep.subr.mxu0 0.0
    %2785 = vmatpush1.msra.mxu0 0.0
    %2786 = vmatprep.subr.mxu0 0.0
    %2787 = vmatpush1.msra.mxu0 0.0
    %2788 = vmatprep.subr.mxu0 0.0
    %2789 = vmatpush1.msra.mxu0 0.0
    %2790 = vmatprep.subr.mxu0 0.0
    %2791 = vmatpush1.msra.mxu0 0.0
    %2792 = vmatprep.subr.mxu0 0.0
    %2793 = vmatpush1.msra.mxu0 0.0
    %2794 = vmatprep.subr.mxu0 0.0
    %2795 = vmatpush1.msra.mxu0 0.0
    %2796 = vmatprep.subr.mxu0 0.0
    %2797 = vmatpush1.msra.mxu0 0.0
    %2798 = vmatprep.subr.mxu0 0.0
    %2799 = vmatpush1.msra.mxu0 0.0
    %2800 = vmatprep.subr.mxu0 0.0
    %2801 = vmatpush1.msra.mxu0 0.0
    %2802 = vmatprep.subr.mxu0 0.0
    %2803 = vmatpush1.msra.mxu0 0.0
    %2804 = vmatprep.subr.mxu0 0.0
    %2805 = vmatpush1.msra.mxu0 0.0
    %2806 = vmatprep.subr.mxu0 0.0
    %2807 = vmatpush1.msra.mxu0 0.0
    %2808 = vmatprep.subr.mxu0 0.0
    %2809 = vmatpush1.msra.mxu0 0.0
    %2810 = vmatprep.subr.mxu0 0.0
    %2811 = vmatpush1.msra.mxu0 0.0
    %2812 = vmatprep.subr.mxu0 0.0
    %2813 = vmatpush1.msra.mxu0 0.0
    %2814 = vmatprep.subr.mxu0 0.0
    %2815 = vmatpush1.msra.mxu0 0.0
    %2816 = vmatprep.subr.mxu0 0.0
    %2817 = vmatpush1.msra.mxu0 0.0
    %2818 = vmatprep.subr.mxu0 0.0
    %2819 = vmatpush1.msra.mxu0 0.0
    %2820 = vmatprep.subr.mxu0 0.0
    %2821 = vmatpush1.msra.mxu0 0.0
    %2822 = vmatprep.mubr.f32.mxu0 0.0
    %2823 = vmatmul.mubr.f32.gmra.mrb[0].mxu0 %v2735
    %v2824 = vpop.f32.mrb[0].mxu0
    %v2825 = vadd.f32 %v2732, %v2824
    %v2826 = vpop.f32.mrb[0].mxu0
    %2827 = vmatprep.mubr.f32.mxu0 0.0
    %2828 = vmatmul.mubr.f32.gmra.mrb[0].mxu0 %v2738
    %v2829 = vpop.f32.mrb[0].mxu0
    %v2830 = vadd.f32 %v2732, %v2829
    %v2831 = vpop.f32.mrb[0].mxu0
    %2832 = vmatprep.mubr.f32.mxu0 0.0
    %2833 = vmatmul.mubr.f32.gmra.mrb[0].mxu0 %v2741
    %v2834 = vpop.f32.mrb[0].mxu0
    %v2835 = vadd.f32 %v2732, %v2834
    %v2836 = vpop.f32.mrb[0].mxu0
    %2837 = vmatprep.mubr.f32.mxu0 0.0
    %2838 = vmatmul.mubr.f32.gmra.mrb[0].mxu0 %v2744
    %v2839 = vpop.f32.mrb[0].mxu0
    %v2840 = vadd.f32 %v2732, %v2839
    %v2841 = vpop.f32.mrb[0].mxu0
    %2842 = vmatprep.mubr.f32.mxu0 0.0
    %2843 = vmatmul.mubr.f32.gmra.mrb[0].mxu0 %v2747
    %v2844 = vpop.f32.mrb[0].mxu0
    %v2845 = vadd.f32 %v2732, %v2844
    %v2846 = vpop.f32.mrb[0].mxu0
    %2847 = vmatprep.mubr.f32.mxu0 0.0
    %2848 = vmatmul.mubr.f32.gmra.mrb[0].mxu0 %v2750
    %v2849 = vpop.f32.mrb[0].mxu0
    %v2850 = vadd.f32 %v2732, %v2849
    %v2851 = vpop.f32.mrb[0].mxu0
    %2852 = vmatprep.mubr.f32.mxu0 0.0
    %2853 = vmatmul.mubr.f32.gmra.mrb[0].mxu0 %v2753
    %v2854 = vpop.f32.mrb[0].mxu0
    %v2855 = vadd.f32 %v2732, %v2854
    %v2856 = vpop.f32.mrb[0].mxu0
    %2857 = vmatprep.mubr.f32.mxu0 0.0
    %2858 = vmatmul.mubr.f32.gmra.mrb[0].mxu0 %v2756
    %v2859 = vpop.f32.mrb[0].mxu0
    %v2860 = vadd.f32 %v2732, %v2859
    %v2861 = vpop.f32.mrb[0].mxu0
    %2862 = vdwg.mxu0
    %v2863 = vxor.u32 %v2825, 2147483648
    %v2864 = vxor.u32 %v2830, 2147483648
    %v2865 = vxor.u32 %v2835, 2147483648
    %v2866 = vxor.u32 %v2840, 2147483648
    %v2867 = vxor.u32 %v2845, 2147483648
    %v2868 = vxor.u32 %v2850, 2147483648
    %v2869 = vxor.u32 %v2855, 2147483648
    %v2870 = vxor.u32 %v2860, 2147483648
    %v2871 = vmul.f32 %v2863, 1.442695
    %v2872 = vpow.pop %v2871
    %v2873 = vmul.f32 %v2864, 1.442695
    %v2874 = vpow.pop %v2873
    %v2875 = vmul.f32 %v2865, 1.442695
    %v2876 = vpow.pop %v2875
    %v2877 = vmul.f32 %v2866, 1.442695
    %v2878 = vpow.pop %v2877
    %v2879 = vmul.f32 %v2867, 1.442695
    %v2880 = vpow.pop %v2879
    %v2881 = vmul.f32 %v2868, 1.442695
    %v2882 = vpow.pop %v2881
    %v2883 = vmul.f32 %v2869, 1.442695
    %v2884 = vpow.pop %v2883
    %v2885 = vmul.f32 %v2870, 1.442695
    %v2886 = vpow.pop %v2885
    %v2887 = vadd.f32 %v2872, 1.0
    %v2888 = vadd.f32 %v2874, 1.0
    %v2889 = vadd.f32 %v2876, 1.0
    %v2890 = vadd.f32 %v2878, 1.0
    %v2891 = vadd.f32 %v2880, 1.0
    %v2892 = vadd.f32 %v2882, 1.0
    %v2893 = vadd.f32 %v2884, 1.0
    %v2894 = vadd.f32 %v2886, 1.0
    %v2895 = vrcp.pop %v2887
    %v2896 = vmul.f32 1.0, %v2895
    %v2897 = vrcp.pop %v2888
    %v2898 = vmul.f32 1.0, %v2897
    %v2899 = vrcp.pop %v2889
    %v2900 = vmul.f32 1.0, %v2899
    %v2901 = vrcp.pop %v2890
    %v2902 = vmul.f32 1.0, %v2901
    %v2903 = vrcp.pop %v2891
    %v2904 = vmul.f32 1.0, %v2903
    %v2905 = vrcp.pop %v2892
    %v2906 = vmul.f32 1.0, %v2905
    %v2907 = vrcp.pop %v2893
    %v2908 = vmul.f32 1.0, %v2907
    %v2909 = vrcp.pop %v2894
    %v2910 = vmul.f32 1.0, %v2909
    %2911 = vst.msk [vmem:[%s25] sm:$0xff] %vm95, %v2896
    %2912 = vst.msk [vmem:[%s25 + $0x8] sm:$0xff] %vm95, %v2898
    %2913 = vst.msk [vmem:[%s25 + $0x10] sm:$0xff] %vm95, %v2900
    %2914 = vst.msk [vmem:[%s25 + $0x18] sm:$0xff] %vm95, %v2902
    %2915 = vst.msk [vmem:[%s25 + $0x20] sm:$0xff] %vm95, %v2904
    %2916 = vst.msk [vmem:[%s25 + $0x28] sm:$0xff] %vm95, %v2906
    %2917 = vst.msk [vmem:[%s25 + $0x30] sm:$0xff] %vm95, %v2908
    %2918 = vst.msk [vmem:[%s25 + $0x38] sm:$0xff] %vm95, %v2910
    %v2919 = vmax.f32 %v2825, 0.0
    %v2920 = vmax.f32 %v2830, 0.0
    %v2921 = vmax.f32 %v2835, 0.0
    %v2922 = vmax.f32 %v2840, 0.0
    %v2923 = vmax.f32 %v2845, 0.0
    %v2924 = vmax.f32 %v2850, 0.0
    %v2925 = vmax.f32 %v2855, 0.0
    %v2926 = vmax.f32 %v2860, 0.0
    %vm2927 = vcmp.ne.f32.partialorder %v2825, %v2825
    %vm2928 = vcmp.ne.f32.partialorder %v2830, %v2830
    %vm2929 = vcmp.ne.f32.partialorder %v2835, %v2835
    %vm2930 = vcmp.ne.f32.partialorder %v2840, %v2840
    %vm2931 = vcmp.ne.f32.partialorder %v2845, %v2845
    %vm2932 = vcmp.ne.f32.partialorder %v2850, %v2850
    %vm2933 = vcmp.ne.f32.partialorder %v2855, %v2855
    %vm2934 = vcmp.ne.f32.partialorder %v2860, %v2860
    %v2935 = vadd.f32 %v2825, 0.0
    %v2936 = vadd.f32 %v2830, 0.0
    %v2937 = vadd.f32 %v2835, 0.0
    %v2938 = vadd.f32 %v2840, 0.0
    %v2939 = vadd.f32 %v2845, 0.0
    %v2940 = vadd.f32 %v2850, 0.0
    %v2941 = vadd.f32 %v2855, 0.0
    %v2942 = vadd.f32 %v2860, 0.0
    %v2943 = vand.u32 2147483647, %v2825
    %v2944 = vand.u32 2147483647, %v2830
    %v2945 = vand.u32 2147483647, %v2835
    %v2946 = vand.u32 2147483647, %v2840
    %v2947 = vand.u32 2147483647, %v2845
    %v2948 = vand.u32 2147483647, %v2850
    %v2949 = vand.u32 2147483647, %v2855
    %v2950 = vand.u32 2147483647, %v2860
    %v2951 = vsub.f32 0.0, %v2943
    %v2952 = vsub.f32 0.0, %v2944
    %v2953 = vsub.f32 0.0, %v2945
    %v2954 = vsub.f32 0.0, %v2946
    %v2955 = vsub.f32 0.0, %v2947
    %v2956 = vsub.f32 0.0, %v2948
    %v2957 = vsub.f32 0.0, %v2949
    %v2958 = vsub.f32 0.0, %v2950
    %v2959 = vmul.f32 %v2951, 1.442695
    %v2960 = vpow.pop %v2959
    %v2961 = vmul.f32 %v2952, 1.442695
    %v2962 = vpow.pop %v2961
    %v2963 = vmul.f32 %v2953, 1.442695
    %v2964 = vpow.pop %v2963
    %v2965 = vmul.f32 %v2954, 1.442695
    %v2966 = vpow.pop %v2965
    %v2967 = vmul.f32 %v2955, 1.442695
    %v2968 = vpow.pop %v2967
    %v2969 = vmul.f32 %v2956, 1.442695
    %v2970 = vpow.pop %v2969
    %v2971 = vmul.f32 %v2957, 1.442695
    %v2972 = vpow.pop %v2971
    %v2973 = vmul.f32 %v2958, 1.442695
    %v2974 = vpow.pop %v2973
    %v2975 = vadd.f32 %v2960, 1.0
    %v2976 = vlog2.pop %v2975
    %v2977 = vmul.f32 %v2976, 0.6931472
    %v2978 = vmul.f32 -0.5, %v2960
    %v2979 = vadd.f32 %v2978, 1.0
    %v2980 = vmul.f32 %v2979, %v2960
    %v2981 = vand.u32 2147483647, %v2960
    %vm2982 = vcmp.lt.f32.partialorder %v2981, 0.0004427343
    %v2983 = vsel %vm2982, %v2980, %v2977
    %v2984 = vadd.f32 %v2962, 1.0
    %v2985 = vlog2.pop %v2984
    %v2986 = vmul.f32 %v2985, 0.6931472
    %v2987 = vmul.f32 -0.5, %v2962
    %v2988 = vadd.f32 %v2987, 1.0
    %v2989 = vmul.f32 %v2988, %v2962
    %v2990 = vand.u32 2147483647, %v2962
    %vm2991 = vcmp.lt.f32.partialorder %v2990, 0.0004427343
    %v2992 = vsel %vm2991, %v2989, %v2986
    %v2993 = vadd.f32 %v2964, 1.0
    %v2994 = vlog2.pop %v2993
    %v2995 = vmul.f32 %v2994, 0.6931472
    %v2996 = vmul.f32 -0.5, %v2964
    %v2997 = vadd.f32 %v2996, 1.0
    %v2998 = vmul.f32 %v2997, %v2964
    %v2999 = vand.u32 2147483647, %v2964
    %vm3000 = vcmp.lt.f32.partialorder %v2999, 0.0004427343
    %v3001 = vsel %vm3000, %v2998, %v2995
    %v3002 = vadd.f32 %v2966, 1.0
    %v3003 = vlog2.pop %v3002
    %v3004 = vmul.f32 %v3003, 0.6931472
    %v3005 = vmul.f32 -0.5, %v2966
    %v3006 = vadd.f32 %v3005, 1.0
    %v3007 = vmul.f32 %v3006, %v2966
    %v3008 = vand.u32 2147483647, %v2966
    %vm3009 = vcmp.lt.f32.partialorder %v3008, 0.0004427343
    %v3010 = vsel %vm3009, %v3007, %v3004
    %v3011 = vadd.f32 %v2968, 1.0
    %v3012 = vlog2.pop %v3011
    %v3013 = vmul.f32 %v3012, 0.6931472
    %v3014 = vmul.f32 -0.5, %v2968
    %v3015 = vadd.f32 %v3014, 1.0
    %v3016 = vmul.f32 %v3015, %v2968
    %v3017 = vand.u32 2147483647, %v2968
    %vm3018 = vcmp.lt.f32.partialorder %v3017, 0.0004427343
    %v3019 = vsel %vm3018, %v3016, %v3013
    %v3020 = vadd.f32 %v2970, 1.0
    %v3021 = vlog2.pop %v3020
    %v3022 = vmul.f32 %v3021, 0.6931472
    %v3023 = vmul.f32 -0.5, %v2970
    %v3024 = vadd.f32 %v3023, 1.0
    %v3025 = vmul.f32 %v3024, %v2970
    %v3026 = vand.u32 2147483647, %v2970
    %vm3027 = vcmp.lt.f32.partialorder %v3026, 0.0004427343
    %v3028 = vsel %vm3027, %v3025, %v3022
    %v3029 = vadd.f32 %v2972, 1.0
    %v3030 = vlog2.pop %v3029
    %v3031 = vmul.f32 %v3030, 0.6931472
    %v3032 = vmul.f32 -0.5, %v2972
    %v3033 = vadd.f32 %v3032, 1.0
    %v3034 = vmul.f32 %v3033, %v2972
    %v3035 = vand.u32 2147483647, %v2972
    %vm3036 = vcmp.lt.f32.partialorder %v3035, 0.0004427343
    %v3037 = vsel %vm3036, %v3034, %v3031
    %v3038 = vadd.f32 %v2974, 1.0
    %v3039 = vlog2.pop %v3038
    %v3040 = vmul.f32 %v3039, 0.6931472
    %v3041 = vmul.f32 -0.5, %v2974
    %v3042 = vadd.f32 %v3041, 1.0
    %v3043 = vmul.f32 %v3042, %v2974
    %v3044 = vand.u32 2147483647, %v2974
    %vm3045 = vcmp.lt.f32.partialorder %v3044, 0.0004427343
    %v3046 = vsel %vm3045, %v3043, %v3040
    %v3047 = vadd.f32 %v2919, %v2983
    %v3048 = vadd.f32 %v2920, %v2992
    %v3049 = vadd.f32 %v2921, %v3001
    %v3050 = vadd.f32 %v2922, %v3010
    %v3051 = vadd.f32 %v2923, %v3019
    %v3052 = vadd.f32 %v2924, %v3028
    %v3053 = vadd.f32 %v2925, %v3037
    %v3054 = vadd.f32 %v2926, %v3046
    %v3055 = vsel %vm2927, %v2935, %v3047
    %v3056 = vsel %vm2928, %v2936, %v3048
    %v3057 = vsel %vm2929, %v2937, %v3049
    %v3058 = vsel %vm2930, %v2938, %v3050
    %v3059 = vsel %vm2931, %v2939, %v3051
    %v3060 = vsel %vm2932, %v2940, %v3052
    %v3061 = vsel %vm2933, %v2941, %v3053
    %v3062 = vsel %vm2934, %v2942, %v3054
    %v3063 = vmax.f32 %v3055, 0.0001
    %v3064 = vmax.f32 %v3056, 0.0001
    %v3065 = vmax.f32 %v3057, 0.0001
    %v3066 = vmax.f32 %v3058, 0.0001
    %v3067 = vmax.f32 %v3059, 0.0001
    %v3068 = vmax.f32 %v3060, 0.0001
    %v3069 = vmax.f32 %v3061, 0.0001
    %v3070 = vmax.f32 %v3062, 0.0001
    %v3071 = vmin.f32 %v3063, 10000.0
    %v3072 = vmin.f32 %v3064, 10000.0
    %v3073 = vmin.f32 %v3065, 10000.0
    %v3074 = vmin.f32 %v3066, 10000.0
    %v3075 = vmin.f32 %v3067, 10000.0
    %v3076 = vmin.f32 %v3068, 10000.0
    %v3077 = vmin.f32 %v3069, 10000.0
    %v3078 = vmin.f32 %v3070, 10000.0
    %3087 = vrot.lane.b32.xlu0 %v3071, 96
    %v3088 = vpop.permute.xlu0 %3087
    %3089 = vrot.lane.b32.xlu0 %v3072, 96
    %v3090 = vpop.permute.xlu0 %3089
    %3091 = vrot.lane.b32.xlu0 %v3073, 96
    %v3092 = vpop.permute.xlu0 %3091
    %3093 = vrot.lane.b32.xlu0 %v3074, 96
    %v3094 = vpop.permute.xlu0 %3093
    %3095 = vrot.lane.b32.xlu0 %v3075, 96
    %v3096 = vpop.permute.xlu0 %3095
    %3097 = vrot.lane.b32.xlu0 %v3076, 96
    %v3098 = vpop.permute.xlu0 %3097
    %3099 = vrot.lane.b32.xlu0 %v3077, 96
    %v3100 = vpop.permute.xlu0 %3099
    %3101 = vrot.lane.b32.xlu0 %v3078, 96
    %v3102 = vpop.permute.xlu0 %3101
    %3111 = vst.msk [vmem:[%s26] sm:$0xff] %vm95, %v3088
    %3112 = vst.msk [vmem:[%s26 + $0x8] sm:$0xff] %vm95, %v3090
    %3113 = vst.msk [vmem:[%s26 + $0x10] sm:$0xff] %vm95, %v3092
    %3114 = vst.msk [vmem:[%s26 + $0x18] sm:$0xff] %vm95, %v3094
    %3115 = vst.msk [vmem:[%s26 + $0x20] sm:$0xff] %vm95, %v3096
    %3116 = vst.msk [vmem:[%s26 + $0x28] sm:$0xff] %vm95, %v3098
    %3117 = vst.msk [vmem:[%s26 + $0x30] sm:$0xff] %vm95, %v3100
    %3118 = vst.msk [vmem:[%s26 + $0x38] sm:$0xff] %vm95, %v3102
    %v3119 = vmax.f32 %v2825, -11.512925
    %v3120 = vmax.f32 %v2830, -11.512925
    %v3121 = vmax.f32 %v2835, -11.512925
    %v3122 = vmax.f32 %v2840, -11.512925
    %v3123 = vmax.f32 %v2845, -11.512925
    %v3124 = vmax.f32 %v2850, -11.512925
    %v3125 = vmax.f32 %v2855, -11.512925
    %v3126 = vmax.f32 %v2860, -11.512925
    %v3127 = vmin.f32 %v3119, 13.815511
    %v3128 = vmin.f32 %v3120, 13.815511
    %v3129 = vmin.f32 %v3121, 13.815511
    %v3130 = vmin.f32 %v3122, 13.815511
    %v3131 = vmin.f32 %v3123, 13.815511
    %v3132 = vmin.f32 %v3124, 13.815511
    %v3133 = vmin.f32 %v3125, 13.815511
    %v3134 = vmin.f32 %v3126, 13.815511
    %v3135 = vmul.f32 %v3127, 1.442695
    %v3136 = vpow.pop %v3135
    %v3137 = vmul.f32 %v3128, 1.442695
    %v3138 = vpow.pop %v3137
    %v3139 = vmul.f32 %v3129, 1.442695
    %v3140 = vpow.pop %v3139
    %v3141 = vmul.f32 %v3130, 1.442695
    %v3142 = vpow.pop %v3141
    %v3143 = vmul.f32 %v3131, 1.442695
    %v3144 = vpow.pop %v3143
    %v3145 = vmul.f32 %v3132, 1.442695
    %v3146 = vpow.pop %v3145
    %v3147 = vmul.f32 %v3133, 1.442695
    %v3148 = vpow.pop %v3147
    %v3149 = vmul.f32 %v3134, 1.442695
    %v3150 = vpow.pop %v3149
    %3159 = vrot.lane.b32.xlu0 %v3136, 64
    %v3160 = vpop.permute.xlu0 %3159
    %3161 = vrot.lane.b32.xlu0 %v3138, 64
    %v3162 = vpop.permute.xlu0 %3161
    %3163 = vrot.lane.b32.xlu0 %v3140, 64
    %v3164 = vpop.permute.xlu0 %3163
    %3165 = vrot.lane.b32.xlu0 %v3142, 64
    %v3166 = vpop.permute.xlu0 %3165
    %3167 = vrot.lane.b32.xlu0 %v3144, 64
    %v3168 = vpop.permute.xlu0 %3167
    %3169 = vrot.lane.b32.xlu0 %v3146, 64
    %v3170 = vpop.permute.xlu0 %3169
    %3171 = vrot.lane.b32.xlu0 %v3148, 64
    %v3172 = vpop.permute.xlu0 %3171
    %3173 = vrot.lane.b32.xlu0 %v3150, 64
    %v3174 = vpop.permute.xlu0 %3173
    %3183 = vst.msk [vmem:[%s27] sm:$0xff] %vm95, %v3160
    %3184 = vst.msk [vmem:[%s27 + $0x8] sm:$0xff] %vm95, %v3162
    %3185 = vst.msk [vmem:[%s27 + $0x10] sm:$0xff] %vm95, %v3164
    %3186 = vst.msk [vmem:[%s27 + $0x18] sm:$0xff] %vm95, %v3166
    %3187 = vst.msk [vmem:[%s27 + $0x20] sm:$0xff] %vm95, %v3168
    %3188 = vst.msk [vmem:[%s27 + $0x28] sm:$0xff] %vm95, %v3170
    %3189 = vst.msk [vmem:[%s27 + $0x30] sm:$0xff] %vm95, %v3172
    %3190 = vst.msk [vmem:[%s27 + $0x38] sm:$0xff] %vm95, %v3174
    // Predicated region
    $region82: #{_lambda_.1} parent=1 // pred_check
      _
    $region83: #{_lambda_.1} parent=1 // pred_check_branch
      %3192 = sbr.rel (0) target = $region85
    $region84: #{_lambda_.1} parent=1 // pred_region
      _
    $region85: #{_lambda_.1} parent=1 // pred_fallthru
      _
    // Predicated region
    $region86: #{_lambda_.1} parent=1 // pred_check
      _
    $region87: #{_lambda_.1} parent=1 // pred_check_branch
      %3194 = sbr.rel (0) target = $region89
    $region88: #{_lambda_.1} parent=1 // pred_region
      _
    $region89: #{_lambda_.1} parent=1 // pred_fallthru
      _
    // Predicated region
    $region90: #{_lambda_.1} parent=1 // pred_check
      _
    $region91: #{_lambda_.1} parent=1 // pred_check_branch
      %3196 = sbr.rel (0) target = $region93
    $region92: #{_lambda_.1} parent=1 // pred_region
      _
    $region93: #{_lambda_.1} parent=1 // pred_fallthru
      _
    // Predicated region
    $region94: #{_lambda_.1} parent=1 // pred_check
      _
    $region95: #{_lambda_.1} parent=1 // pred_check_branch
      %3198 = sbr.rel (0) target = $region97
    $region96: #{_lambda_.1} parent=1 // pred_region
      _
    $region97: #{_lambda_.1} parent=1 // pred_fallthru
      _
    // Predicated region
    $region98: #{_lambda_.1} parent=1 // pred_check
      _
    $region99: #{_lambda_.1} parent=1 // pred_check_branch
      %3200 = sbr.rel (0) target = $region101
    $region100: #{_lambda_.1} parent=1 // pred_region
      %s3202 = ssub.s32 1024, 1024
      %3203 = vsyncadd [#allocation4], %s3202
      %s3204 = sshll.u32 [#allocation3], 4
      %s3205 = int_to_ptr.vmem [resolvable:$true] %s3204
      %3210 = dma.vmem_to_hbm [thread:$0]  %s3205, 1024, %s24, [#allocation4], 128, 128, 8
    $region101: #{_lambda_.1} parent=1 // pred_fallthru
      _
    // Predicated region
    $region102: #{_lambda_.1} parent=1 // pred_check
      _
    $region103: #{_lambda_.1} parent=1 // pred_check_branch
      %3212 = sbr.rel (0) target = $region105
    $region104: #{_lambda_.1} parent=1 // pred_region
      _
    $region105: #{_lambda_.1} parent=1 // pred_fallthru
      _
    // Predicated region
    $region106: #{_lambda_.1} parent=1 // pred_check
      _
    $region107: #{_lambda_.1} parent=1 // pred_check_branch
      %3214 = sbr.rel (0) target = $region109
    $region108: #{_lambda_.1} parent=1 // pred_region
      _
    $region109: #{_lambda_.1} parent=1 // pred_fallthru
      _
    // Predicated region
    $region110: #{_lambda_.1} parent=1 // pred_check
      _
    $region111: #{_lambda_.1} parent=1 // pred_check_branch
      %3216 = sbr.rel (0) target = $region113
    $region112: #{_lambda_.1} parent=1 // pred_region
      _
    $region113: #{_lambda_.1} parent=1 // pred_fallthru
      _
    // Predicated region
    $region114: #{_lambda_.1} parent=1 // pred_check
      _
    $region115: #{_lambda_.1} parent=1 // pred_check_branch
      %3218 = sbr.rel (0) target = $region117
    $region116: #{_lambda_.1} parent=1 // pred_region
      _
    $region117: #{_lambda_.1} parent=1 // pred_fallthru
      _
    // Predicated region
    $region118: #{_lambda_.1} parent=1 // pred_check
      _
    $region119: #{_lambda_.1} parent=1 // pred_check_branch
      %3220 = sbr.rel (0) target = $region121
    $region120: #{_lambda_.1} parent=1 // pred_region
      _
    $region121: #{_lambda_.1} parent=1 // pred_fallthru
      _
    // Predicated region
    $region122: #{_lambda_.1} parent=1 // pred_check
      _
    $region123: #{_lambda_.1} parent=1 // pred_check_branch
      %3222 = sbr.rel (0) target = $region125
    $region124: #{_lambda_.1} parent=1 // pred_region
      _
    $region125: #{_lambda_.1} parent=1 // pred_fallthru
      _
    // Predicated region
    $region126: #{_lambda_.1} parent=1 // pred_check
      _
    $region127: #{_lambda_.1} parent=1 // pred_check_branch
      %3224 = sbr.rel (0) target = $region129
    $region128: #{_lambda_.1} parent=1 // pred_region
      _
    $region129: #{_lambda_.1} parent=1 // pred_fallthru
      _
    // Predicated region
    $region130: #{_lambda_.1} parent=1 // pred_check
      _
    $region131: #{_lambda_.1} parent=1 // pred_check_branch
      %3226 = sbr.rel (0) target = $region133
    $region132: #{_lambda_.1} parent=1 // pred_region
      %3227 = dma.done [#allocation4], 1024
    $region133: #{_lambda_.1} parent=1 // pred_fallthru
      _
    // Predicated region
    $region134: #{_lambda_.1} parent=1 // pred_check
      _
    $region135: #{_lambda_.1} parent=1 // pred_check_branch
      %3229 = sbr.rel (0) target = $region137
    $region136: #{_lambda_.1} parent=1 // pred_region
      _
    $region137: #{_lambda_.1} parent=1 // pred_fallthru
      _
    // Predicated region
    $region138: #{_lambda_.1} parent=1 // pred_check
      _
    $region139: #{_lambda_.1} parent=1 // pred_check_branch
      %3231 = sbr.rel (0) target = $region141
    $region140: #{_lambda_.1} parent=1 // pred_region
      _
    $region141: #{_lambda_.1} parent=1 // pred_fallthru
      _
    // Predicated region
    $region142: #{_lambda_.1} parent=1 // pred_check
      _
    $region143: #{_lambda_.1} parent=1 // pred_check_branch
      %3233 = sbr.rel (0) target = $region145
    $region144: #{_lambda_.1} parent=1 // pred_region
      _
    $region145: #{_lambda_.1} parent=1 // pred_fallthru
      _
    %3234 = vsyncpa [#allocation4], 1

</llo_original>
